<compile_context>
chip_gen: v7x
topology: tpu7x:2x2x1
jax: 0.10.0
libtpu: 0.0.40
codegen_flags: <defaults>
</compile_context>

<pallas_src>
import functools

import numpy as np
import jax
import jax.numpy as jnp
from jax import lax
from jax.experimental import pallas as pl
from jax.experimental.pallas import tpu as pltpu


def _upsample_fused_kernel(x_ref, w1_ref, b1_ref, mask_ref, w2_ref, b2_ref,
                           o_ref, p1_ref, y_ref, p2_ref, *, C, Wg, Ly, M2):
    """Fused ConvTranspose2d(5x5,s2) + Conv2d(3x3,p1) for one batch element.

    x_ref   : (1, C, L1)   VMEM  dilated input placed on a zero-padded flat grid
    w1_ref  : (C, 25*C)    VMEM  transposed-conv weight, im2col (tap-major K)
    b1_ref  : (C, 1)       VMEM
    mask_ref: (1, Ly)      VMEM  1 on the valid (2H,2W) region of the y grid
    w2_ref  : (C, 9*C)     VMEM  3x3 conv weight, im2col (tap-major K)
    b2_ref  : (C, 1)       VMEM
    o_ref   : (1, C, M2)   VMEM  lane-dense flat output (valid cols sliced later)
    p1_ref  : (25*C, Ly)   VMEM scratch  im2col patches for conv 1
    y_ref   : (C, Ly)      VMEM scratch  fused intermediate (never hits HBM)
    p2_ref  : (9*C, M2)    VMEM scratch  im2col patches for conv 2
    """
    # ---- ConvTranspose2d == valid 5x5 correlation over the dilated flat grid.
    for t in range(25):
        ky, kx = t // 5, t % 5
        off = ky * Wg + kx
        p1_ref[t * C:(t + 1) * C, :] = x_ref[0, :, off:off + Ly]
    y = jnp.dot(w1_ref[...], p1_ref[...], preferred_element_type=jnp.float32)
    # bias, then zero everything outside the valid (2H, 2W) region — the
    # masked grid IS the zero-padded (pad=1) input of the 3x3 conv.
    y_ref[...] = (y + b1_ref[...]) * mask_ref[...]

    # ---- Conv2d(3x3, pad=1) over the masked flat y grid.
    for t in range(9):
        dy, dx = t // 3, t % 3
        off = dy * Wg + dx
        p2_ref[t * C:(t + 1) * C, :] = y_ref[:, off:off + M2]
    z = jnp.dot(w2_ref[...], p2_ref[...], preferred_element_type=jnp.float32)
    o_ref[0, :, :] = (z + b2_ref[...]).astype(o_ref.dtype)


def precompute_upsample_params(params, H, W):
    """One-time (init) parameter prep: weight layout, biases, border mask."""
    wt, bt, wc, bc = params["wt"], params["bt"], params["wc"], params["bc"]
    C = wt.shape[0]                               # in_ch == out_ch here
    # ConvTranspose2d weight (Cin, Cout, 5, 5) -> equivalent correlation
    # weight: channel transpose + spatial flip.
    wt_eq = jnp.transpose(jnp.flip(wt, axis=(-2, -1)), (1, 0, 2, 3))  # (C,C,5,5)
    # im2col row ordering: row = tap*C + ci, tap = ky*5 + kx.
    w1 = jnp.transpose(wt_eq, (0, 2, 3, 1)).reshape(C, 25 * C)
    w2 = jnp.transpose(wc, (0, 2, 3, 1)).reshape(C, 9 * C)

    Wg = 2 * W + 8                 # flat grid width (>= 2W+5; multiple of 4)
    Hg = 2 * H + 8                 # rows of the conv-1 input grid
    Ly = (2 * H + 3) * Wg          # flat length of the intermediate y grid
    M2 = 2 * H * Wg                # flat length of the kernel output rows

    q = jnp.arange(Ly, dtype=jnp.int32)
    r, c = q // Wg, q % Wg
    mask = (((r >= 1) & (r <= 2 * H) & (c >= 1) & (c <= 2 * W))
            .astype(jnp.float32))[None, :]        # (1, Ly)

    return {
        "w1": w1.astype(jnp.float32), "b1": bt.reshape(C, 1).astype(jnp.float32),
        "w2": w2.astype(jnp.float32), "b2": bc.reshape(C, 1).astype(jnp.float32),
        "mask": mask, "C": C, "H": H, "W": W,
        "Wg": Wg, "Hg": Hg, "Ly": Ly, "M2": M2,
    }


def upsample_forward(x, temb, cemb, cemb1, prep):
    """UpSample.forward.  temb/cemb/cemb1 accepted but unused (as in PyTorch)."""
    del temb, cemb, cemb1
    B, C, H, W = x.shape
    Wg, Hg, Ly, M2 = prep["Wg"], prep["Hg"], prep["Ly"], prep["M2"]
    L1 = Hg * Wg

    # Dilate by the stride (interior padding) and place the dilated image at
    # offset (3, 3) of the (Hg, Wg) grid in a single lax.pad (no scatter).
    pad_h = (3, Hg - 3 - (2 * H - 1), 1)
    pad_w = (3, Wg - 3 - (2 * W - 1), 1)
    xg = lax.pad(x, jnp.zeros((), x.dtype),
                 ((0, 0, 0), (0, 0, 0), pad_h, pad_w))
    xg = xg.reshape(B, C, L1)

    kernel = functools.partial(_upsample_fused_kernel, C=C, Wg=Wg, Ly=Ly, M2=M2)
    out_flat = pl.pallas_call(
        kernel,
        out_shape=jax.ShapeDtypeStruct((B, C, M2), x.dtype),
        grid=(B,),
        in_specs=[
            pl.BlockSpec((1, C, L1), lambda b: (b, 0, 0)),     # x flat grid
            pl.BlockSpec((C, 25 * C), lambda b: (0, 0)),       # w1 (VMEM)
            pl.BlockSpec((C, 1), lambda b: (0, 0)),            # b1
            pl.BlockSpec((1, Ly), lambda b: (0, 0)),           # border mask
            pl.BlockSpec((C, 9 * C), lambda b: (0, 0)),        # w2 (VMEM)
            pl.BlockSpec((C, 1), lambda b: (0, 0)),            # b2
        ],
        out_specs=pl.BlockSpec((1, C, M2), lambda b: (b, 0, 0)),
        scratch_shapes=[
            pltpu.VMEM((25 * C, Ly), jnp.float32),   # im2col patches, conv 1
            pltpu.VMEM((C, Ly), jnp.float32),        # fused intermediate y
            pltpu.VMEM((9 * C, M2), jnp.float32),    # im2col patches, conv 2
        ],
        compiler_params=pltpu.CompilerParams(
            dimension_semantics=("parallel",)),
    )(xg, prep["w1"], prep["b1"], prep["mask"], prep["w2"], prep["b2"])

    # Lane-dense kernel output -> (B, C, 2H, 2W): drop the Wg-2W garbage cols.
    return out_flat.reshape(B, C, 2 * H, Wg)[:, :, :, :2 * W]


def _reference(x, params):
    """Pure-JAX reference (lax convolutions) for the correctness check."""
    wt, bt, wc, bc = params["wt"], params["bt"], params["wc"], params["bc"]
    wt_eq = jnp.transpose(jnp.flip(wt, axis=(-2, -1)), (1, 0, 2, 3))
    y = lax.conv_general_dilated(
        x, wt_eq, window_strides=(1, 1), padding=[(2, 3), (2, 3)],
        lhs_dilation=(2, 2), dimension_numbers=("NCHW", "OIHW", "NCHW"),
        precision=lax.Precision.HIGHEST) + bt[None, :, None, None]
    z = lax.conv_general_dilated(
        y, wc, window_strides=(1, 1), padding=[(1, 1), (1, 1)],
        dimension_numbers=("NCHW", "OIHW", "NCHW"),
        precision=lax.Precision.HIGHEST) + bc[None, :, None, None]
    return z


if __name__ == "__main__":
    B, in_ch, H, W = 2, 4, 16, 16
    key = jax.random.PRNGKey(0)
    kx, k1, k2, k3, k4, k5, k6, k7 = jax.random.split(key, 8)

    x = jax.random.normal(kx, (B, in_ch, H, W), jnp.float32)
    # unused conditioning inputs (the module never reads them)
    temb = jax.random.normal(k5, (B, 32), jnp.float32)
    cemb = jax.random.normal(k6, (B, 32), jnp.float32)
    cemb1 = jax.random.normal(k7, (B, 32), jnp.float32)

    params = {
        # ConvTranspose2d weight: (in_ch, out_ch, 5, 5)
        "wt": 0.1 * jax.random.normal(k1, (in_ch, in_ch, 5, 5), jnp.float32),
        "bt": 0.1 * jax.random.normal(k2, (in_ch,), jnp.float32),
        # Conv2d weight: (out_ch, in_ch, 3, 3)
        "wc": 0.1 * jax.random.normal(k3, (in_ch, in_ch, 3, 3), jnp.float32),
        "bc": 0.1 * jax.random.normal(k4, (in_ch,), jnp.float32),
    }

    prep = precompute_upsample_params(params, H, W)   # one-time init-style work
    out = upsample_forward(x, temb, cemb, cemb1, prep)
    out = jax.block_until_ready(out)
    assert out.shape == (B, in_ch, 2 * H, 2 * W), out.shape

    ref = jax.block_until_ready(_reference(x, params))
    # Tolerance covers MXU f32-matmul accumulation differences vs the XLA conv
    # path; any geometry / weight-ordering bug would show up as O(0.1+) errors.
    np.testing.assert_allclose(np.asarray(out), np.asarray(ref),
                               rtol=5e-3, atol=5e-3)

    print("KERNEL_OK")
</pallas_src>

<mosaic_0001>
module attributes {stable_mosaic.version = 11 : i64} {
  func.func @_upsample_fused_kernel(%arg0: i32, %arg1: memref<1x4x1600xf32, #tpu.memory_space<vmem>>, %arg2: memref<4x100xf32, #tpu.memory_space<vmem>>, %arg3: memref<4x1xf32, #tpu.memory_space<vmem>>, %arg4: memref<1x1400xf32, #tpu.memory_space<vmem>>, %arg5: memref<4x36xf32, #tpu.memory_space<vmem>>, %arg6: memref<4x1xf32, #tpu.memory_space<vmem>>, %arg7: memref<1x4x1280xf32, #tpu.memory_space<vmem>>, %arg8: memref<100x1400xf32, #tpu.memory_space<vmem>>, %arg9: memref<4x1400xf32, #tpu.memory_space<vmem>>, %arg10: memref<36x1280xf32, #tpu.memory_space<vmem>>) attributes {dimension_semantics = [#tpu.dimension_semantics<parallel>], iteration_bounds = array<i64: 2>, scalar_prefetch = 0 : i64, scratch_operands = 3 : i64, tpu.core_type = #tpu.core_type<tc>, window_params = [{transform_indices = @transform_0, window_bounds = array<i64: 1, 4, 1600>}, {pipeline_mode = #tpu.pipeline_mode<synchronous>, transform_indices = @transform_1, window_bounds = array<i64: 4, 100>}, {pipeline_mode = #tpu.pipeline_mode<synchronous>, transform_indices = @transform_2, window_bounds = array<i64: 4, 1>}, {pipeline_mode = #tpu.pipeline_mode<synchronous>, transform_indices = @transform_3, window_bounds = array<i64: 1, 1400>}, {pipeline_mode = #tpu.pipeline_mode<synchronous>, transform_indices = @transform_4, window_bounds = array<i64: 4, 36>}, {pipeline_mode = #tpu.pipeline_mode<synchronous>, transform_indices = @transform_5, window_bounds = array<i64: 4, 1>}, {transform_indices = @transform_6, window_bounds = array<i64: 1, 4, 1280>}]} {
    %c0 = arith.constant 0 : index
    %c0_0 = arith.constant 0 : index
    %c0_1 = arith.constant 0 : index
    %0 = vector.load %arg1[%c0, %c0_0, %c0_1] : memref<1x4x1600xf32, #tpu.memory_space<vmem>>, vector<1x4x1400xf32>
    %1 = vector.shape_cast %0 : vector<1x4x1400xf32> to vector<4x1400xf32>
    %c0_2 = arith.constant 0 : index
    %c0_3 = arith.constant 0 : index
    %2 = vector.load %arg8[%c0_2, %c0_3] : memref<100x1400xf32, #tpu.memory_space<vmem>>, vector<4x1400xf32>
    tpu.vector_store %arg8[%c0_2, %c0_3], %1 {strides = array<i32>} : memref<100x1400xf32, #tpu.memory_space<vmem>>, vector<4x1400xf32>,
    %c0_4 = arith.constant 0 : index
    %c0_5 = arith.constant 0 : index
    %c1 = arith.constant 1 : index
    %3 = vector.load %arg1[%c0_4, %c0_5, %c1] : memref<1x4x1600xf32, #tpu.memory_space<vmem>>, vector<1x4x1400xf32>
    %4 = vector.shape_cast %3 : vector<1x4x1400xf32> to vector<4x1400xf32>
    %c4 = arith.constant 4 : index
    %c0_6 = arith.constant 0 : index
    %5 = vector.load %arg8[%c4, %c0_6] : memref<100x1400xf32, #tpu.memory_space<vmem>>, vector<4x1400xf32>
    tpu.vector_store %arg8[%c4, %c0_6], %4 {strides = array<i32>} : memref<100x1400xf32, #tpu.memory_space<vmem>>, vector<4x1400xf32>,
    %c0_7 = arith.constant 0 : index
    %c0_8 = arith.constant 0 : index
    %c2 = arith.constant 2 : index
    %6 = vector.load %arg1[%c0_7, %c0_8, %c2] : memref<1x4x1600xf32, #tpu.memory_space<vmem>>, vector<1x4x1400xf32>
    %7 = vector.shape_cast %6 : vector<1x4x1400xf32> to vector<4x1400xf32>
    %c8 = arith.constant 8 : index
    %c0_9 = arith.constant 0 : index
    %8 = vector.load %arg8[%c8, %c0_9] : memref<100x1400xf32, #tpu.memory_space<vmem>>, vector<4x1400xf32>
    tpu.vector_store %arg8[%c8, %c0_9], %7 {strides = array<i32>} : memref<100x1400xf32, #tpu.memory_space<vmem>>, vector<4x1400xf32>,
    %c0_10 = arith.constant 0 : index
    %c0_11 = arith.constant 0 : index
    %c3 = arith.constant 3 : index
    %9 = vector.load %arg1[%c0_10, %c0_11, %c3] : memref<1x4x1600xf32, #tpu.memory_space<vmem>>, vector<1x4x1400xf32>
    %10 = vector.shape_cast %9 : vector<1x4x1400xf32> to vector<4x1400xf32>
    %c12 = arith.constant 12 : index
    %c0_12 = arith.constant 0 : index
    %11 = vector.load %arg8[%c12, %c0_12] : memref<100x1400xf32, #tpu.memory_space<vmem>>, vector<4x1400xf32>
    tpu.vector_store %arg8[%c12, %c0_12], %10 {strides = array<i32>} : memref<100x1400xf32, #tpu.memory_space<vmem>>, vector<4x1400xf32>,
    %c0_13 = arith.constant 0 : index
    %c0_14 = arith.constant 0 : index
    %c4_15 = arith.constant 4 : index
    %12 = vector.load %arg1[%c0_13, %c0_14, %c4_15] : memref<1x4x1600xf32, #tpu.memory_space<vmem>>, vector<1x4x1400xf32>
    %13 = vector.shape_cast %12 : vector<1x4x1400xf32> to vector<4x1400xf32>
    %c16 = arith.constant 16 : index
    %c0_16 = arith.constant 0 : index
    %14 = vector.load %arg8[%c16, %c0_16] : memref<100x1400xf32, #tpu.memory_space<vmem>>, vector<4x1400xf32>
    tpu.vector_store %arg8[%c16, %c0_16], %13 {strides = array<i32>} : memref<100x1400xf32, #tpu.memory_space<vmem>>, vector<4x1400xf32>,
    %c0_17 = arith.constant 0 : index
    %c0_18 = arith.constant 0 : index
    %c40 = arith.constant 40 : index
    %15 = vector.load %arg1[%c0_17, %c0_18, %c40] : memref<1x4x1600xf32, #tpu.memory_space<vmem>>, vector<1x4x1400xf32>
    %16 = vector.shape_cast %15 : vector<1x4x1400xf32> to vector<4x1400xf32>
    %c20 = arith.constant 20 : index
    %c0_19 = arith.constant 0 : index
    %17 = vector.load %arg8[%c20, %c0_19] : memref<100x1400xf32, #tpu.memory_space<vmem>>, vector<4x1400xf32>
    tpu.vector_store %arg8[%c20, %c0_19], %16 {strides = array<i32>} : memref<100x1400xf32, #tpu.memory_space<vmem>>, vector<4x1400xf32>,
    %c0_20 = arith.constant 0 : index
    %c0_21 = arith.constant 0 : index
    %c41 = arith.constant 41 : index
    %18 = vector.load %arg1[%c0_20, %c0_21, %c41] : memref<1x4x1600xf32, #tpu.memory_space<vmem>>, vector<1x4x1400xf32>
    %19 = vector.shape_cast %18 : vector<1x4x1400xf32> to vector<4x1400xf32>
    %c24 = arith.constant 24 : index
    %c0_22 = arith.constant 0 : index
    %20 = vector.load %arg8[%c24, %c0_22] : memref<100x1400xf32, #tpu.memory_space<vmem>>, vector<4x1400xf32>
    tpu.vector_store %arg8[%c24, %c0_22], %19 {strides = array<i32>} : memref<100x1400xf32, #tpu.memory_space<vmem>>, vector<4x1400xf32>,
    %c0_23 = arith.constant 0 : index
    %c0_24 = arith.constant 0 : index
    %c42 = arith.constant 42 : index
    %21 = vector.load %arg1[%c0_23, %c0_24, %c42] : memref<1x4x1600xf32, #tpu.memory_space<vmem>>, vector<1x4x1400xf32>
    %22 = vector.shape_cast %21 : vector<1x4x1400xf32> to vector<4x1400xf32>
    %c28 = arith.constant 28 : index
    %c0_25 = arith.constant 0 : index
    %23 = vector.load %arg8[%c28, %c0_25] : memref<100x1400xf32, #tpu.memory_space<vmem>>, vector<4x1400xf32>
    tpu.vector_store %arg8[%c28, %c0_25], %22 {strides = array<i32>} : memref<100x1400xf32, #tpu.memory_space<vmem>>, vector<4x1400xf32>,
    %c0_26 = arith.constant 0 : index
    %c0_27 = arith.constant 0 : index
    %c43 = arith.constant 43 : index
    %24 = vector.load %arg1[%c0_26, %c0_27, %c43] : memref<1x4x1600xf32, #tpu.memory_space<vmem>>, vector<1x4x1400xf32>
    %25 = vector.shape_cast %24 : vector<1x4x1400xf32> to vector<4x1400xf32>
    %c32 = arith.constant 32 : index
    %c0_28 = arith.constant 0 : index
    %26 = vector.load %arg8[%c32, %c0_28] : memref<100x1400xf32, #tpu.memory_space<vmem>>, vector<4x1400xf32>
    tpu.vector_store %arg8[%c32, %c0_28], %25 {strides = array<i32>} : memref<100x1400xf32, #tpu.memory_space<vmem>>, vector<4x1400xf32>,
    %c0_29 = arith.constant 0 : index
    %c0_30 = arith.constant 0 : index
    %c44 = arith.constant 44 : index
    %27 = vector.load %arg1[%c0_29, %c0_30, %c44] : memref<1x4x1600xf32, #tpu.memory_space<vmem>>, vector<1x4x1400xf32>
    %28 = vector.shape_cast %27 : vector<1x4x1400xf32> to vector<4x1400xf32>
    %c36 = arith.constant 36 : index
    %c0_31 = arith.constant 0 : index
    %29 = vector.load %arg8[%c36, %c0_31] : memref<100x1400xf32, #tpu.memory_space<vmem>>, vector<4x1400xf32>
    tpu.vector_store %arg8[%c36, %c0_31], %28 {strides = array<i32>} : memref<100x1400xf32, #tpu.memory_space<vmem>>, vector<4x1400xf32>,
    %c0_32 = arith.constant 0 : index
    %c0_33 = arith.constant 0 : index
    %c80 = arith.constant 80 : index
    %30 = vector.load %arg1[%c0_32, %c0_33, %c80] : memref<1x4x1600xf32, #tpu.memory_space<vmem>>, vector<1x4x1400xf32>
    %31 = vector.shape_cast %30 : vector<1x4x1400xf32> to vector<4x1400xf32>
    %c40_34 = arith.constant 40 : index
    %c0_35 = arith.constant 0 : index
    %32 = vector.load %arg8[%c40_34, %c0_35] : memref<100x1400xf32, #tpu.memory_space<vmem>>, vector<4x1400xf32>
    tpu.vector_store %arg8[%c40_34, %c0_35], %31 {strides = array<i32>} : memref<100x1400xf32, #tpu.memory_space<vmem>>, vector<4x1400xf32>,
    %c0_36 = arith.constant 0 : index
    %c0_37 = arith.constant 0 : index
    %c81 = arith.constant 81 : index
    %33 = vector.load %arg1[%c0_36, %c0_37, %c81] : memref<1x4x1600xf32, #tpu.memory_space<vmem>>, vector<1x4x1400xf32>
    %34 = vector.shape_cast %33 : vector<1x4x1400xf32> to vector<4x1400xf32>
    %c44_38 = arith.constant 44 : index
    %c0_39 = arith.constant 0 : index
    %35 = vector.load %arg8[%c44_38, %c0_39] : memref<100x1400xf32, #tpu.memory_space<vmem>>, vector<4x1400xf32>
    tpu.vector_store %arg8[%c44_38, %c0_39], %34 {strides = array<i32>} : memref<100x1400xf32, #tpu.memory_space<vmem>>, vector<4x1400xf32>,
    %c0_40 = arith.constant 0 : index
    %c0_41 = arith.constant 0 : index
    %c82 = arith.constant 82 : index
    %36 = vector.load %arg1[%c0_40, %c0_41, %c82] : memref<1x4x1600xf32, #tpu.memory_space<vmem>>, vector<1x4x1400xf32>
    %37 = vector.shape_cast %36 : vector<1x4x1400xf32> to vector<4x1400xf32>
    %c48 = arith.constant 48 : index
    %c0_42 = arith.constant 0 : index
    %38 = vector.load %arg8[%c48, %c0_42] : memref<100x1400xf32, #tpu.memory_space<vmem>>, vector<4x1400xf32>
    tpu.vector_store %arg8[%c48, %c0_42], %37 {strides = array<i32>} : memref<100x1400xf32, #tpu.memory_space<vmem>>, vector<4x1400xf32>,
    %c0_43 = arith.constant 0 : index
    %c0_44 = arith.constant 0 : index
    %c83 = arith.constant 83 : index
    %39 = vector.load %arg1[%c0_43, %c0_44, %c83] : memref<1x4x1600xf32, #tpu.memory_space<vmem>>, vector<1x4x1400xf32>
    %40 = vector.shape_cast %39 : vector<1x4x1400xf32> to vector<4x1400xf32>
    %c52 = arith.constant 52 : index
    %c0_45 = arith.constant 0 : index
    %41 = vector.load %arg8[%c52, %c0_45] : memref<100x1400xf32, #tpu.memory_space<vmem>>, vector<4x1400xf32>
    tpu.vector_store %arg8[%c52, %c0_45], %40 {strides = array<i32>} : memref<100x1400xf32, #tpu.memory_space<vmem>>, vector<4x1400xf32>,
    %c0_46 = arith.constant 0 : index
    %c0_47 = arith.constant 0 : index
    %c84 = arith.constant 84 : index
    %42 = vector.load %arg1[%c0_46, %c0_47, %c84] : memref<1x4x1600xf32, #tpu.memory_space<vmem>>, vector<1x4x1400xf32>
    %43 = vector.shape_cast %42 : vector<1x4x1400xf32> to vector<4x1400xf32>
    %c56 = arith.constant 56 : index
    %c0_48 = arith.constant 0 : index
    %44 = vector.load %arg8[%c56, %c0_48] : memref<100x1400xf32, #tpu.memory_space<vmem>>, vector<4x1400xf32>
    tpu.vector_store %arg8[%c56, %c0_48], %43 {strides = array<i32>} : memref<100x1400xf32, #tpu.memory_space<vmem>>, vector<4x1400xf32>,
    %c0_49 = arith.constant 0 : index
    %c0_50 = arith.constant 0 : index
    %c120 = arith.constant 120 : index
    %45 = vector.load %arg1[%c0_49, %c0_50, %c120] : memref<1x4x1600xf32, #tpu.memory_space<vmem>>, vector<1x4x1400xf32>
    %46 = vector.shape_cast %45 : vector<1x4x1400xf32> to vector<4x1400xf32>
    %c60 = arith.constant 60 : index
    %c0_51 = arith.constant 0 : index
    %47 = vector.load %arg8[%c60, %c0_51] : memref<100x1400xf32, #tpu.memory_space<vmem>>, vector<4x1400xf32>
    tpu.vector_store %arg8[%c60, %c0_51], %46 {strides = array<i32>} : memref<100x1400xf32, #tpu.memory_space<vmem>>, vector<4x1400xf32>,
    %c0_52 = arith.constant 0 : index
    %c0_53 = arith.constant 0 : index
    %c121 = arith.constant 121 : index
    %48 = vector.load %arg1[%c0_52, %c0_53, %c121] : memref<1x4x1600xf32, #tpu.memory_space<vmem>>, vector<1x4x1400xf32>
    %49 = vector.shape_cast %48 : vector<1x4x1400xf32> to vector<4x1400xf32>
    %c64 = arith.constant 64 : index
    %c0_54 = arith.constant 0 : index
    %50 = vector.load %arg8[%c64, %c0_54] : memref<100x1400xf32, #tpu.memory_space<vmem>>, vector<4x1400xf32>
    tpu.vector_store %arg8[%c64, %c0_54], %49 {strides = array<i32>} : memref<100x1400xf32, #tpu.memory_space<vmem>>, vector<4x1400xf32>,
    %c0_55 = arith.constant 0 : index
    %c0_56 = arith.constant 0 : index
    %c122 = arith.constant 122 : index
    %51 = vector.load %arg1[%c0_55, %c0_56, %c122] : memref<1x4x1600xf32, #tpu.memory_space<vmem>>, vector<1x4x1400xf32>
    %52 = vector.shape_cast %51 : vector<1x4x1400xf32> to vector<4x1400xf32>
    %c68 = arith.constant 68 : index
    %c0_57 = arith.constant 0 : index
    %53 = vector.load %arg8[%c68, %c0_57] : memref<100x1400xf32, #tpu.memory_space<vmem>>, vector<4x1400xf32>
    tpu.vector_store %arg8[%c68, %c0_57], %52 {strides = array<i32>} : memref<100x1400xf32, #tpu.memory_space<vmem>>, vector<4x1400xf32>,
    %c0_58 = arith.constant 0 : index
    %c0_59 = arith.constant 0 : index
    %c123 = arith.constant 123 : index
    %54 = vector.load %arg1[%c0_58, %c0_59, %c123] : memref<1x4x1600xf32, #tpu.memory_space<vmem>>, vector<1x4x1400xf32>
    %55 = vector.shape_cast %54 : vector<1x4x1400xf32> to vector<4x1400xf32>
    %c72 = arith.constant 72 : index
    %c0_60 = arith.constant 0 : index
    %56 = vector.load %arg8[%c72, %c0_60] : memref<100x1400xf32, #tpu.memory_space<vmem>>, vector<4x1400xf32>
    tpu.vector_store %arg8[%c72, %c0_60], %55 {strides = array<i32>} : memref<100x1400xf32, #tpu.memory_space<vmem>>, vector<4x1400xf32>,
    %c0_61 = arith.constant 0 : index
    %c0_62 = arith.constant 0 : index
    %c124 = arith.constant 124 : index
    %57 = vector.load %arg1[%c0_61, %c0_62, %c124] : memref<1x4x1600xf32, #tpu.memory_space<vmem>>, vector<1x4x1400xf32>
    %58 = vector.shape_cast %57 : vector<1x4x1400xf32> to vector<4x1400xf32>
    %c76 = arith.constant 76 : index
    %c0_63 = arith.constant 0 : index
    %59 = vector.load %arg8[%c76, %c0_63] : memref<100x1400xf32, #tpu.memory_space<vmem>>, vector<4x1400xf32>
    tpu.vector_store %arg8[%c76, %c0_63], %58 {strides = array<i32>} : memref<100x1400xf32, #tpu.memory_space<vmem>>, vector<4x1400xf32>,
    %c0_64 = arith.constant 0 : index
    %c0_65 = arith.constant 0 : index
    %c160 = arith.constant 160 : index
    %60 = vector.load %arg1[%c0_64, %c0_65, %c160] : memref<1x4x1600xf32, #tpu.memory_space<vmem>>, vector<1x4x1400xf32>
    %61 = vector.shape_cast %60 : vector<1x4x1400xf32> to vector<4x1400xf32>
    %c80_66 = arith.constant 80 : index
    %c0_67 = arith.constant 0 : index
    %62 = vector.load %arg8[%c80_66, %c0_67] : memref<100x1400xf32, #tpu.memory_space<vmem>>, vector<4x1400xf32>
    tpu.vector_store %arg8[%c80_66, %c0_67], %61 {strides = array<i32>} : memref<100x1400xf32, #tpu.memory_space<vmem>>, vector<4x1400xf32>,
    %c0_68 = arith.constant 0 : index
    %c0_69 = arith.constant 0 : index
    %c161 = arith.constant 161 : index
    %63 = vector.load %arg1[%c0_68, %c0_69, %c161] : memref<1x4x1600xf32, #tpu.memory_space<vmem>>, vector<1x4x1400xf32>
    %64 = vector.shape_cast %63 : vector<1x4x1400xf32> to vector<4x1400xf32>
    %c84_70 = arith.constant 84 : index
    %c0_71 = arith.constant 0 : index
    %65 = vector.load %arg8[%c84_70, %c0_71] : memref<100x1400xf32, #tpu.memory_space<vmem>>, vector<4x1400xf32>
    tpu.vector_store %arg8[%c84_70, %c0_71], %64 {strides = array<i32>} : memref<100x1400xf32, #tpu.memory_space<vmem>>, vector<4x1400xf32>,
    %c0_72 = arith.constant 0 : index
    %c0_73 = arith.constant 0 : index
    %c162 = arith.constant 162 : index
    %66 = vector.load %arg1[%c0_72, %c0_73, %c162] : memref<1x4x1600xf32, #tpu.memory_space<vmem>>, vector<1x4x1400xf32>
    %67 = vector.shape_cast %66 : vector<1x4x1400xf32> to vector<4x1400xf32>
    %c88 = arith.constant 88 : index
    %c0_74 = arith.constant 0 : index
    %68 = vector.load %arg8[%c88, %c0_74] : memref<100x1400xf32, #tpu.memory_space<vmem>>, vector<4x1400xf32>
    tpu.vector_store %arg8[%c88, %c0_74], %67 {strides = array<i32>} : memref<100x1400xf32, #tpu.memory_space<vmem>>, vector<4x1400xf32>,
    %c0_75 = arith.constant 0 : index
    %c0_76 = arith.constant 0 : index
    %c163 = arith.constant 163 : index
    %69 = vector.load %arg1[%c0_75, %c0_76, %c163] : memref<1x4x1600xf32, #tpu.memory_space<vmem>>, vector<1x4x1400xf32>
    %70 = vector.shape_cast %69 : vector<1x4x1400xf32> to vector<4x1400xf32>
    %c92 = arith.constant 92 : index
    %c0_77 = arith.constant 0 : index
    %71 = vector.load %arg8[%c92, %c0_77] : memref<100x1400xf32, #tpu.memory_space<vmem>>, vector<4x1400xf32>
    tpu.vector_store %arg8[%c92, %c0_77], %70 {strides = array<i32>} : memref<100x1400xf32, #tpu.memory_space<vmem>>, vector<4x1400xf32>,
    %c0_78 = arith.constant 0 : index
    %c0_79 = arith.constant 0 : index
    %c164 = arith.constant 164 : index
    %72 = vector.load %arg1[%c0_78, %c0_79, %c164] : memref<1x4x1600xf32, #tpu.memory_space<vmem>>, vector<1x4x1400xf32>
    %73 = vector.shape_cast %72 : vector<1x4x1400xf32> to vector<4x1400xf32>
    %c96 = arith.constant 96 : index
    %c0_80 = arith.constant 0 : index
    %74 = vector.load %arg8[%c96, %c0_80] : memref<100x1400xf32, #tpu.memory_space<vmem>>, vector<4x1400xf32>
    tpu.vector_store %arg8[%c96, %c0_80], %73 {strides = array<i32>} : memref<100x1400xf32, #tpu.memory_space<vmem>>, vector<4x1400xf32>,
    %c0_81 = arith.constant 0 : index
    %c0_82 = arith.constant 0 : index
    %75 = vector.load %arg2[%c0_81, %c0_82] : memref<4x100xf32, #tpu.memory_space<vmem>>, vector<4x100xf32>
    %c0_83 = arith.constant 0 : index
    %c0_84 = arith.constant 0 : index
    %76 = vector.load %arg8[%c0_83, %c0_84] : memref<100x1400xf32, #tpu.memory_space<vmem>>, vector<100x1400xf32>
    %cst = arith.constant dense<0.000000e+00> : vector<4x1400xf32>
    %77 = tpu.matmul %75, %76, %cst {dimension_numbers = #tpu.dot_dimension_numbers<[1], [0], [0], [1], [0, 0, 1, 1], [], []>} : vector<4x100xf32>, vector<100x1400xf32>, vector<4x1400xf32> -> vector<4x1400xf32>
    %c0_85 = arith.constant 0 : index
    %c0_86 = arith.constant 0 : index
    %78 = vector.load %arg3[%c0_85, %c0_86] : memref<4x1xf32, #tpu.memory_space<vmem>>, vector<4x1xf32>
    %79 = vector.broadcast %78 : vector<4x1xf32> to vector<4x1400xf32>
    %80 = arith.addf %77, %79 : vector<4x1400xf32>
    %c0_87 = arith.constant 0 : index
    %c0_88 = arith.constant 0 : index
    %81 = vector.load %arg4[%c0_87, %c0_88] : memref<1x1400xf32, #tpu.memory_space<vmem>>, vector<1x1400xf32>
    %82 = vector.broadcast %81 : vector<1x1400xf32> to vector<4x1400xf32>
    %83 = arith.mulf %80, %82 : vector<4x1400xf32>
    %c0_89 = arith.constant 0 : index
    %c0_90 = arith.constant 0 : index
    %84 = vector.load %arg9[%c0_89, %c0_90] : memref<4x1400xf32, #tpu.memory_space<vmem>>, vector<4x1400xf32>
    tpu.vector_store %arg9[%c0_89, %c0_90], %83 {strides = array<i32>} : memref<4x1400xf32, #tpu.memory_space<vmem>>, vector<4x1400xf32>,
    %c0_91 = arith.constant 0 : index
    %c0_92 = arith.constant 0 : index
    %85 = vector.load %arg9[%c0_91, %c0_92] : memref<4x1400xf32, #tpu.memory_space<vmem>>, vector<4x1280xf32>
    %c0_93 = arith.constant 0 : index
    %c0_94 = arith.constant 0 : index
    %86 = vector.load %arg10[%c0_93, %c0_94] : memref<36x1280xf32, #tpu.memory_space<vmem>>, vector<4x1280xf32>
    tpu.vector_store %arg10[%c0_93, %c0_94], %85 {strides = array<i32>} : memref<36x1280xf32, #tpu.memory_space<vmem>>, vector<4x1280xf32>,
    %c0_95 = arith.constant 0 : index
    %c1_96 = arith.constant 1 : index
    %87 = vector.load %arg9[%c0_95, %c1_96] : memref<4x1400xf32, #tpu.memory_space<vmem>>, vector<4x1280xf32>
    %c4_97 = arith.constant 4 : index
    %c0_98 = arith.constant 0 : index
    %88 = vector.load %arg10[%c4_97, %c0_98] : memref<36x1280xf32, #tpu.memory_space<vmem>>, vector<4x1280xf32>
    tpu.vector_store %arg10[%c4_97, %c0_98], %87 {strides = array<i32>} : memref<36x1280xf32, #tpu.memory_space<vmem>>, vector<4x1280xf32>,
    %c0_99 = arith.constant 0 : index
    %c2_100 = arith.constant 2 : index
    %89 = vector.load %arg9[%c0_99, %c2_100] : memref<4x1400xf32, #tpu.memory_space<vmem>>, vector<4x1280xf32>
    %c8_101 = arith.constant 8 : index
    %c0_102 = arith.constant 0 : index
    %90 = vector.load %arg10[%c8_101, %c0_102] : memref<36x1280xf32, #tpu.memory_space<vmem>>, vector<4x1280xf32>
    tpu.vector_store %arg10[%c8_101, %c0_102], %89 {strides = array<i32>} : memref<36x1280xf32, #tpu.memory_space<vmem>>, vector<4x1280xf32>,
    %c0_103 = arith.constant 0 : index
    %c40_104 = arith.constant 40 : index
    %91 = vector.load %arg9[%c0_103, %c40_104] : memref<4x1400xf32, #tpu.memory_space<vmem>>, vector<4x1280xf32>
    %c12_105 = arith.constant 12 : index
    %c0_106 = arith.constant 0 : index
    %92 = vector.load %arg10[%c12_105, %c0_106] : memref<36x1280xf32, #tpu.memory_space<vmem>>, vector<4x1280xf32>
    tpu.vector_store %arg10[%c12_105, %c0_106], %91 {strides = array<i32>} : memref<36x1280xf32, #tpu.memory_space<vmem>>, vector<4x1280xf32>,
    %c0_107 = arith.constant 0 : index
    %c41_108 = arith.constant 41 : index
    %93 = vector.load %arg9[%c0_107, %c41_108] : memref<4x1400xf32, #tpu.memory_space<vmem>>, vector<4x1280xf32>
    %c16_109 = arith.constant 16 : index
    %c0_110 = arith.constant 0 : index
    %94 = vector.load %arg10[%c16_109, %c0_110] : memref<36x1280xf32, #tpu.memory_space<vmem>>, vector<4x1280xf32>
    tpu.vector_store %arg10[%c16_109, %c0_110], %93 {strides = array<i32>} : memref<36x1280xf32, #tpu.memory_space<vmem>>, vector<4x1280xf32>,
    %c0_111 = arith.constant 0 : index
    %c42_112 = arith.constant 42 : index
    %95 = vector.load %arg9[%c0_111, %c42_112] : memref<4x1400xf32, #tpu.memory_space<vmem>>, vector<4x1280xf32>
    %c20_113 = arith.constant 20 : index
    %c0_114 = arith.constant 0 : index
    %96 = vector.load %arg10[%c20_113, %c0_114] : memref<36x1280xf32, #tpu.memory_space<vmem>>, vector<4x1280xf32>
    tpu.vector_store %arg10[%c20_113, %c0_114], %95 {strides = array<i32>} : memref<36x1280xf32, #tpu.memory_space<vmem>>, vector<4x1280xf32>,
    %c0_115 = arith.constant 0 : index
    %c80_116 = arith.constant 80 : index
    %97 = vector.load %arg9[%c0_115, %c80_116] : memref<4x1400xf32, #tpu.memory_space<vmem>>, vector<4x1280xf32>
    %c24_117 = arith.constant 24 : index
    %c0_118 = arith.constant 0 : index
    %98 = vector.load %arg10[%c24_117, %c0_118] : memref<36x1280xf32, #tpu.memory_space<vmem>>, vector<4x1280xf32>
    tpu.vector_store %arg10[%c24_117, %c0_118], %97 {strides = array<i32>} : memref<36x1280xf32, #tpu.memory_space<vmem>>, vector<4x1280xf32>,
    %c0_119 = arith.constant 0 : index
    %c81_120 = arith.constant 81 : index
    %99 = vector.load %arg9[%c0_119, %c81_120] : memref<4x1400xf32, #tpu.memory_space<vmem>>, vector<4x1280xf32>
    %c28_121 = arith.constant 28 : index
    %c0_122 = arith.constant 0 : index
    %100 = vector.load %arg10[%c28_121, %c0_122] : memref<36x1280xf32, #tpu.memory_space<vmem>>, vector<4x1280xf32>
    tpu.vector_store %arg10[%c28_121, %c0_122], %99 {strides = array<i32>} : memref<36x1280xf32, #tpu.memory_space<vmem>>, vector<4x1280xf32>,
    %c0_123 = arith.constant 0 : index
    %c82_124 = arith.constant 82 : index
    %101 = vector.load %arg9[%c0_123, %c82_124] : memref<4x1400xf32, #tpu.memory_space<vmem>>, vector<4x1280xf32>
    %c32_125 = arith.constant 32 : index
    %c0_126 = arith.constant 0 : index
    %102 = vector.load %arg10[%c32_125, %c0_126] : memref<36x1280xf32, #tpu.memory_space<vmem>>, vector<4x1280xf32>
    tpu.vector_store %arg10[%c32_125, %c0_126], %101 {strides = array<i32>} : memref<36x1280xf32, #tpu.memory_space<vmem>>, vector<4x1280xf32>,
    %c0_127 = arith.constant 0 : index
    %c0_128 = arith.constant 0 : index
    %103 = vector.load %arg5[%c0_127, %c0_128] : memref<4x36xf32, #tpu.memory_space<vmem>>, vector<4x36xf32>
    %c0_129 = arith.constant 0 : index
    %c0_130 = arith.constant 0 : index
    %104 = vector.load %arg10[%c0_129, %c0_130] : memref<36x1280xf32, #tpu.memory_space<vmem>>, vector<36x1280xf32>
    %cst_131 = arith.constant dense<0.000000e+00> : vector<4x1280xf32>
    %105 = tpu.matmul %103, %104, %cst_131 {dimension_numbers = #tpu.dot_dimension_numbers<[1], [0], [0], [1], [0, 0, 1, 1], [], []>} : vector<4x36xf32>, vector<36x1280xf32>, vector<4x1280xf32> -> vector<4x1280xf32>
    %c0_132 = arith.constant 0 : index
    %c0_133 = arith.constant 0 : index
    %106 = vector.load %arg6[%c0_132, %c0_133] : memref<4x1xf32, #tpu.memory_space<vmem>>, vector<4x1xf32>
    %107 = vector.broadcast %106 : vector<4x1xf32> to vector<4x1280xf32>
    %108 = arith.addf %105, %107 : vector<4x1280xf32>
    %c0_134 = arith.constant 0 : index
    %c0_135 = arith.constant 0 : index
    %c0_136 = arith.constant 0 : index
    %109 = vector.load %arg7[%c0_134, %c0_135, %c0_136] : memref<1x4x1280xf32, #tpu.memory_space<vmem>>, vector<1x4x1280xf32>
    %110 = vector.shape_cast %109 : vector<1x4x1280xf32> to vector<4x1280xf32>
    %111 = vector.shape_cast %108 : vector<4x1280xf32> to vector<1x4x1280xf32>
    tpu.vector_store %arg7[%c0_134, %c0_135, %c0_136], %111 {strides = array<i32>} : memref<1x4x1280xf32, #tpu.memory_space<vmem>>, vector<1x4x1280xf32>,
    return
  }
  func.func @transform_0(%arg0: i32) -> (i32, i32, i32) {
    %c0_i32 = arith.constant 0 : i32
    %c0_i32_0 = arith.constant 0 : i32
    %c0_i32_1 = arith.constant 0 : i32
    return %arg0, %c0_i32, %c0_i32_0 : i32, i32, i32
  }
  func.func @transform_1(%arg0: i32) -> (i32, i32) {
    %c0_i32 = arith.constant 0 : i32
    %c0_i32_0 = arith.constant 0 : i32
    %c0_i32_1 = arith.constant 0 : i32
    return %c0_i32, %c0_i32_0 : i32, i32
  }
  func.func @transform_2(%arg0: i32) -> (i32, i32) {
    %c0_i32 = arith.constant 0 : i32
    %c0_i32_0 = arith.constant 0 : i32
    %c0_i32_1 = arith.constant 0 : i32
    return %c0_i32, %c0_i32_0 : i32, i32
  }
  func.func @transform_3(%arg0: i32) -> (i32, i32) {
    %c0_i32 = arith.constant 0 : i32
    %c0_i32_0 = arith.constant 0 : i32
    %c0_i32_1 = arith.constant 0 : i32
    return %c0_i32, %c0_i32_0 : i32, i32
  }
  func.func @transform_4(%arg0: i32) -> (i32, i32) {
    %c0_i32 = arith.constant 0 : i32
    %c0_i32_0 = arith.constant 0 : i32
    %c0_i32_1 = arith.constant 0 : i32
    return %c0_i32, %c0_i32_0 : i32, i32
  }
  func.func @transform_5(%arg0: i32) -> (i32, i32) {
    %c0_i32 = arith.constant 0 : i32
    %c0_i32_0 = arith.constant 0 : i32
    %c0_i32_1 = arith.constant 0 : i32
    return %c0_i32, %c0_i32_0 : i32, i32
  }
  func.func @transform_6(%arg0: i32) -> (i32, i32, i32) {
    %c0_i32 = arith.constant 0 : i32
    %c0_i32_0 = arith.constant 0 : i32
    %c0_i32_1 = arith.constant 0 : i32
    return %arg0, %c0_i32, %c0_i32_0 : i32, i32, i32
  }
}

</mosaic_0001>

<llo_original>
// kernel: tpu_custom_call.1
$region0: #{tpu_custom_call.1}
  #allocation0 [shape = 'u32[]', space=smem, size = 0x4, offset = 0x4, fixed_abs, tag = 'smem constant byte address 0x4 - core index']
  #allocation1 [shape = 'u32[144,128]{1,0:T(1,128)}', space=vmem, size = 0x12000, scoped, tag = 'internal scratch']
  #allocation2 [shape = 'f32[100,1400]{1,0:T(8,128)}', space=vmem, size = 0x8f000, scoped, tag = 'scratch operand']
  #allocation3 [shape = 'f32[4,1400]{1,0:T(4,128)}', space=vmem, size = 0x5800, scoped, tag = 'scratch operand']
  #allocation4 [shape = 'f32[36,1280]{1,0:T(8,128)}', space=vmem, size = 0x32000, scoped, tag = 'scratch operand']
  %s0 = inlined_call_operand.hbm [shape: f32[2,4,1600], index: 0, kind: input, shape index: {}]
  %s1 = inlined_call_operand.vmem [shape: f32[4,100], index: 1, kind: input, shape index: {}]
  %s2 = inlined_call_operand.vmem [shape: f32[4,1], index: 2, kind: input, shape index: {}]
  %s3 = inlined_call_operand.vmem [shape: f32[1,1400], index: 3, kind: input, shape index: {}]
  %s4 = inlined_call_operand.vmem [shape: f32[4,36], index: 4, kind: input, shape index: {}]
  %s5 = inlined_call_operand.vmem [shape: f32[4,1], index: 5, kind: input, shape index: {}]
  %s6 = inlined_call_operand.hbm [shape: f32[2,4,1280], index: 6, kind: output, shape index: {}]
  %s7 = sld [smem:[#allocation0]]
  $region61: #{tpu_custom_call.1} parent=0
    _
  %s9 = ssub.s32 1, %s7
  %s10 = scalar_select 0, %s9, %s7
  $region1: #{tpu_custom_call.1} parent=0
    #allocation5 [shape = 'u8[53248]{0}', space=vmem, size = 0xd000, scoped, tag = 'input window, operand 0']
    #allocation6 [shape = 's32[2]{0}', space=sflag, size = 0x8, scoped, tag = 'scoped memory for tpu_custom_call.1']
    #allocation7 [shape = 's32[2]{0}', space=sflag, size = 0x8, scoped, tag = 'scoped memory for tpu_custom_call.1']
    #allocation8 [shape = 'u8[40960]{0}', space=vmem, size = 0xa000, scoped, tag = 'output window, operand 0']
    %11 = vsyncpa [#allocation6], 0
    %s12 = scalar_lea.sflag [#allocation6], 1
    %13 = vsyncpa %s12, 0
    %14 = vsyncpa [#allocation7], 0
    %s15 = scalar_lea.sflag [#allocation7], 1
    %16 = vsyncpa %s15, 0
    loop: start=0, step=1, limit=4
    $region2: #{tpu_custom_call.1} parent=1 // loop_pre_header
      _
    $region3: #{tpu_custom_call.1} parent=1 // loop_header
      %s18 = sphi 0, %s22
      %p19 = scmp.ge.s32.totalorder %s18, 4
      %s28 = sphi 0, %s30
      %s31 = sphi 0, %s28
      %s32 = sphi 0, %s31
      %s48 = sphi 0, %s32
      %s52 = sphi 0, %s52
      %s54 = sphi 0, %s52
      %s55 = sphi 0, %s54
      %s69 = sphi 0, %s55
      %s73 = sphi 0, %s73
      %s75 = sphi 0, %s73
      %s76 = sphi 0, %s75
      %s90 = sphi 0, %s76
      %s94 = sphi 0, %s94
      %s96 = sphi 0, %s94
      %s97 = sphi 0, %s96
      %s111 = sphi 0, %s97
      %s115 = sphi 0, %s115
      %s117 = sphi 0, %s115
      %s118 = sphi 0, %s117
      %s132 = sphi 0, %s118
      %s136 = sphi 0, %s136
      %s138 = sphi 0, %s136
      %s139 = sphi 0, %s138
      %s153 = sphi 0, %s139
      %s159 = sphi 0, %s161
      %s162 = sphi 0, %s159
      %s163 = sphi 0, %s162
      %s179 = sphi 0, %s163
    $region4: #{tpu_custom_call.1} parent=1 // loop_header_branch
      %21 = sbr.rel (%p19) target = $region8
    $region5: #{tpu_custom_call.1} parent=1 // loop_body
      %s23 = ssub.s32 %s18, 1
      %s24 = ssub.s32 %s18, 2
      %s25 = sadd.s32 %s18, 1
      %s26 = ssub.s32 %s18, %s25
      %p27 = scmp.eq.s32.totalorder %s26, 0
      %s29 = sadd.s32 %s28, 1
      %s30 = scalar_select %p27, %s28, %s29
      %p33 = pneg %p27
      %p34 = scmp.eq.s32.totalorder %s18, 1
      %p35 = por %p33, %p34
      %p36 = scmp.ne.s32.totalorder %s28, %s31
      %p37 = scmp.eq.s32.totalorder %s18, 0
      %p38 = por %p36, %p37
      %p39 = scmp.ne.s32.totalorder %s28, %s31
      %p40 = scmp.eq.s32.totalorder %s23, 1
      %p41 = por %p39, %p40
      %p42 = scmp.ne.s32.totalorder %s31, %s32
      %p43 = scmp.eq.s32.totalorder %s23, 0
      %p44 = por %p42, %p43
      %p45 = scmp.ne.s32.totalorder %s31, %s32
      %p46 = scmp.eq.s32.totalorder %s24, 1
      %p47 = por %p45, %p46
      %p49 = scmp.ne.s32.totalorder %s32, %s48
      %p50 = scmp.eq.s32.totalorder %s24, 0
      %p51 = por %p49, %p50
      %s53 = sadd.s32 %s52, 1
      %p56 = scmp.eq.s32.totalorder %s18, 1
      %p57 = scmp.ne.s32.totalorder %s52, %s54
      %p58 = scmp.eq.s32.totalorder %s18, 0
      %p59 = por %p57, %p58
      %p60 = scmp.ne.s32.totalorder %s52, %s54
      %p61 = scmp.eq.s32.totalorder %s23, 1
      %p62 = por %p60, %p61
      %p63 = scmp.ne.s32.totalorder %s54, %s55
      %p64 = scmp.eq.s32.totalorder %s23, 0
      %p65 = por %p63, %p64
      %p66 = scmp.ne.s32.totalorder %s54, %s55
      %p67 = scmp.eq.s32.totalorder %s24, 1
      %p68 = por %p66, %p67
      %p70 = scmp.ne.s32.totalorder %s55, %s69
      %p71 = scmp.eq.s32.totalorder %s24, 0
      %p72 = por %p70, %p71
      %s74 = sadd.s32 %s73, 1
      %p77 = scmp.eq.s32.totalorder %s18, 1
      %p78 = scmp.ne.s32.totalorder %s73, %s75
      %p79 = scmp.eq.s32.totalorder %s18, 0
      %p80 = por %p78, %p79
      %p81 = scmp.ne.s32.totalorder %s73, %s75
      %p82 = scmp.eq.s32.totalorder %s23, 1
      %p83 = por %p81, %p82
      %p84 = scmp.ne.s32.totalorder %s75, %s76
      %p85 = scmp.eq.s32.totalorder %s23, 0
      %p86 = por %p84, %p85
      %p87 = scmp.ne.s32.totalorder %s75, %s76
      %p88 = scmp.eq.s32.totalorder %s24, 1
      %p89 = por %p87, %p88
      %p91 = scmp.ne.s32.totalorder %s76, %s90
      %p92 = scmp.eq.s32.totalorder %s24, 0
      %p93 = por %p91, %p92
      %s95 = sadd.s32 %s94, 1
      %p98 = scmp.eq.s32.totalorder %s18, 1
      %p99 = scmp.ne.s32.totalorder %s94, %s96
      %p100 = scmp.eq.s32.totalorder %s18, 0
      %p101 = por %p99, %p100
      %p102 = scmp.ne.s32.totalorder %s94, %s96
      %p103 = scmp.eq.s32.totalorder %s23, 1
      %p104 = por %p102, %p103
      %p105 = scmp.ne.s32.totalorder %s96, %s97
      %p106 = scmp.eq.s32.totalorder %s23, 0
      %p107 = por %p105, %p106
      %p108 = scmp.ne.s32.totalorder %s96, %s97
      %p109 = scmp.eq.s32.totalorder %s24, 1
      %p110 = por %p108, %p109
      %p112 = scmp.ne.s32.totalorder %s97, %s111
      %p113 = scmp.eq.s32.totalorder %s24, 0
      %p114 = por %p112, %p113
      %s116 = sadd.s32 %s115, 1
      %p119 = scmp.eq.s32.totalorder %s18, 1
      %p120 = scmp.ne.s32.totalorder %s115, %s117
      %p121 = scmp.eq.s32.totalorder %s18, 0
      %p122 = por %p120, %p121
      %p123 = scmp.ne.s32.totalorder %s115, %s117
      %p124 = scmp.eq.s32.totalorder %s23, 1
      %p125 = por %p123, %p124
      %p126 = scmp.ne.s32.totalorder %s117, %s118
      %p127 = scmp.eq.s32.totalorder %s23, 0
      %p128 = por %p126, %p127
      %p129 = scmp.ne.s32.totalorder %s117, %s118
      %p130 = scmp.eq.s32.totalorder %s24, 1
      %p131 = por %p129, %p130
      %p133 = scmp.ne.s32.totalorder %s118, %s132
      %p134 = scmp.eq.s32.totalorder %s24, 0
      %p135 = por %p133, %p134
      %s137 = sadd.s32 %s136, 1
      %p140 = scmp.eq.s32.totalorder %s18, 1
      %p141 = scmp.ne.s32.totalorder %s136, %s138
      %p142 = scmp.eq.s32.totalorder %s18, 0
      %p143 = por %p141, %p142
      %p144 = scmp.ne.s32.totalorder %s136, %s138
      %p145 = scmp.eq.s32.totalorder %s23, 1
      %p146 = por %p144, %p145
      %p147 = scmp.ne.s32.totalorder %s138, %s139
      %p148 = scmp.eq.s32.totalorder %s23, 0
      %p149 = por %p147, %p148
      %p150 = scmp.ne.s32.totalorder %s138, %s139
      %p151 = scmp.eq.s32.totalorder %s24, 1
      %p152 = por %p150, %p151
      %p154 = scmp.ne.s32.totalorder %s139, %s153
      %p155 = scmp.eq.s32.totalorder %s24, 0
      %p156 = por %p154, %p155
      %s157 = ssub.s32 %s18, %s25
      %p158 = scmp.eq.s32.totalorder %s157, 0
      %s160 = sadd.s32 %s159, 1
      %s161 = scalar_select %p158, %s159, %s160
      %p164 = pneg %p158
      %p165 = scmp.eq.s32.totalorder %s18, 1
      %p166 = por %p164, %p165
      %p167 = scmp.ne.s32.totalorder %s159, %s162
      %p168 = scmp.eq.s32.totalorder %s18, 0
      %p169 = por %p167, %p168
      %p170 = scmp.ne.s32.totalorder %s159, %s162
      %p171 = scmp.eq.s32.totalorder %s23, 1
      %p172 = por %p170, %p171
      %p173 = scmp.ne.s32.totalorder %s162, %s163
      %p174 = scmp.eq.s32.totalorder %s23, 0
      %p175 = por %p173, %p174
      %p176 = scmp.ne.s32.totalorder %s162, %s163
      %p177 = scmp.eq.s32.totalorder %s24, 1
      %p178 = por %p176, %p177
      %p180 = scmp.ne.s32.totalorder %s163, %s179
      %p181 = scmp.eq.s32.totalorder %s24, 0
      %p182 = por %p180, %p181
      %p183 = scmp.le.s32.totalorder 1, %s18
      %p184 = scmp.lt.s32.totalorder %s18, 3
      %p185 = pnand %p183, %p184
      %p186 = pneg %p185
      // Predicated region
      $region9: #{tpu_custom_call.1} parent=5 // pred_check
        _
      $region10: #{tpu_custom_call.1} parent=5 // pred_check_branch
        %188 = sbr.rel (%p185) target = $region12
      $region11: #{tpu_custom_call.1} parent=5 // pred_region
        %s189 = ssub.s32 %s18, 1
        // Predicated region
        $region13: #{tpu_custom_call.1} parent=11 // pred_check
          %p190 = pneg %p65
        $region14: #{tpu_custom_call.1} parent=11 // pred_check_branch
          %192 = sbr.rel (%p190) target = $region16
        $region15: #{tpu_custom_call.1} parent=11 // pred_region
          _
        $region16: #{tpu_custom_call.1} parent=11 // pred_fallthru
          _
        // Predicated region
        $region17: #{tpu_custom_call.1} parent=11 // pred_check
          %p193 = pneg %p86
        $region18: #{tpu_custom_call.1} parent=11 // pred_check_branch
          %195 = sbr.rel (%p193) target = $region20
        $region19: #{tpu_custom_call.1} parent=11 // pred_region
          _
        $region20: #{tpu_custom_call.1} parent=11 // pred_fallthru
          _
        // Predicated region
        $region21: #{tpu_custom_call.1} parent=11 // pred_check
          %p196 = pneg %p107
        $region22: #{tpu_custom_call.1} parent=11 // pred_check_branch
          %198 = sbr.rel (%p196) target = $region24
        $region23: #{tpu_custom_call.1} parent=11 // pred_region
          _
        $region24: #{tpu_custom_call.1} parent=11 // pred_fallthru
          _
        // Predicated region
        $region25: #{tpu_custom_call.1} parent=11 // pred_check
          %p199 = pneg %p128
        $region26: #{tpu_custom_call.1} parent=11 // pred_check_branch
          %201 = sbr.rel (%p199) target = $region28
        $region27: #{tpu_custom_call.1} parent=11 // pred_region
          _
        $region28: #{tpu_custom_call.1} parent=11 // pred_fallthru
          _
        // Predicated region
        $region29: #{tpu_custom_call.1} parent=11 // pred_check
          %p202 = pneg %p149
        $region30: #{tpu_custom_call.1} parent=11 // pred_check_branch
          %204 = sbr.rel (%p202) target = $region32
        $region31: #{tpu_custom_call.1} parent=11 // pred_region
          _
        $region32: #{tpu_custom_call.1} parent=11 // pred_fallthru
          _
      $region12: #{tpu_custom_call.1} parent=5 // pred_fallthru
        _
      %p205 = scmp.lt.s32.totalorder %s18, 2
      // Predicated region
      $region33: #{tpu_custom_call.1} parent=5 // pred_check
        %p206 = pneg %p205
      $region34: #{tpu_custom_call.1} parent=5 // pred_check_branch
        %208 = sbr.rel (%p206) target = $region36
      $region35: #{tpu_custom_call.1} parent=5 // pred_region
        // Predicated region
        $region37: #{tpu_custom_call.1} parent=35 // pred_check
          %p209 = pneg %p38
        $region38: #{tpu_custom_call.1} parent=35 // pred_check_branch
          %211 = sbr.rel (%p209) target = $region40
        $region39: #{tpu_custom_call.1} parent=35 // pred_region
          %s212 = sand.u32 %s28, 1
          %s213 = scalar_lea.sflag [#allocation6], %s212
          %s214 = sand.u32 %s28, 1
          %s215 = smul.addr %s214, 52
          %s216 = scalar_lea.vmem [#allocation5], %s215
          %s218 = ssub.s32 832, 832
          %219 = vsyncadd %s213, %s218
          %s220 = smul.addr %s18, 13
          %s221 = smul.addr %s220, 64
          %s222 = scalar_lea.hbm %s0, %s221
          %s224 = sshll.u32 %s216, 4
          %s225 = int_to_ptr.vmem [resolvable:$true] %s224
          %227 = dma.hbm_to_vmem [thread:$0]  %s222, 832, %s225, %s213
        $region40: #{tpu_custom_call.1} parent=35 // pred_fallthru
          _
      $region36: #{tpu_custom_call.1} parent=5 // pred_fallthru
        _
      %p228 = scmp.le.s32.totalorder 1, %s18
      %p229 = scmp.lt.s32.totalorder %s18, 3
      %p230 = pnand %p228, %p229
      %p231 = pneg %p230
      // Predicated region
      $region41: #{tpu_custom_call.1} parent=5 // pred_check
        _
      $region42: #{tpu_custom_call.1} parent=5 // pred_check_branch
        %233 = sbr.rel (%p230) target = $region44
      $region43: #{tpu_custom_call.1} parent=5 // pred_region
        %s234 = ssub.s32 %s18, 1
        %s235 = sand.u32 %s31, 1
        %s236 = scalar_lea.sflag [#allocation6], %s235
        %s237 = sand.u32 %s31, 1
        %s238 = smul.addr %s237, 52
        %s239 = scalar_lea.vmem [#allocation5], %s238
        // Predicated region
        $region45: #{tpu_custom_call.1} parent=43 // pred_check
          %p240 = pneg %p44
        $region46: #{tpu_custom_call.1} parent=43 // pred_check_branch
          %242 = sbr.rel (%p240) target = $region48
        $region47: #{tpu_custom_call.1} parent=43 // pred_region
          %243 = dma.done %s236, 832
        $region48: #{tpu_custom_call.1} parent=43 // pred_fallthru
          _
        %s244 = sand.u32 %s31, 1
        %s245 = scalar_lea.sflag [#allocation6], %s244
        %s246 = sand.u32 %s31, 1
        %s247 = smul.addr %s246, 52
        %s248 = scalar_lea.vmem [#allocation5], %s247
        %p249 = pneg %p44
        %p250 = pneg %p41
        %p251 = pneg %p65
        %p252 = pneg %p62
        %p253 = pneg %p86
        %p254 = pneg %p83
        %p255 = pneg %p107
        %p256 = pneg %p104
        %p257 = pneg %p128
        %p258 = pneg %p125
        %p259 = pneg %p149
        %p260 = pneg %p146
        %p261 = pneg %p175
        %p262 = pneg %p172
        %s263 = sand.u32 %s162, 1
        %s264 = scalar_lea.sflag [#allocation7], %s263
        %s265 = sand.u32 %s162, 1
        %s266 = smul.addr %s265, 40
        %s267 = scalar_lea.vmem [#allocation8], %s266
        %v268 = vld [vmem:[%s239] sm:$0xff]
        %v269 = vld [vmem:[%s239 + $0x8] sm:$0xff]
        %v270 = vld [vmem:[%s239 + $0x10] sm:$0xff]
        %v271 = vld [vmem:[%s239 + $0x18] sm:$0xff]
        %v272 = vld [vmem:[%s239 + $0x20] sm:$0xff]
        %v273 = vld [vmem:[%s239 + $0x28] sm:$0xf]
        %v279 = vcombine.high %v268, %v268
        %v280 = vcombine.high %v269, %v269
        %v281 = vcombine.high %v270, %v270
        %v282 = vcombine.high %v271, %v271
        %v283 = vcombine.high %v272, %v272
        %289 = vst [vmem:[#allocation2] sm:$0xf] %v268
        %290 = vst [vmem:[#allocation2 + $0x8] sm:$0xf] %v279
        %291 = vst [vmem:[#allocation2 + $0x10] sm:$0xf] %v269
        %292 = vst [vmem:[#allocation2 + $0x18] sm:$0xf] %v280
        %293 = vst [vmem:[#allocation2 + $0x20] sm:$0xf] %v270
        %294 = vst [vmem:[#allocation2 + $0x28] sm:$0xf] %v281
        %295 = vst [vmem:[#allocation2 + $0x30] sm:$0xf] %v271
        %296 = vst [vmem:[#allocation2 + $0x38] sm:$0xf] %v282
        %297 = vst [vmem:[#allocation2 + $0x40] sm:$0xf] %v272
        %298 = vst [vmem:[#allocation2 + $0x48] sm:$0xf] %v283
        %vm299 = vcmask 977920
        %300 = vst.msk [vmem:[#allocation2 + $0x50] sm:$0xf] %vm299, %v273
        %v301 = vld [vmem:[%s239] sm:$0xff]
        %v302 = vld [vmem:[%s239 + $0x8] sm:$0xff]
        %v303 = vld [vmem:[%s239 + $0x10] sm:$0xff]
        %v304 = vld [vmem:[%s239 + $0x18] sm:$0xff]
        %v305 = vld [vmem:[%s239 + $0x20] sm:$0xff]
        %v306 = vld [vmem:[%s239 + $0x28] sm:$0xf]
        %v313 = vcombine.low %v301, %v301
        %v314 = vcombine.low %v302, %v302
        %v315 = vcombine.low %v303, %v303
        %v316 = vcombine.low %v304, %v304
        %v317 = vcombine.low %v305, %v305
        %v318 = vcombine.low %v306, %v306
        %319 = vrot.lane.b32.xlu0 %v313, 127
        %v320 = vpop.permute.xlu0 %319
        %321 = vrot.lane.b32.xlu0 %v301, 127
        %v322 = vpop.permute.xlu0 %321
        %323 = vrot.lane.b32.xlu0 %v314, 127
        %v324 = vpop.permute.xlu0 %323
        %325 = vrot.lane.b32.xlu0 %v302, 127
        %v326 = vpop.permute.xlu0 %325
        %327 = vrot.lane.b32.xlu0 %v315, 127
        %v328 = vpop.permute.xlu0 %327
        %329 = vrot.lane.b32.xlu0 %v303, 127
        %v330 = vpop.permute.xlu0 %329
        %331 = vrot.lane.b32.xlu0 %v316, 127
        %v332 = vpop.permute.xlu0 %331
        %333 = vrot.lane.b32.xlu0 %v304, 127
        %v334 = vpop.permute.xlu0 %333
        %335 = vrot.lane.b32.xlu0 %v317, 127
        %v336 = vpop.permute.xlu0 %335
        %337 = vrot.lane.b32.xlu0 %v305, 127
        %v338 = vpop.permute.xlu0 %337
        %339 = vrot.lane.b32.xlu0 %v318, 127
        %v340 = vpop.permute.xlu0 %339
        %vm341 = vcmask 1039360
        %v342 = vsel %vm341, %v320, %v322
        %v343 = vsel %vm341, %v322, %v324
        %v344 = vsel %vm341, %v324, %v326
        %v345 = vsel %vm341, %v326, %v328
        %v346 = vsel %vm341, %v328, %v330
        %v347 = vsel %vm341, %v330, %v332
        %v348 = vsel %vm341, %v332, %v334
        %v349 = vsel %vm341, %v334, %v336
        %v350 = vsel %vm341, %v336, %v338
        %v351 = vsel %vm341, %v338, %v340
        %363 = vst [vmem:[#allocation2] sm:$0xf0] %v342
        %364 = vst [vmem:[#allocation2 + $0x8] sm:$0xf0] %v343
        %365 = vst [vmem:[#allocation2 + $0x10] sm:$0xf0] %v344
        %366 = vst [vmem:[#allocation2 + $0x18] sm:$0xf0] %v345
        %367 = vst [vmem:[#allocation2 + $0x20] sm:$0xf0] %v346
        %368 = vst [vmem:[#allocation2 + $0x28] sm:$0xf0] %v347
        %369 = vst [vmem:[#allocation2 + $0x30] sm:$0xf0] %v348
        %370 = vst [vmem:[#allocation2 + $0x38] sm:$0xf0] %v349
        %371 = vst [vmem:[#allocation2 + $0x40] sm:$0xf0] %v350
        %372 = vst [vmem:[#allocation2 + $0x48] sm:$0xf0] %v351
        %vm373 = vcmask 982020
        %374 = vst.msk [vmem:[#allocation2 + $0x50] sm:$0xf0] %vm373, %v340
        %v375 = vld [vmem:[%s239] sm:$0xff]
        %v376 = vld [vmem:[%s239 + $0x8] sm:$0xff]
        %v377 = vld [vmem:[%s239 + $0x10] sm:$0xff]
        %v378 = vld [vmem:[%s239 + $0x18] sm:$0xff]
        %v379 = vld [vmem:[%s239 + $0x20] sm:$0xff]
        %v380 = vld [vmem:[%s239 + $0x28] sm:$0xf]
        %v387 = vcombine.high %v375, %v375
        %v388 = vcombine.high %v376, %v376
        %v389 = vcombine.high %v377, %v377
        %v390 = vcombine.high %v378, %v378
        %v391 = vcombine.high %v379, %v379
        %392 = vrot.lane.b32.xlu0 %v375, 126
        %v393 = vpop.permute.xlu0 %392
        %394 = vrot.lane.b32.xlu0 %v387, 126
        %v395 = vpop.permute.xlu0 %394
        %396 = vrot.lane.b32.xlu0 %v376, 126
        %v397 = vpop.permute.xlu0 %396
        %398 = vrot.lane.b32.xlu0 %v388, 126
        %v399 = vpop.permute.xlu0 %398
        %400 = vrot.lane.b32.xlu0 %v377, 126
        %v401 = vpop.permute.xlu0 %400
        %402 = vrot.lane.b32.xlu0 %v389, 126
        %v403 = vpop.permute.xlu0 %402
        %404 = vrot.lane.b32.xlu0 %v378, 126
        %v405 = vpop.permute.xlu0 %404
        %406 = vrot.lane.b32.xlu0 %v390, 126
        %v407 = vpop.permute.xlu0 %406
        %408 = vrot.lane.b32.xlu0 %v379, 126
        %v409 = vpop.permute.xlu0 %408
        %410 = vrot.lane.b32.xlu0 %v391, 126
        %v411 = vpop.permute.xlu0 %410
        %412 = vrot.lane.b32.xlu0 %v380, 126
        %v413 = vpop.permute.xlu0 %412
        %vm414 = vcmask 1031168
        %v415 = vsel %vm414, %v393, %v395
        %v416 = vsel %vm414, %v395, %v397
        %v417 = vsel %vm414, %v397, %v399
        %v418 = vsel %vm414, %v399, %v401
        %v419 = vsel %vm414, %v401, %v403
        %v420 = vsel %vm414, %v403, %v405
        %v421 = vsel %vm414, %v405, %v407
        %v422 = vsel %vm414, %v407, %v409
        %v423 = vsel %vm414, %v409, %v411
        %v424 = vsel %vm414, %v411, %v413
        %436 = vst [vmem:[#allocation2 + $0x58] sm:$0xf] %v415
        %437 = vst [vmem:[#allocation2 + $0x60] sm:$0xf] %v416
        %438 = vst [vmem:[#allocation2 + $0x68] sm:$0xf] %v417
        %439 = vst [vmem:[#allocation2 + $0x70] sm:$0xf] %v418
        %440 = vst [vmem:[#allocation2 + $0x78] sm:$0xf] %v419
        %441 = vst [vmem:[#allocation2 + $0x80] sm:$0xf] %v420
        %442 = vst [vmem:[#allocation2 + $0x88] sm:$0xf] %v421
        %443 = vst [vmem:[#allocation2 + $0x90] sm:$0xf] %v422
        %444 = vst [vmem:[#allocation2 + $0x98] sm:$0xf] %v423
        %445 = vst [vmem:[#allocation2 + $0xa0] sm:$0xf] %v424
        %446 = vst.msk [vmem:[#allocation2 + $0xa8] sm:$0xf] %vm299, %v413
        %v447 = vld [vmem:[%s239] sm:$0xff]
        %v448 = vld [vmem:[%s239 + $0x8] sm:$0xff]
        %v449 = vld [vmem:[%s239 + $0x10] sm:$0xff]
        %v450 = vld [vmem:[%s239 + $0x18] sm:$0xff]
        %v451 = vld [vmem:[%s239 + $0x20] sm:$0xff]
        %v452 = vld [vmem:[%s239 + $0x28] sm:$0xf]
        %v459 = vcombine.low %v447, %v447
        %v460 = vcombine.low %v448, %v448
        %v461 = vcombine.low %v449, %v449
        %v462 = vcombine.low %v450, %v450
        %v463 = vcombine.low %v451, %v451
        %v464 = vcombine.low %v452, %v452
        %465 = vrot.lane.b32.xlu0 %v459, 125
        %v466 = vpop.permute.xlu0 %465
        %467 = vrot.lane.b32.xlu0 %v447, 125
        %v468 = vpop.permute.xlu0 %467
        %469 = vrot.lane.b32.xlu0 %v460, 125
        %v470 = vpop.permute.xlu0 %469
        %471 = vrot.lane.b32.xlu0 %v448, 125
        %v472 = vpop.permute.xlu0 %471
        %473 = vrot.lane.b32.xlu0 %v461, 125
        %v474 = vpop.permute.xlu0 %473
        %475 = vrot.lane.b32.xlu0 %v449, 125
        %v476 = vpop.permute.xlu0 %475
        %477 = vrot.lane.b32.xlu0 %v462, 125
        %v478 = vpop.permute.xlu0 %477
        %479 = vrot.lane.b32.xlu0 %v450, 125
        %v480 = vpop.permute.xlu0 %479
        %481 = vrot.lane.b32.xlu0 %v463, 125
        %v482 = vpop.permute.xlu0 %481
        %483 = vrot.lane.b32.xlu0 %v451, 125
        %v484 = vpop.permute.xlu0 %483
        %485 = vrot.lane.b32.xlu0 %v464, 125
        %v486 = vpop.permute.xlu0 %485
        %vm487 = vcmask 1022976
        %v488 = vsel %vm487, %v466, %v468
        %v489 = vsel %vm487, %v468, %v470
        %v490 = vsel %vm487, %v470, %v472
        %v491 = vsel %vm487, %v472, %v474
        %v492 = vsel %vm487, %v474, %v476
        %v493 = vsel %vm487, %v476, %v478
        %v494 = vsel %vm487, %v478, %v480
        %v495 = vsel %vm487, %v480, %v482
        %v496 = vsel %vm487, %v482, %v484
        %v497 = vsel %vm487, %v484, %v486
        %509 = vst [vmem:[#allocation2 + $0x58] sm:$0xf0] %v488
        %510 = vst [vmem:[#allocation2 + $0x60] sm:$0xf0] %v489
        %511 = vst [vmem:[#allocation2 + $0x68] sm:$0xf0] %v490
        %512 = vst [vmem:[#allocation2 + $0x70] sm:$0xf0] %v491
        %513 = vst [vmem:[#allocation2 + $0x78] sm:$0xf0] %v492
        %514 = vst [vmem:[#allocation2 + $0x80] sm:$0xf0] %v493
        %515 = vst [vmem:[#allocation2 + $0x88] sm:$0xf0] %v494
        %516 = vst [vmem:[#allocation2 + $0x90] sm:$0xf0] %v495
        %517 = vst [vmem:[#allocation2 + $0x98] sm:$0xf0] %v496
        %518 = vst [vmem:[#allocation2 + $0xa0] sm:$0xf0] %v497
        %519 = vst.msk [vmem:[#allocation2 + $0xa8] sm:$0xf0] %vm373, %v486
        %v520 = vld [vmem:[%s239] sm:$0xff]
        %v521 = vld [vmem:[%s239 + $0x8] sm:$0xff]
        %v522 = vld [vmem:[%s239 + $0x10] sm:$0xff]
        %v523 = vld [vmem:[%s239 + $0x18] sm:$0xff]
        %v524 = vld [vmem:[%s239 + $0x20] sm:$0xff]
        %v525 = vld [vmem:[%s239 + $0x28] sm:$0xf]
        %v532 = vcombine.high %v520, %v520
        %v533 = vcombine.high %v521, %v521
        %v534 = vcombine.high %v522, %v522
        %v535 = vcombine.high %v523, %v523
        %v536 = vcombine.high %v524, %v524
        %537 = vrot.lane.b32.xlu0 %v520, 124
        %v538 = vpop.permute.xlu0 %537
        %539 = vrot.lane.b32.xlu0 %v532, 124
        %v540 = vpop.permute.xlu0 %539
        %541 = vrot.lane.b32.xlu0 %v521, 124
        %v542 = vpop.permute.xlu0 %541
        %543 = vrot.lane.b32.xlu0 %v533, 124
        %v544 = vpop.permute.xlu0 %543
        %545 = vrot.lane.b32.xlu0 %v522, 124
        %v546 = vpop.permute.xlu0 %545
        %547 = vrot.lane.b32.xlu0 %v534, 124
        %v548 = vpop.permute.xlu0 %547
        %549 = vrot.lane.b32.xlu0 %v523, 124
        %v550 = vpop.permute.xlu0 %549
        %551 = vrot.lane.b32.xlu0 %v535, 124
        %v552 = vpop.permute.xlu0 %551
        %553 = vrot.lane.b32.xlu0 %v524, 124
        %v554 = vpop.permute.xlu0 %553
        %555 = vrot.lane.b32.xlu0 %v536, 124
        %v556 = vpop.permute.xlu0 %555
        %557 = vrot.lane.b32.xlu0 %v525, 124
        %v558 = vpop.permute.xlu0 %557
        %vm559 = vcmask 1014784
        %v560 = vsel %vm559, %v538, %v540
        %v561 = vsel %vm559, %v540, %v542
        %v562 = vsel %vm559, %v542, %v544
        %v563 = vsel %vm559, %v544, %v546
        %v564 = vsel %vm559, %v546, %v548
        %v565 = vsel %vm559, %v548, %v550
        %v566 = vsel %vm559, %v550, %v552
        %v567 = vsel %vm559, %v552, %v554
        %v568 = vsel %vm559, %v554, %v556
        %v569 = vsel %vm559, %v556, %v558
        %581 = vst [vmem:[#allocation2 + $0xb0] sm:$0xf] %v560
        %582 = vst [vmem:[#allocation2 + $0xb8] sm:$0xf] %v561
        %583 = vst [vmem:[#allocation2 + $0xc0] sm:$0xf] %v562
        %584 = vst [vmem:[#allocation2 + $0xc8] sm:$0xf] %v563
        %585 = vst [vmem:[#allocation2 + $0xd0] sm:$0xf] %v564
        %586 = vst [vmem:[#allocation2 + $0xd8] sm:$0xf] %v565
        %587 = vst [vmem:[#allocation2 + $0xe0] sm:$0xf] %v566
        %588 = vst [vmem:[#allocation2 + $0xe8] sm:$0xf] %v567
        %589 = vst [vmem:[#allocation2 + $0xf0] sm:$0xf] %v568
        %590 = vst [vmem:[#allocation2 + $0xf8] sm:$0xf] %v569
        %591 = vst.msk [vmem:[#allocation2 + $0x100] sm:$0xf] %vm299, %v558
        %v592 = vld [vmem:[%s239] sm:$0xff]
        %v593 = vld [vmem:[%s239 + $0x8] sm:$0xff]
        %v594 = vld [vmem:[%s239 + $0x10] sm:$0xff]
        %v595 = vld [vmem:[%s239 + $0x18] sm:$0xff]
        %v596 = vld [vmem:[%s239 + $0x20] sm:$0xff]
        %v597 = vld [vmem:[%s239 + $0x28] sm:$0xff]
        %v604 = vcombine.low %v592, %v592
        %v605 = vcombine.low %v593, %v593
        %v606 = vcombine.low %v594, %v594
        %v607 = vcombine.low %v595, %v595
        %v608 = vcombine.low %v596, %v596
        %v609 = vcombine.low %v597, %v597
        %610 = vrot.lane.b32.xlu0 %v604, 88
        %v611 = vpop.permute.xlu0 %610
        %612 = vrot.lane.b32.xlu0 %v592, 88
        %v613 = vpop.permute.xlu0 %612
        %614 = vrot.lane.b32.xlu0 %v605, 88
        %v615 = vpop.permute.xlu0 %614
        %616 = vrot.lane.b32.xlu0 %v593, 88
        %v617 = vpop.permute.xlu0 %616
        %618 = vrot.lane.b32.xlu0 %v606, 88
        %v619 = vpop.permute.xlu0 %618
        %620 = vrot.lane.b32.xlu0 %v594, 88
        %v621 = vpop.permute.xlu0 %620
        %622 = vrot.lane.b32.xlu0 %v607, 88
        %v623 = vpop.permute.xlu0 %622
        %624 = vrot.lane.b32.xlu0 %v595, 88
        %v625 = vpop.permute.xlu0 %624
        %626 = vrot.lane.b32.xlu0 %v608, 88
        %v627 = vpop.permute.xlu0 %626
        %628 = vrot.lane.b32.xlu0 %v596, 88
        %v629 = vpop.permute.xlu0 %628
        %630 = vrot.lane.b32.xlu0 %v609, 88
        %v631 = vpop.permute.xlu0 %630
        %632 = vrot.lane.b32.xlu0 %v597, 88
        %v633 = vpop.permute.xlu0 %632
        %vm634 = vcmask 719872
        %v635 = vsel %vm634, %v611, %v613
        %v636 = vsel %vm634, %v613, %v615
        %v637 = vsel %vm634, %v615, %v617
        %v638 = vsel %vm634, %v617, %v619
        %v639 = vsel %vm634, %v619, %v621
        %v640 = vsel %vm634, %v621, %v623
        %v641 = vsel %vm634, %v623, %v625
        %v642 = vsel %vm634, %v625, %v627
        %v643 = vsel %vm634, %v627, %v629
        %v644 = vsel %vm634, %v629, %v631
        %v645 = vsel %vm634, %v631, %v633
        %657 = vst [vmem:[#allocation2 + $0xb0] sm:$0xf0] %v635
        %658 = vst [vmem:[#allocation2 + $0xb8] sm:$0xf0] %v636
        %659 = vst [vmem:[#allocation2 + $0xc0] sm:$0xf0] %v637
        %660 = vst [vmem:[#allocation2 + $0xc8] sm:$0xf0] %v638
        %661 = vst [vmem:[#allocation2 + $0xd0] sm:$0xf0] %v639
        %662 = vst [vmem:[#allocation2 + $0xd8] sm:$0xf0] %v640
        %663 = vst [vmem:[#allocation2 + $0xe0] sm:$0xf0] %v641
        %664 = vst [vmem:[#allocation2 + $0xe8] sm:$0xf0] %v642
        %665 = vst [vmem:[#allocation2 + $0xf0] sm:$0xf0] %v643
        %666 = vst [vmem:[#allocation2 + $0xf8] sm:$0xf0] %v644
        %667 = vst.msk [vmem:[#allocation2 + $0x100] sm:$0xf0] %vm373, %v645
        %v668 = vld [vmem:[%s239] sm:$0xff]
        %v669 = vld [vmem:[%s239 + $0x8] sm:$0xff]
        %v670 = vld [vmem:[%s239 + $0x10] sm:$0xff]
        %v671 = vld [vmem:[%s239 + $0x18] sm:$0xff]
        %v672 = vld [vmem:[%s239 + $0x20] sm:$0xff]
        %v673 = vld [vmem:[%s239 + $0x28] sm:$0xff]
        %v680 = vcombine.high %v668, %v668
        %v681 = vcombine.high %v669, %v669
        %v682 = vcombine.high %v670, %v670
        %v683 = vcombine.high %v671, %v671
        %v684 = vcombine.high %v672, %v672
        %v685 = vcombine.high %v673, %v673
        %686 = vrot.lane.b32.xlu0 %v668, 87
        %v687 = vpop.permute.xlu0 %686
        %688 = vrot.lane.b32.xlu0 %v680, 87
        %v689 = vpop.permute.xlu0 %688
        %690 = vrot.lane.b32.xlu0 %v669, 87
        %v691 = vpop.permute.xlu0 %690
        %692 = vrot.lane.b32.xlu0 %v681, 87
        %v693 = vpop.permute.xlu0 %692
        %694 = vrot.lane.b32.xlu0 %v670, 87
        %v695 = vpop.permute.xlu0 %694
        %696 = vrot.lane.b32.xlu0 %v682, 87
        %v697 = vpop.permute.xlu0 %696
        %698 = vrot.lane.b32.xlu0 %v671, 87
        %v699 = vpop.permute.xlu0 %698
        %700 = vrot.lane.b32.xlu0 %v683, 87
        %v701 = vpop.permute.xlu0 %700
        %702 = vrot.lane.b32.xlu0 %v672, 87
        %v703 = vpop.permute.xlu0 %702
        %704 = vrot.lane.b32.xlu0 %v684, 87
        %v705 = vpop.permute.xlu0 %704
        %706 = vrot.lane.b32.xlu0 %v673, 87
        %v707 = vpop.permute.xlu0 %706
        %708 = vrot.lane.b32.xlu0 %v685, 87
        %v709 = vpop.permute.xlu0 %708
        %vm710 = vcmask 711680
        %v711 = vsel %vm710, %v687, %v689
        %v712 = vsel %vm710, %v689, %v691
        %v713 = vsel %vm710, %v691, %v693
        %v714 = vsel %vm710, %v693, %v695
        %v715 = vsel %vm710, %v695, %v697
        %v716 = vsel %vm710, %v697, %v699
        %v717 = vsel %vm710, %v699, %v701
        %v718 = vsel %vm710, %v701, %v703
        %v719 = vsel %vm710, %v703, %v705
        %v720 = vsel %vm710, %v705, %v707
        %v721 = vsel %vm710, %v707, %v709
        %733 = vst [vmem:[#allocation2 + $0x108] sm:$0xf] %v711
        %734 = vst [vmem:[#allocation2 + $0x110] sm:$0xf] %v712
        %735 = vst [vmem:[#allocation2 + $0x118] sm:$0xf] %v713
        %736 = vst [vmem:[#allocation2 + $0x120] sm:$0xf] %v714
        %737 = vst [vmem:[#allocation2 + $0x128] sm:$0xf] %v715
        %738 = vst [vmem:[#allocation2 + $0x130] sm:$0xf] %v716
        %739 = vst [vmem:[#allocation2 + $0x138] sm:$0xf] %v717
        %740 = vst [vmem:[#allocation2 + $0x140] sm:$0xf] %v718
        %741 = vst [vmem:[#allocation2 + $0x148] sm:$0xf] %v719
        %742 = vst [vmem:[#allocation2 + $0x150] sm:$0xf] %v720
        %743 = vst.msk [vmem:[#allocation2 + $0x158] sm:$0xf] %vm299, %v721
        %v744 = vld [vmem:[%s239] sm:$0xff]
        %v745 = vld [vmem:[%s239 + $0x8] sm:$0xff]
        %v746 = vld [vmem:[%s239 + $0x10] sm:$0xff]
        %v747 = vld [vmem:[%s239 + $0x18] sm:$0xff]
        %v748 = vld [vmem:[%s239 + $0x20] sm:$0xff]
        %v749 = vld [vmem:[%s239 + $0x28] sm:$0xff]
        %v756 = vcombine.low %v744, %v744
        %v757 = vcombine.low %v745, %v745
        %v758 = vcombine.low %v746, %v746
        %v759 = vcombine.low %v747, %v747
        %v760 = vcombine.low %v748, %v748
        %v761 = vcombine.low %v749, %v749
        %762 = vrot.lane.b32.xlu0 %v756, 86
        %v763 = vpop.permute.xlu0 %762
        %764 = vrot.lane.b32.xlu0 %v744, 86
        %v765 = vpop.permute.xlu0 %764
        %766 = vrot.lane.b32.xlu0 %v757, 86
        %v767 = vpop.permute.xlu0 %766
        %768 = vrot.lane.b32.xlu0 %v745, 86
        %v769 = vpop.permute.xlu0 %768
        %770 = vrot.lane.b32.xlu0 %v758, 86
        %v771 = vpop.permute.xlu0 %770
        %772 = vrot.lane.b32.xlu0 %v746, 86
        %v773 = vpop.permute.xlu0 %772
        %774 = vrot.lane.b32.xlu0 %v759, 86
        %v775 = vpop.permute.xlu0 %774
        %776 = vrot.lane.b32.xlu0 %v747, 86
        %v777 = vpop.permute.xlu0 %776
        %778 = vrot.lane.b32.xlu0 %v760, 86
        %v779 = vpop.permute.xlu0 %778
        %780 = vrot.lane.b32.xlu0 %v748, 86
        %v781 = vpop.permute.xlu0 %780
        %782 = vrot.lane.b32.xlu0 %v761, 86
        %v783 = vpop.permute.xlu0 %782
        %784 = vrot.lane.b32.xlu0 %v749, 86
        %v785 = vpop.permute.xlu0 %784
        %vm786 = vcmask 703488
        %v787 = vsel %vm786, %v763, %v765
        %v788 = vsel %vm786, %v765, %v767
        %v789 = vsel %vm786, %v767, %v769
        %v790 = vsel %vm786, %v769, %v771
        %v791 = vsel %vm786, %v771, %v773
        %v792 = vsel %vm786, %v773, %v775
        %v793 = vsel %vm786, %v775, %v777
        %v794 = vsel %vm786, %v777, %v779
        %v795 = vsel %vm786, %v779, %v781
        %v796 = vsel %vm786, %v781, %v783
        %v797 = vsel %vm786, %v783, %v785
        %809 = vst [vmem:[#allocation2 + $0x108] sm:$0xf0] %v787
        %810 = vst [vmem:[#allocation2 + $0x110] sm:$0xf0] %v788
        %811 = vst [vmem:[#allocation2 + $0x118] sm:$0xf0] %v789
        %812 = vst [vmem:[#allocation2 + $0x120] sm:$0xf0] %v790
        %813 = vst [vmem:[#allocation2 + $0x128] sm:$0xf0] %v791
        %814 = vst [vmem:[#allocation2 + $0x130] sm:$0xf0] %v792
        %815 = vst [vmem:[#allocation2 + $0x138] sm:$0xf0] %v793
        %816 = vst [vmem:[#allocation2 + $0x140] sm:$0xf0] %v794
        %817 = vst [vmem:[#allocation2 + $0x148] sm:$0xf0] %v795
        %818 = vst [vmem:[#allocation2 + $0x150] sm:$0xf0] %v796
        %819 = vst.msk [vmem:[#allocation2 + $0x158] sm:$0xf0] %vm373, %v797
        %v820 = vld [vmem:[%s239] sm:$0xff]
        %v821 = vld [vmem:[%s239 + $0x8] sm:$0xff]
        %v822 = vld [vmem:[%s239 + $0x10] sm:$0xff]
        %v823 = vld [vmem:[%s239 + $0x18] sm:$0xff]
        %v824 = vld [vmem:[%s239 + $0x20] sm:$0xff]
        %v825 = vld [vmem:[%s239 + $0x28] sm:$0xff]
        %v832 = vcombine.high %v820, %v820
        %v833 = vcombine.high %v821, %v821
        %v834 = vcombine.high %v822, %v822
        %v835 = vcombine.high %v823, %v823
        %v836 = vcombine.high %v824, %v824
        %v837 = vcombine.high %v825, %v825
        %838 = vrot.lane.b32.xlu0 %v820, 85
        %v839 = vpop.permute.xlu0 %838
        %840 = vrot.lane.b32.xlu0 %v832, 85
        %v841 = vpop.permute.xlu0 %840
        %842 = vrot.lane.b32.xlu0 %v821, 85
        %v843 = vpop.permute.xlu0 %842
        %844 = vrot.lane.b32.xlu0 %v833, 85
        %v845 = vpop.permute.xlu0 %844
        %846 = vrot.lane.b32.xlu0 %v822, 85
        %v847 = vpop.permute.xlu0 %846
        %848 = vrot.lane.b32.xlu0 %v834, 85
        %v849 = vpop.permute.xlu0 %848
        %850 = vrot.lane.b32.xlu0 %v823, 85
        %v851 = vpop.permute.xlu0 %850
        %852 = vrot.lane.b32.xlu0 %v835, 85
        %v853 = vpop.permute.xlu0 %852
        %854 = vrot.lane.b32.xlu0 %v824, 85
        %v855 = vpop.permute.xlu0 %854
        %856 = vrot.lane.b32.xlu0 %v836, 85
        %v857 = vpop.permute.xlu0 %856
        %858 = vrot.lane.b32.xlu0 %v825, 85
        %v859 = vpop.permute.xlu0 %858
        %860 = vrot.lane.b32.xlu0 %v837, 85
        %v861 = vpop.permute.xlu0 %860
        %vm862 = vcmask 695296
        %v863 = vsel %vm862, %v839, %v841
        %v864 = vsel %vm862, %v841, %v843
        %v865 = vsel %vm862, %v843, %v845
        %v866 = vsel %vm862, %v845, %v847
        %v867 = vsel %vm862, %v847, %v849
        %v868 = vsel %vm862, %v849, %v851
        %v869 = vsel %vm862, %v851, %v853
        %v870 = vsel %vm862, %v853, %v855
        %v871 = vsel %vm862, %v855, %v857
        %v872 = vsel %vm862, %v857, %v859
        %v873 = vsel %vm862, %v859, %v861
        %885 = vst [vmem:[#allocation2 + $0x160] sm:$0xf] %v863
        %886 = vst [vmem:[#allocation2 + $0x168] sm:$0xf] %v864
        %887 = vst [vmem:[#allocation2 + $0x170] sm:$0xf] %v865
        %888 = vst [vmem:[#allocation2 + $0x178] sm:$0xf] %v866
        %889 = vst [vmem:[#allocation2 + $0x180] sm:$0xf] %v867
        %890 = vst [vmem:[#allocation2 + $0x188] sm:$0xf] %v868
        %891 = vst [vmem:[#allocation2 + $0x190] sm:$0xf] %v869
        %892 = vst [vmem:[#allocation2 + $0x198] sm:$0xf] %v870
        %893 = vst [vmem:[#allocation2 + $0x1a0] sm:$0xf] %v871
        %894 = vst [vmem:[#allocation2 + $0x1a8] sm:$0xf] %v872
        %895 = vst.msk [vmem:[#allocation2 + $0x1b0] sm:$0xf] %vm299, %v873
        %v896 = vld [vmem:[%s239] sm:$0xff]
        %v897 = vld [vmem:[%s239 + $0x8] sm:$0xff]
        %v898 = vld [vmem:[%s239 + $0x10] sm:$0xff]
        %v899 = vld [vmem:[%s239 + $0x18] sm:$0xff]
        %v900 = vld [vmem:[%s239 + $0x20] sm:$0xff]
        %v901 = vld [vmem:[%s239 + $0x28] sm:$0xff]
        %v908 = vcombine.low %v896, %v896
        %v909 = vcombine.low %v897, %v897
        %v910 = vcombine.low %v898, %v898
        %v911 = vcombine.low %v899, %v899
        %v912 = vcombine.low %v900, %v900
        %v913 = vcombine.low %v901, %v901
        %914 = vrot.lane.b32.xlu0 %v908, 84
        %v915 = vpop.permute.xlu0 %914
        %916 = vrot.lane.b32.xlu0 %v896, 84
        %v917 = vpop.permute.xlu0 %916
        %918 = vrot.lane.b32.xlu0 %v909, 84
        %v919 = vpop.permute.xlu0 %918
        %920 = vrot.lane.b32.xlu0 %v897, 84
        %v921 = vpop.permute.xlu0 %920
        %922 = vrot.lane.b32.xlu0 %v910, 84
        %v923 = vpop.permute.xlu0 %922
        %924 = vrot.lane.b32.xlu0 %v898, 84
        %v925 = vpop.permute.xlu0 %924
        %926 = vrot.lane.b32.xlu0 %v911, 84
        %v927 = vpop.permute.xlu0 %926
        %928 = vrot.lane.b32.xlu0 %v899, 84
        %v929 = vpop.permute.xlu0 %928
        %930 = vrot.lane.b32.xlu0 %v912, 84
        %v931 = vpop.permute.xlu0 %930
        %932 = vrot.lane.b32.xlu0 %v900, 84
        %v933 = vpop.permute.xlu0 %932
        %934 = vrot.lane.b32.xlu0 %v913, 84
        %v935 = vpop.permute.xlu0 %934
        %936 = vrot.lane.b32.xlu0 %v901, 84
        %v937 = vpop.permute.xlu0 %936
        %vm938 = vcmask 687104
        %v939 = vsel %vm938, %v915, %v917
        %v940 = vsel %vm938, %v917, %v919
        %v941 = vsel %vm938, %v919, %v921
        %v942 = vsel %vm938, %v921, %v923
        %v943 = vsel %vm938, %v923, %v925
        %v944 = vsel %vm938, %v925, %v927
        %v945 = vsel %vm938, %v927, %v929
        %v946 = vsel %vm938, %v929, %v931
        %v947 = vsel %vm938, %v931, %v933
        %v948 = vsel %vm938, %v933, %v935
        %v949 = vsel %vm938, %v935, %v937
        %961 = vst [vmem:[#allocation2 + $0x160] sm:$0xf0] %v939
        %962 = vst [vmem:[#allocation2 + $0x168] sm:$0xf0] %v940
        %963 = vst [vmem:[#allocation2 + $0x170] sm:$0xf0] %v941
        %964 = vst [vmem:[#allocation2 + $0x178] sm:$0xf0] %v942
        %965 = vst [vmem:[#allocation2 + $0x180] sm:$0xf0] %v943
        %966 = vst [vmem:[#allocation2 + $0x188] sm:$0xf0] %v944
        %967 = vst [vmem:[#allocation2 + $0x190] sm:$0xf0] %v945
        %968 = vst [vmem:[#allocation2 + $0x198] sm:$0xf0] %v946
        %969 = vst [vmem:[#allocation2 + $0x1a0] sm:$0xf0] %v947
        %970 = vst [vmem:[#allocation2 + $0x1a8] sm:$0xf0] %v948
        %971 = vst.msk [vmem:[#allocation2 + $0x1b0] sm:$0xf0] %vm373, %v949
        %v972 = vld [vmem:[%s239] sm:$0xff]
        %v973 = vld [vmem:[%s239 + $0x8] sm:$0xff]
        %v974 = vld [vmem:[%s239 + $0x10] sm:$0xff]
        %v975 = vld [vmem:[%s239 + $0x18] sm:$0xff]
        %v976 = vld [vmem:[%s239 + $0x20] sm:$0xff]
        %v977 = vld [vmem:[%s239 + $0x28] sm:$0xff]
        %v984 = vcombine.high %v972, %v972
        %v985 = vcombine.high %v973, %v973
        %v986 = vcombine.high %v974, %v974
        %v987 = vcombine.high %v975, %v975
        %v988 = vcombine.high %v976, %v976
        %v989 = vcombine.high %v977, %v977
        %990 = vrot.lane.b32.xlu0 %v972, 48
        %v991 = vpop.permute.xlu0 %990
        %992 = vrot.lane.b32.xlu0 %v984, 48
        %v993 = vpop.permute.xlu0 %992
        %994 = vrot.lane.b32.xlu0 %v973, 48
        %v995 = vpop.permute.xlu0 %994
        %996 = vrot.lane.b32.xlu0 %v985, 48
        %v997 = vpop.permute.xlu0 %996
        %998 = vrot.lane.b32.xlu0 %v974, 48
        %v999 = vpop.permute.xlu0 %998
        %1000 = vrot.lane.b32.xlu0 %v986, 48
        %v1001 = vpop.permute.xlu0 %1000
        %1002 = vrot.lane.b32.xlu0 %v975, 48
        %v1003 = vpop.permute.xlu0 %1002
        %1004 = vrot.lane.b32.xlu0 %v987, 48
        %v1005 = vpop.permute.xlu0 %1004
        %1006 = vrot.lane.b32.xlu0 %v976, 48
        %v1007 = vpop.permute.xlu0 %1006
        %1008 = vrot.lane.b32.xlu0 %v988, 48
        %v1009 = vpop.permute.xlu0 %1008
        %1010 = vrot.lane.b32.xlu0 %v977, 48
        %v1011 = vpop.permute.xlu0 %1010
        %1012 = vrot.lane.b32.xlu0 %v989, 48
        %v1013 = vpop.permute.xlu0 %1012
        %vm1014 = vcmask 392192
        %v1015 = vsel %vm1014, %v991, %v993
        %v1016 = vsel %vm1014, %v993, %v995
        %v1017 = vsel %vm1014, %v995, %v997
        %v1018 = vsel %vm1014, %v997, %v999
        %v1019 = vsel %vm1014, %v999, %v1001
        %v1020 = vsel %vm1014, %v1001, %v1003
        %v1021 = vsel %vm1014, %v1003, %v1005
        %v1022 = vsel %vm1014, %v1005, %v1007
        %v1023 = vsel %vm1014, %v1007, %v1009
        %v1024 = vsel %vm1014, %v1009, %v1011
        %v1025 = vsel %vm1014, %v1011, %v1013
        %1037 = vst [vmem:[#allocation2 + $0x1b8] sm:$0xf] %v1015
        %1038 = vst [vmem:[#allocation2 + $0x1c0] sm:$0xf] %v1016
        %1039 = vst [vmem:[#allocation2 + $0x1c8] sm:$0xf] %v1017
        %1040 = vst [vmem:[#allocation2 + $0x1d0] sm:$0xf] %v1018
        %1041 = vst [vmem:[#allocation2 + $0x1d8] sm:$0xf] %v1019
        %1042 = vst [vmem:[#allocation2 + $0x1e0] sm:$0xf] %v1020
        %1043 = vst [vmem:[#allocation2 + $0x1e8] sm:$0xf] %v1021
        %1044 = vst [vmem:[#allocation2 + $0x1f0] sm:$0xf] %v1022
        %1045 = vst [vmem:[#allocation2 + $0x1f8] sm:$0xf] %v1023
        %1046 = vst [vmem:[#allocation2 + $0x200] sm:$0xf] %v1024
        %1047 = vst.msk [vmem:[#allocation2 + $0x208] sm:$0xf] %vm299, %v1025
        %v1048 = vld [vmem:[%s239] sm:$0xff]
        %v1049 = vld [vmem:[%s239 + $0x8] sm:$0xff]
        %v1050 = vld [vmem:[%s239 + $0x10] sm:$0xff]
        %v1051 = vld [vmem:[%s239 + $0x18] sm:$0xff]
        %v1052 = vld [vmem:[%s239 + $0x20] sm:$0xff]
        %v1053 = vld [vmem:[%s239 + $0x28] sm:$0xff]
        %v1060 = vcombine.low %v1048, %v1048
        %v1061 = vcombine.low %v1049, %v1049
        %v1062 = vcombine.low %v1050, %v1050
        %v1063 = vcombine.low %v1051, %v1051
        %v1064 = vcombine.low %v1052, %v1052
        %v1065 = vcombine.low %v1053, %v1053
        %1066 = vrot.lane.b32.xlu0 %v1060, 47
        %v1067 = vpop.permute.xlu0 %1066
        %1068 = vrot.lane.b32.xlu0 %v1048, 47
        %v1069 = vpop.permute.xlu0 %1068
        %1070 = vrot.lane.b32.xlu0 %v1061, 47
        %v1071 = vpop.permute.xlu0 %1070
        %1072 = vrot.lane.b32.xlu0 %v1049, 47
        %v1073 = vpop.permute.xlu0 %1072
        %1074 = vrot.lane.b32.xlu0 %v1062, 47
        %v1075 = vpop.permute.xlu0 %1074
        %1076 = vrot.lane.b32.xlu0 %v1050, 47
        %v1077 = vpop.permute.xlu0 %1076
        %1078 = vrot.lane.b32.xlu0 %v1063, 47
        %v1079 = vpop.permute.xlu0 %1078
        %1080 = vrot.lane.b32.xlu0 %v1051, 47
        %v1081 = vpop.permute.xlu0 %1080
        %1082 = vrot.lane.b32.xlu0 %v1064, 47
        %v1083 = vpop.permute.xlu0 %1082
        %1084 = vrot.lane.b32.xlu0 %v1052, 47
        %v1085 = vpop.permute.xlu0 %1084
        %1086 = vrot.lane.b32.xlu0 %v1065, 47
        %v1087 = vpop.permute.xlu0 %1086
        %1088 = vrot.lane.b32.xlu0 %v1053, 47
        %v1089 = vpop.permute.xlu0 %1088
        %vm1090 = vcmask 384000
        %v1091 = vsel %vm1090, %v1067, %v1069
        %v1092 = vsel %vm1090, %v1069, %v1071
        %v1093 = vsel %vm1090, %v1071, %v1073
        %v1094 = vsel %vm1090, %v1073, %v1075
        %v1095 = vsel %vm1090, %v1075, %v1077
        %v1096 = vsel %vm1090, %v1077, %v1079
        %v1097 = vsel %vm1090, %v1079, %v1081
        %v1098 = vsel %vm1090, %v1081, %v1083
        %v1099 = vsel %vm1090, %v1083, %v1085
        %v1100 = vsel %vm1090, %v1085, %v1087
        %v1101 = vsel %vm1090, %v1087, %v1089
        %1113 = vst [vmem:[#allocation2 + $0x1b8] sm:$0xf0] %v1091
        %1114 = vst [vmem:[#allocation2 + $0x1c0] sm:$0xf0] %v1092
        %1115 = vst [vmem:[#allocation2 + $0x1c8] sm:$0xf0] %v1093
        %1116 = vst [vmem:[#allocation2 + $0x1d0] sm:$0xf0] %v1094
        %1117 = vst [vmem:[#allocation2 + $0x1d8] sm:$0xf0] %v1095
        %1118 = vst [vmem:[#allocation2 + $0x1e0] sm:$0xf0] %v1096
        %1119 = vst [vmem:[#allocation2 + $0x1e8] sm:$0xf0] %v1097
        %1120 = vst [vmem:[#allocation2 + $0x1f0] sm:$0xf0] %v1098
        %1121 = vst [vmem:[#allocation2 + $0x1f8] sm:$0xf0] %v1099
        %1122 = vst [vmem:[#allocation2 + $0x200] sm:$0xf0] %v1100
        %1123 = vst.msk [vmem:[#allocation2 + $0x208] sm:$0xf0] %vm373, %v1101
        %v1124 = vld [vmem:[%s239] sm:$0xff]
        %v1125 = vld [vmem:[%s239 + $0x8] sm:$0xff]
        %v1126 = vld [vmem:[%s239 + $0x10] sm:$0xff]
        %v1127 = vld [vmem:[%s239 + $0x18] sm:$0xff]
        %v1128 = vld [vmem:[%s239 + $0x20] sm:$0xff]
        %v1129 = vld [vmem:[%s239 + $0x28] sm:$0xff]
        %v1136 = vcombine.high %v1124, %v1124
        %v1137 = vcombine.high %v1125, %v1125
        %v1138 = vcombine.high %v1126, %v1126
        %v1139 = vcombine.high %v1127, %v1127
        %v1140 = vcombine.high %v1128, %v1128
        %v1141 = vcombine.high %v1129, %v1129
        %1142 = vrot.lane.b32.xlu0 %v1124, 46
        %v1143 = vpop.permute.xlu0 %1142
        %1144 = vrot.lane.b32.xlu0 %v1136, 46
        %v1145 = vpop.permute.xlu0 %1144
        %1146 = vrot.lane.b32.xlu0 %v1125, 46
        %v1147 = vpop.permute.xlu0 %1146
        %1148 = vrot.lane.b32.xlu0 %v1137, 46
        %v1149 = vpop.permute.xlu0 %1148
        %1150 = vrot.lane.b32.xlu0 %v1126, 46
        %v1151 = vpop.permute.xlu0 %1150
        %1152 = vrot.lane.b32.xlu0 %v1138, 46
        %v1153 = vpop.permute.xlu0 %1152
        %1154 = vrot.lane.b32.xlu0 %v1127, 46
        %v1155 = vpop.permute.xlu0 %1154
        %1156 = vrot.lane.b32.xlu0 %v1139, 46
        %v1157 = vpop.permute.xlu0 %1156
        %1158 = vrot.lane.b32.xlu0 %v1128, 46
        %v1159 = vpop.permute.xlu0 %1158
        %1160 = vrot.lane.b32.xlu0 %v1140, 46
        %v1161 = vpop.permute.xlu0 %1160
        %1162 = vrot.lane.b32.xlu0 %v1129, 46
        %v1163 = vpop.permute.xlu0 %1162
        %1164 = vrot.lane.b32.xlu0 %v1141, 46
        %v1165 = vpop.permute.xlu0 %1164
        %vm1166 = vcmask 375808
        %v1167 = vsel %vm1166, %v1143, %v1145
        %v1168 = vsel %vm1166, %v1145, %v1147
        %v1169 = vsel %vm1166, %v1147, %v1149
        %v1170 = vsel %vm1166, %v1149, %v1151
        %v1171 = vsel %vm1166, %v1151, %v1153
        %v1172 = vsel %vm1166, %v1153, %v1155
        %v1173 = vsel %vm1166, %v1155, %v1157
        %v1174 = vsel %vm1166, %v1157, %v1159
        %v1175 = vsel %vm1166, %v1159, %v1161
        %v1176 = vsel %vm1166, %v1161, %v1163
        %v1177 = vsel %vm1166, %v1163, %v1165
        %1189 = vst [vmem:[#allocation2 + $0x210] sm:$0xf] %v1167
        %1190 = vst [vmem:[#allocation2 + $0x218] sm:$0xf] %v1168
        %1191 = vst [vmem:[#allocation2 + $0x220] sm:$0xf] %v1169
        %1192 = vst [vmem:[#allocation2 + $0x228] sm:$0xf] %v1170
        %1193 = vst [vmem:[#allocation2 + $0x230] sm:$0xf] %v1171
        %1194 = vst [vmem:[#allocation2 + $0x238] sm:$0xf] %v1172
        %1195 = vst [vmem:[#allocation2 + $0x240] sm:$0xf] %v1173
        %1196 = vst [vmem:[#allocation2 + $0x248] sm:$0xf] %v1174
        %1197 = vst [vmem:[#allocation2 + $0x250] sm:$0xf] %v1175
        %1198 = vst [vmem:[#allocation2 + $0x258] sm:$0xf] %v1176
        %1199 = vst.msk [vmem:[#allocation2 + $0x260] sm:$0xf] %vm299, %v1177
        %v1200 = vld [vmem:[%s239] sm:$0xff]
        %v1201 = vld [vmem:[%s239 + $0x8] sm:$0xff]
        %v1202 = vld [vmem:[%s239 + $0x10] sm:$0xff]
        %v1203 = vld [vmem:[%s239 + $0x18] sm:$0xff]
        %v1204 = vld [vmem:[%s239 + $0x20] sm:$0xff]
        %v1205 = vld [vmem:[%s239 + $0x28] sm:$0xff]
        %v1212 = vcombine.low %v1200, %v1200
        %v1213 = vcombine.low %v1201, %v1201
        %v1214 = vcombine.low %v1202, %v1202
        %v1215 = vcombine.low %v1203, %v1203
        %v1216 = vcombine.low %v1204, %v1204
        %v1217 = vcombine.low %v1205, %v1205
        %1218 = vrot.lane.b32.xlu0 %v1212, 45
        %v1219 = vpop.permute.xlu0 %1218
        %1220 = vrot.lane.b32.xlu0 %v1200, 45
        %v1221 = vpop.permute.xlu0 %1220
        %1222 = vrot.lane.b32.xlu0 %v1213, 45
        %v1223 = vpop.permute.xlu0 %1222
        %1224 = vrot.lane.b32.xlu0 %v1201, 45
        %v1225 = vpop.permute.xlu0 %1224
        %1226 = vrot.lane.b32.xlu0 %v1214, 45
        %v1227 = vpop.permute.xlu0 %1226
        %1228 = vrot.lane.b32.xlu0 %v1202, 45
        %v1229 = vpop.permute.xlu0 %1228
        %1230 = vrot.lane.b32.xlu0 %v1215, 45
        %v1231 = vpop.permute.xlu0 %1230
        %1232 = vrot.lane.b32.xlu0 %v1203, 45
        %v1233 = vpop.permute.xlu0 %1232
        %1234 = vrot.lane.b32.xlu0 %v1216, 45
        %v1235 = vpop.permute.xlu0 %1234
        %1236 = vrot.lane.b32.xlu0 %v1204, 45
        %v1237 = vpop.permute.xlu0 %1236
        %1238 = vrot.lane.b32.xlu0 %v1217, 45
        %v1239 = vpop.permute.xlu0 %1238
        %1240 = vrot.lane.b32.xlu0 %v1205, 45
        %v1241 = vpop.permute.xlu0 %1240
        %vm1242 = vcmask 367616
        %v1243 = vsel %vm1242, %v1219, %v1221
        %v1244 = vsel %vm1242, %v1221, %v1223
        %v1245 = vsel %vm1242, %v1223, %v1225
        %v1246 = vsel %vm1242, %v1225, %v1227
        %v1247 = vsel %vm1242, %v1227, %v1229
        %v1248 = vsel %vm1242, %v1229, %v1231
        %v1249 = vsel %vm1242, %v1231, %v1233
        %v1250 = vsel %vm1242, %v1233, %v1235
        %v1251 = vsel %vm1242, %v1235, %v1237
        %v1252 = vsel %vm1242, %v1237, %v1239
        %v1253 = vsel %vm1242, %v1239, %v1241
        %1265 = vst [vmem:[#allocation2 + $0x210] sm:$0xf0] %v1243
        %1266 = vst [vmem:[#allocation2 + $0x218] sm:$0xf0] %v1244
        %1267 = vst [vmem:[#allocation2 + $0x220] sm:$0xf0] %v1245
        %1268 = vst [vmem:[#allocation2 + $0x228] sm:$0xf0] %v1246
        %1269 = vst [vmem:[#allocation2 + $0x230] sm:$0xf0] %v1247
        %1270 = vst [vmem:[#allocation2 + $0x238] sm:$0xf0] %v1248
        %1271 = vst [vmem:[#allocation2 + $0x240] sm:$0xf0] %v1249
        %1272 = vst [vmem:[#allocation2 + $0x248] sm:$0xf0] %v1250
        %1273 = vst [vmem:[#allocation2 + $0x250] sm:$0xf0] %v1251
        %1274 = vst [vmem:[#allocation2 + $0x258] sm:$0xf0] %v1252
        %1275 = vst.msk [vmem:[#allocation2 + $0x260] sm:$0xf0] %vm373, %v1253
        %v1276 = vld [vmem:[%s239] sm:$0xff]
        %v1277 = vld [vmem:[%s239 + $0x8] sm:$0xff]
        %v1278 = vld [vmem:[%s239 + $0x10] sm:$0xff]
        %v1279 = vld [vmem:[%s239 + $0x18] sm:$0xff]
        %v1280 = vld [vmem:[%s239 + $0x20] sm:$0xff]
        %v1281 = vld [vmem:[%s239 + $0x28] sm:$0xff]
        %v1288 = vcombine.high %v1276, %v1276
        %v1289 = vcombine.high %v1277, %v1277
        %v1290 = vcombine.high %v1278, %v1278
        %v1291 = vcombine.high %v1279, %v1279
        %v1292 = vcombine.high %v1280, %v1280
        %v1293 = vcombine.high %v1281, %v1281
        %1294 = vrot.lane.b32.xlu0 %v1276, 44
        %v1295 = vpop.permute.xlu0 %1294
        %1296 = vrot.lane.b32.xlu0 %v1288, 44
        %v1297 = vpop.permute.xlu0 %1296
        %1298 = vrot.lane.b32.xlu0 %v1277, 44
        %v1299 = vpop.permute.xlu0 %1298
        %1300 = vrot.lane.b32.xlu0 %v1289, 44
        %v1301 = vpop.permute.xlu0 %1300
        %1302 = vrot.lane.b32.xlu0 %v1278, 44
        %v1303 = vpop.permute.xlu0 %1302
        %1304 = vrot.lane.b32.xlu0 %v1290, 44
        %v1305 = vpop.permute.xlu0 %1304
        %1306 = vrot.lane.b32.xlu0 %v1279, 44
        %v1307 = vpop.permute.xlu0 %1306
        %1308 = vrot.lane.b32.xlu0 %v1291, 44
        %v1309 = vpop.permute.xlu0 %1308
        %1310 = vrot.lane.b32.xlu0 %v1280, 44
        %v1311 = vpop.permute.xlu0 %1310
        %1312 = vrot.lane.b32.xlu0 %v1292, 44
        %v1313 = vpop.permute.xlu0 %1312
        %1314 = vrot.lane.b32.xlu0 %v1281, 44
        %v1315 = vpop.permute.xlu0 %1314
        %1316 = vrot.lane.b32.xlu0 %v1293, 44
        %v1317 = vpop.permute.xlu0 %1316
        %vm1318 = vcmask 359424
        %v1319 = vsel %vm1318, %v1295, %v1297
        %v1320 = vsel %vm1318, %v1297, %v1299
        %v1321 = vsel %vm1318, %v1299, %v1301
        %v1322 = vsel %vm1318, %v1301, %v1303
        %v1323 = vsel %vm1318, %v1303, %v1305
        %v1324 = vsel %vm1318, %v1305, %v1307
        %v1325 = vsel %vm1318, %v1307, %v1309
        %v1326 = vsel %vm1318, %v1309, %v1311
        %v1327 = vsel %vm1318, %v1311, %v1313
        %v1328 = vsel %vm1318, %v1313, %v1315
        %v1329 = vsel %vm1318, %v1315, %v1317
        %1341 = vst [vmem:[#allocation2 + $0x268] sm:$0xf] %v1319
        %1342 = vst [vmem:[#allocation2 + $0x270] sm:$0xf] %v1320
        %1343 = vst [vmem:[#allocation2 + $0x278] sm:$0xf] %v1321
        %1344 = vst [vmem:[#allocation2 + $0x280] sm:$0xf] %v1322
        %1345 = vst [vmem:[#allocation2 + $0x288] sm:$0xf] %v1323
        %1346 = vst [vmem:[#allocation2 + $0x290] sm:$0xf] %v1324
        %1347 = vst [vmem:[#allocation2 + $0x298] sm:$0xf] %v1325
        %1348 = vst [vmem:[#allocation2 + $0x2a0] sm:$0xf] %v1326
        %1349 = vst [vmem:[#allocation2 + $0x2a8] sm:$0xf] %v1327
        %1350 = vst [vmem:[#allocation2 + $0x2b0] sm:$0xf] %v1328
        %1351 = vst.msk [vmem:[#allocation2 + $0x2b8] sm:$0xf] %vm299, %v1329
        %v1352 = vld [vmem:[%s239] sm:$0xff]
        %v1353 = vld [vmem:[%s239 + $0x8] sm:$0xff]
        %v1354 = vld [vmem:[%s239 + $0x10] sm:$0xff]
        %v1355 = vld [vmem:[%s239 + $0x18] sm:$0xff]
        %v1356 = vld [vmem:[%s239 + $0x20] sm:$0xff]
        %v1357 = vld [vmem:[%s239 + $0x28] sm:$0xff]
        %v1364 = vcombine.low %v1352, %v1352
        %v1365 = vcombine.low %v1353, %v1353
        %v1366 = vcombine.low %v1354, %v1354
        %v1367 = vcombine.low %v1355, %v1355
        %v1368 = vcombine.low %v1356, %v1356
        %v1369 = vcombine.low %v1357, %v1357
        %1370 = vrot.lane.b32.xlu0 %v1364, 8
        %v1371 = vpop.permute.xlu0 %1370
        %1372 = vrot.lane.b32.xlu0 %v1352, 8
        %v1373 = vpop.permute.xlu0 %1372
        %1374 = vrot.lane.b32.xlu0 %v1365, 8
        %v1375 = vpop.permute.xlu0 %1374
        %1376 = vrot.lane.b32.xlu0 %v1353, 8
        %v1377 = vpop.permute.xlu0 %1376
        %1378 = vrot.lane.b32.xlu0 %v1366, 8
        %v1379 = vpop.permute.xlu0 %1378
        %1380 = vrot.lane.b32.xlu0 %v1354, 8
        %v1381 = vpop.permute.xlu0 %1380
        %1382 = vrot.lane.b32.xlu0 %v1367, 8
        %v1383 = vpop.permute.xlu0 %1382
        %1384 = vrot.lane.b32.xlu0 %v1355, 8
        %v1385 = vpop.permute.xlu0 %1384
        %1386 = vrot.lane.b32.xlu0 %v1368, 8
        %v1387 = vpop.permute.xlu0 %1386
        %1388 = vrot.lane.b32.xlu0 %v1356, 8
        %v1389 = vpop.permute.xlu0 %1388
        %1390 = vrot.lane.b32.xlu0 %v1369, 8
        %v1391 = vpop.permute.xlu0 %1390
        %1392 = vrot.lane.b32.xlu0 %v1357, 8
        %v1393 = vpop.permute.xlu0 %1392
        %vm1394 = vcmask 64512
        %v1395 = vsel %vm1394, %v1371, %v1373
        %v1396 = vsel %vm1394, %v1373, %v1375
        %v1397 = vsel %vm1394, %v1375, %v1377
        %v1398 = vsel %vm1394, %v1377, %v1379
        %v1399 = vsel %vm1394, %v1379, %v1381
        %v1400 = vsel %vm1394, %v1381, %v1383
        %v1401 = vsel %vm1394, %v1383, %v1385
        %v1402 = vsel %vm1394, %v1385, %v1387
        %v1403 = vsel %vm1394, %v1387, %v1389
        %v1404 = vsel %vm1394, %v1389, %v1391
        %v1405 = vsel %vm1394, %v1391, %v1393
        %1417 = vst [vmem:[#allocation2 + $0x268] sm:$0xf0] %v1395
        %1418 = vst [vmem:[#allocation2 + $0x270] sm:$0xf0] %v1396
        %1419 = vst [vmem:[#allocation2 + $0x278] sm:$0xf0] %v1397
        %1420 = vst [vmem:[#allocation2 + $0x280] sm:$0xf0] %v1398
        %1421 = vst [vmem:[#allocation2 + $0x288] sm:$0xf0] %v1399
        %1422 = vst [vmem:[#allocation2 + $0x290] sm:$0xf0] %v1400
        %1423 = vst [vmem:[#allocation2 + $0x298] sm:$0xf0] %v1401
        %1424 = vst [vmem:[#allocation2 + $0x2a0] sm:$0xf0] %v1402
        %1425 = vst [vmem:[#allocation2 + $0x2a8] sm:$0xf0] %v1403
        %1426 = vst [vmem:[#allocation2 + $0x2b0] sm:$0xf0] %v1404
        %1427 = vst.msk [vmem:[#allocation2 + $0x2b8] sm:$0xf0] %vm373, %v1405
        %v1428 = vld [vmem:[%s239] sm:$0xff]
        %v1429 = vld [vmem:[%s239 + $0x8] sm:$0xff]
        %v1430 = vld [vmem:[%s239 + $0x10] sm:$0xff]
        %v1431 = vld [vmem:[%s239 + $0x18] sm:$0xff]
        %v1432 = vld [vmem:[%s239 + $0x20] sm:$0xff]
        %v1433 = vld [vmem:[%s239 + $0x28] sm:$0xff]
        %v1440 = vcombine.high %v1428, %v1428
        %v1441 = vcombine.high %v1429, %v1429
        %v1442 = vcombine.high %v1430, %v1430
        %v1443 = vcombine.high %v1431, %v1431
        %v1444 = vcombine.high %v1432, %v1432
        %v1445 = vcombine.high %v1433, %v1433
        %1446 = vrot.lane.b32.xlu0 %v1428, 7
        %v1447 = vpop.permute.xlu0 %1446
        %1448 = vrot.lane.b32.xlu0 %v1440, 7
        %v1449 = vpop.permute.xlu0 %1448
        %1450 = vrot.lane.b32.xlu0 %v1429, 7
        %v1451 = vpop.permute.xlu0 %1450
        %1452 = vrot.lane.b32.xlu0 %v1441, 7
        %v1453 = vpop.permute.xlu0 %1452
        %1454 = vrot.lane.b32.xlu0 %v1430, 7
        %v1455 = vpop.permute.xlu0 %1454
        %1456 = vrot.lane.b32.xlu0 %v1442, 7
        %v1457 = vpop.permute.xlu0 %1456
        %1458 = vrot.lane.b32.xlu0 %v1431, 7
        %v1459 = vpop.permute.xlu0 %1458
        %1460 = vrot.lane.b32.xlu0 %v1443, 7
        %v1461 = vpop.permute.xlu0 %1460
        %1462 = vrot.lane.b32.xlu0 %v1432, 7
        %v1463 = vpop.permute.xlu0 %1462
        %1464 = vrot.lane.b32.xlu0 %v1444, 7
        %v1465 = vpop.permute.xlu0 %1464
        %1466 = vrot.lane.b32.xlu0 %v1433, 7
        %v1467 = vpop.permute.xlu0 %1466
        %1468 = vrot.lane.b32.xlu0 %v1445, 7
        %v1469 = vpop.permute.xlu0 %1468
        %vm1470 = vcmask 56320
        %v1471 = vsel %vm1470, %v1447, %v1449
        %v1472 = vsel %vm1470, %v1449, %v1451
        %v1473 = vsel %vm1470, %v1451, %v1453
        %v1474 = vsel %vm1470, %v1453, %v1455
        %v1475 = vsel %vm1470, %v1455, %v1457
        %v1476 = vsel %vm1470, %v1457, %v1459
        %v1477 = vsel %vm1470, %v1459, %v1461
        %v1478 = vsel %vm1470, %v1461, %v1463
        %v1479 = vsel %vm1470, %v1463, %v1465
        %v1480 = vsel %vm1470, %v1465, %v1467
        %v1481 = vsel %vm1470, %v1467, %v1469
        %1493 = vst [vmem:[#allocation2 + $0x2c0] sm:$0xf] %v1471
        %1494 = vst [vmem:[#allocation2 + $0x2c8] sm:$0xf] %v1472
        %1495 = vst [vmem:[#allocation2 + $0x2d0] sm:$0xf] %v1473
        %1496 = vst [vmem:[#allocation2 + $0x2d8] sm:$0xf] %v1474
        %1497 = vst [vmem:[#allocation2 + $0x2e0] sm:$0xf] %v1475
        %1498 = vst [vmem:[#allocation2 + $0x2e8] sm:$0xf] %v1476
        %1499 = vst [vmem:[#allocation2 + $0x2f0] sm:$0xf] %v1477
        %1500 = vst [vmem:[#allocation2 + $0x2f8] sm:$0xf] %v1478
        %1501 = vst [vmem:[#allocation2 + $0x300] sm:$0xf] %v1479
        %1502 = vst [vmem:[#allocation2 + $0x308] sm:$0xf] %v1480
        %1503 = vst.msk [vmem:[#allocation2 + $0x310] sm:$0xf] %vm299, %v1481
        %v1504 = vld [vmem:[%s239] sm:$0xff]
        %v1505 = vld [vmem:[%s239 + $0x8] sm:$0xff]
        %v1506 = vld [vmem:[%s239 + $0x10] sm:$0xff]
        %v1507 = vld [vmem:[%s239 + $0x18] sm:$0xff]
        %v1508 = vld [vmem:[%s239 + $0x20] sm:$0xff]
        %v1509 = vld [vmem:[%s239 + $0x28] sm:$0xff]
        %v1516 = vcombine.low %v1504, %v1504
        %v1517 = vcombine.low %v1505, %v1505
        %v1518 = vcombine.low %v1506, %v1506
        %v1519 = vcombine.low %v1507, %v1507
        %v1520 = vcombine.low %v1508, %v1508
        %v1521 = vcombine.low %v1509, %v1509
        %1522 = vrot.lane.b32.xlu0 %v1516, 6
        %v1523 = vpop.permute.xlu0 %1522
        %1524 = vrot.lane.b32.xlu0 %v1504, 6
        %v1525 = vpop.permute.xlu0 %1524
        %1526 = vrot.lane.b32.xlu0 %v1517, 6
        %v1527 = vpop.permute.xlu0 %1526
        %1528 = vrot.lane.b32.xlu0 %v1505, 6
        %v1529 = vpop.permute.xlu0 %1528
        %1530 = vrot.lane.b32.xlu0 %v1518, 6
        %v1531 = vpop.permute.xlu0 %1530
        %1532 = vrot.lane.b32.xlu0 %v1506, 6
        %v1533 = vpop.permute.xlu0 %1532
        %1534 = vrot.lane.b32.xlu0 %v1519, 6
        %v1535 = vpop.permute.xlu0 %1534
        %1536 = vrot.lane.b32.xlu0 %v1507, 6
        %v1537 = vpop.permute.xlu0 %1536
        %1538 = vrot.lane.b32.xlu0 %v1520, 6
        %v1539 = vpop.permute.xlu0 %1538
        %1540 = vrot.lane.b32.xlu0 %v1508, 6
        %v1541 = vpop.permute.xlu0 %1540
        %1542 = vrot.lane.b32.xlu0 %v1521, 6
        %v1543 = vpop.permute.xlu0 %1542
        %1544 = vrot.lane.b32.xlu0 %v1509, 6
        %v1545 = vpop.permute.xlu0 %1544
        %vm1546 = vcmask 48128
        %v1547 = vsel %vm1546, %v1523, %v1525
        %v1548 = vsel %vm1546, %v1525, %v1527
        %v1549 = vsel %vm1546, %v1527, %v1529
        %v1550 = vsel %vm1546, %v1529, %v1531
        %v1551 = vsel %vm1546, %v1531, %v1533
        %v1552 = vsel %vm1546, %v1533, %v1535
        %v1553 = vsel %vm1546, %v1535, %v1537
        %v1554 = vsel %vm1546, %v1537, %v1539
        %v1555 = vsel %vm1546, %v1539, %v1541
        %v1556 = vsel %vm1546, %v1541, %v1543
        %v1557 = vsel %vm1546, %v1543, %v1545
        %1569 = vst [vmem:[#allocation2 + $0x2c0] sm:$0xf0] %v1547
        %1570 = vst [vmem:[#allocation2 + $0x2c8] sm:$0xf0] %v1548
        %1571 = vst [vmem:[#allocation2 + $0x2d0] sm:$0xf0] %v1549
        %1572 = vst [vmem:[#allocation2 + $0x2d8] sm:$0xf0] %v1550
        %1573 = vst [vmem:[#allocation2 + $0x2e0] sm:$0xf0] %v1551
        %1574 = vst [vmem:[#allocation2 + $0x2e8] sm:$0xf0] %v1552
        %1575 = vst [vmem:[#allocation2 + $0x2f0] sm:$0xf0] %v1553
        %1576 = vst [vmem:[#allocation2 + $0x2f8] sm:$0xf0] %v1554
        %1577 = vst [vmem:[#allocation2 + $0x300] sm:$0xf0] %v1555
        %1578 = vst [vmem:[#allocation2 + $0x308] sm:$0xf0] %v1556
        %1579 = vst.msk [vmem:[#allocation2 + $0x310] sm:$0xf0] %vm373, %v1557
        %v1580 = vld [vmem:[%s239] sm:$0xff]
        %v1581 = vld [vmem:[%s239 + $0x8] sm:$0xff]
        %v1582 = vld [vmem:[%s239 + $0x10] sm:$0xff]
        %v1583 = vld [vmem:[%s239 + $0x18] sm:$0xff]
        %v1584 = vld [vmem:[%s239 + $0x20] sm:$0xff]
        %v1585 = vld [vmem:[%s239 + $0x28] sm:$0xff]
        %v1592 = vcombine.high %v1580, %v1580
        %v1593 = vcombine.high %v1581, %v1581
        %v1594 = vcombine.high %v1582, %v1582
        %v1595 = vcombine.high %v1583, %v1583
        %v1596 = vcombine.high %v1584, %v1584
        %v1597 = vcombine.high %v1585, %v1585
        %1598 = vrot.lane.b32.xlu0 %v1580, 5
        %v1599 = vpop.permute.xlu0 %1598
        %1600 = vrot.lane.b32.xlu0 %v1592, 5
        %v1601 = vpop.permute.xlu0 %1600
        %1602 = vrot.lane.b32.xlu0 %v1581, 5
        %v1603 = vpop.permute.xlu0 %1602
        %1604 = vrot.lane.b32.xlu0 %v1593, 5
        %v1605 = vpop.permute.xlu0 %1604
        %1606 = vrot.lane.b32.xlu0 %v1582, 5
        %v1607 = vpop.permute.xlu0 %1606
        %1608 = vrot.lane.b32.xlu0 %v1594, 5
        %v1609 = vpop.permute.xlu0 %1608
        %1610 = vrot.lane.b32.xlu0 %v1583, 5
        %v1611 = vpop.permute.xlu0 %1610
        %1612 = vrot.lane.b32.xlu0 %v1595, 5
        %v1613 = vpop.permute.xlu0 %1612
        %1614 = vrot.lane.b32.xlu0 %v1584, 5
        %v1615 = vpop.permute.xlu0 %1614
        %1616 = vrot.lane.b32.xlu0 %v1596, 5
        %v1617 = vpop.permute.xlu0 %1616
        %1618 = vrot.lane.b32.xlu0 %v1585, 5
        %v1619 = vpop.permute.xlu0 %1618
        %1620 = vrot.lane.b32.xlu0 %v1597, 5
        %v1621 = vpop.permute.xlu0 %1620
        %vm1622 = vcmask 39936
        %v1623 = vsel %vm1622, %v1599, %v1601
        %v1624 = vsel %vm1622, %v1601, %v1603
        %v1625 = vsel %vm1622, %v1603, %v1605
        %v1626 = vsel %vm1622, %v1605, %v1607
        %v1627 = vsel %vm1622, %v1607, %v1609
        %v1628 = vsel %vm1622, %v1609, %v1611
        %v1629 = vsel %vm1622, %v1611, %v1613
        %v1630 = vsel %vm1622, %v1613, %v1615
        %v1631 = vsel %vm1622, %v1615, %v1617
        %v1632 = vsel %vm1622, %v1617, %v1619
        %v1633 = vsel %vm1622, %v1619, %v1621
        %1645 = vst [vmem:[#allocation2 + $0x318] sm:$0xf] %v1623
        %1646 = vst [vmem:[#allocation2 + $0x320] sm:$0xf] %v1624
        %1647 = vst [vmem:[#allocation2 + $0x328] sm:$0xf] %v1625
        %1648 = vst [vmem:[#allocation2 + $0x330] sm:$0xf] %v1626
        %1649 = vst [vmem:[#allocation2 + $0x338] sm:$0xf] %v1627
        %1650 = vst [vmem:[#allocation2 + $0x340] sm:$0xf] %v1628
        %1651 = vst [vmem:[#allocation2 + $0x348] sm:$0xf] %v1629
        %1652 = vst [vmem:[#allocation2 + $0x350] sm:$0xf] %v1630
        %1653 = vst [vmem:[#allocation2 + $0x358] sm:$0xf] %v1631
        %1654 = vst [vmem:[#allocation2 + $0x360] sm:$0xf] %v1632
        %1655 = vst.msk [vmem:[#allocation2 + $0x368] sm:$0xf] %vm299, %v1633
        %v1656 = vld [vmem:[%s239] sm:$0xff]
        %v1657 = vld [vmem:[%s239 + $0x8] sm:$0xff]
        %v1658 = vld [vmem:[%s239 + $0x10] sm:$0xff]
        %v1659 = vld [vmem:[%s239 + $0x18] sm:$0xff]
        %v1660 = vld [vmem:[%s239 + $0x20] sm:$0xff]
        %v1661 = vld [vmem:[%s239 + $0x28] sm:$0xff]
        %v1668 = vcombine.low %v1656, %v1656
        %v1669 = vcombine.low %v1657, %v1657
        %v1670 = vcombine.low %v1658, %v1658
        %v1671 = vcombine.low %v1659, %v1659
        %v1672 = vcombine.low %v1660, %v1660
        %v1673 = vcombine.low %v1661, %v1661
        %1674 = vrot.lane.b32.xlu0 %v1668, 4
        %v1675 = vpop.permute.xlu0 %1674
        %1676 = vrot.lane.b32.xlu0 %v1656, 4
        %v1677 = vpop.permute.xlu0 %1676
        %1678 = vrot.lane.b32.xlu0 %v1669, 4
        %v1679 = vpop.permute.xlu0 %1678
        %1680 = vrot.lane.b32.xlu0 %v1657, 4
        %v1681 = vpop.permute.xlu0 %1680
        %1682 = vrot.lane.b32.xlu0 %v1670, 4
        %v1683 = vpop.permute.xlu0 %1682
        %1684 = vrot.lane.b32.xlu0 %v1658, 4
        %v1685 = vpop.permute.xlu0 %1684
        %1686 = vrot.lane.b32.xlu0 %v1671, 4
        %v1687 = vpop.permute.xlu0 %1686
        %1688 = vrot.lane.b32.xlu0 %v1659, 4
        %v1689 = vpop.permute.xlu0 %1688
        %1690 = vrot.lane.b32.xlu0 %v1672, 4
        %v1691 = vpop.permute.xlu0 %1690
        %1692 = vrot.lane.b32.xlu0 %v1660, 4
        %v1693 = vpop.permute.xlu0 %1692
        %1694 = vrot.lane.b32.xlu0 %v1673, 4
        %v1695 = vpop.permute.xlu0 %1694
        %1696 = vrot.lane.b32.xlu0 %v1661, 4
        %v1697 = vpop.permute.xlu0 %1696
        %vm1698 = vcmask 31744
        %v1699 = vsel %vm1698, %v1675, %v1677
        %v1700 = vsel %vm1698, %v1677, %v1679
        %v1701 = vsel %vm1698, %v1679, %v1681
        %v1702 = vsel %vm1698, %v1681, %v1683
        %v1703 = vsel %vm1698, %v1683, %v1685
        %v1704 = vsel %vm1698, %v1685, %v1687
        %v1705 = vsel %vm1698, %v1687, %v1689
        %v1706 = vsel %vm1698, %v1689, %v1691
        %v1707 = vsel %vm1698, %v1691, %v1693
        %v1708 = vsel %vm1698, %v1693, %v1695
        %v1709 = vsel %vm1698, %v1695, %v1697
        %1721 = vst [vmem:[#allocation2 + $0x318] sm:$0xf0] %v1699
        %1722 = vst [vmem:[#allocation2 + $0x320] sm:$0xf0] %v1700
        %1723 = vst [vmem:[#allocation2 + $0x328] sm:$0xf0] %v1701
        %1724 = vst [vmem:[#allocation2 + $0x330] sm:$0xf0] %v1702
        %1725 = vst [vmem:[#allocation2 + $0x338] sm:$0xf0] %v1703
        %1726 = vst [vmem:[#allocation2 + $0x340] sm:$0xf0] %v1704
        %1727 = vst [vmem:[#allocation2 + $0x348] sm:$0xf0] %v1705
        %1728 = vst [vmem:[#allocation2 + $0x350] sm:$0xf0] %v1706
        %1729 = vst [vmem:[#allocation2 + $0x358] sm:$0xf0] %v1707
        %1730 = vst [vmem:[#allocation2 + $0x360] sm:$0xf0] %v1708
        %1731 = vst.msk [vmem:[#allocation2 + $0x368] sm:$0xf0] %vm373, %v1709
        %v1732 = vld [vmem:[%s239 + $0x4] sm:$0xff]
        %v1733 = vld [vmem:[%s239 + $0xc] sm:$0xff]
        %v1734 = vld [vmem:[%s239 + $0x14] sm:$0xff]
        %v1735 = vld [vmem:[%s239 + $0x1c] sm:$0xff]
        %v1736 = vld [vmem:[%s239 + $0x24] sm:$0xff]
        %v1737 = vld [vmem:[%s239 + $0x2c] sm:$0xff]
        %v1744 = vcombine.high %v1732, %v1732
        %v1745 = vcombine.high %v1733, %v1733
        %v1746 = vcombine.high %v1734, %v1734
        %v1747 = vcombine.high %v1735, %v1735
        %v1748 = vcombine.high %v1736, %v1736
        %v1749 = vcombine.high %v1737, %v1737
        %1750 = vrot.lane.b32.xlu0 %v1732, 96
        %v1751 = vpop.permute.xlu0 %1750
        %1752 = vrot.lane.b32.xlu0 %v1744, 96
        %v1753 = vpop.permute.xlu0 %1752
        %1754 = vrot.lane.b32.xlu0 %v1733, 96
        %v1755 = vpop.permute.xlu0 %1754
        %1756 = vrot.lane.b32.xlu0 %v1745, 96
        %v1757 = vpop.permute.xlu0 %1756
        %1758 = vrot.lane.b32.xlu0 %v1734, 96
        %v1759 = vpop.permute.xlu0 %1758
        %1760 = vrot.lane.b32.xlu0 %v1746, 96
        %v1761 = vpop.permute.xlu0 %1760
        %1762 = vrot.lane.b32.xlu0 %v1735, 96
        %v1763 = vpop.permute.xlu0 %1762
        %1764 = vrot.lane.b32.xlu0 %v1747, 96
        %v1765 = vpop.permute.xlu0 %1764
        %1766 = vrot.lane.b32.xlu0 %v1736, 96
        %v1767 = vpop.permute.xlu0 %1766
        %1768 = vrot.lane.b32.xlu0 %v1748, 96
        %v1769 = vpop.permute.xlu0 %1768
        %1770 = vrot.lane.b32.xlu0 %v1737, 96
        %v1771 = vpop.permute.xlu0 %1770
        %1772 = vrot.lane.b32.xlu0 %v1749, 96
        %v1773 = vpop.permute.xlu0 %1772
        %vm1774 = vcmask 785408
        %v1775 = vsel %vm1774, %v1751, %v1753
        %v1776 = vsel %vm1774, %v1753, %v1755
        %v1777 = vsel %vm1774, %v1755, %v1757
        %v1778 = vsel %vm1774, %v1757, %v1759
        %v1779 = vsel %vm1774, %v1759, %v1761
        %v1780 = vsel %vm1774, %v1761, %v1763
        %v1781 = vsel %vm1774, %v1763, %v1765
        %v1782 = vsel %vm1774, %v1765, %v1767
        %v1783 = vsel %vm1774, %v1767, %v1769
        %v1784 = vsel %vm1774, %v1769, %v1771
        %v1785 = vsel %vm1774, %v1771, %v1773
        %1797 = vst [vmem:[#allocation2 + $0x370] sm:$0xf] %v1775
        %1798 = vst [vmem:[#allocation2 + $0x378] sm:$0xf] %v1776
        %1799 = vst [vmem:[#allocation2 + $0x380] sm:$0xf] %v1777
        %1800 = vst [vmem:[#allocation2 + $0x388] sm:$0xf] %v1778
        %1801 = vst [vmem:[#allocation2 + $0x390] sm:$0xf] %v1779
        %1802 = vst [vmem:[#allocation2 + $0x398] sm:$0xf] %v1780
        %1803 = vst [vmem:[#allocation2 + $0x3a0] sm:$0xf] %v1781
        %1804 = vst [vmem:[#allocation2 + $0x3a8] sm:$0xf] %v1782
        %1805 = vst [vmem:[#allocation2 + $0x3b0] sm:$0xf] %v1783
        %1806 = vst [vmem:[#allocation2 + $0x3b8] sm:$0xf] %v1784
        %1807 = vst.msk [vmem:[#allocation2 + $0x3c0] sm:$0xf] %vm299, %v1785
        %v1808 = vld [vmem:[%s239 + $0x4] sm:$0xff]
        %v1809 = vld [vmem:[%s239 + $0xc] sm:$0xff]
        %v1810 = vld [vmem:[%s239 + $0x14] sm:$0xff]
        %v1811 = vld [vmem:[%s239 + $0x1c] sm:$0xff]
        %v1812 = vld [vmem:[%s239 + $0x24] sm:$0xff]
        %v1813 = vld [vmem:[%s239 + $0x2c] sm:$0xff]
        %v1820 = vcombine.low %v1808, %v1808
        %v1821 = vcombine.low %v1809, %v1809
        %v1822 = vcombine.low %v1810, %v1810
        %v1823 = vcombine.low %v1811, %v1811
        %v1824 = vcombine.low %v1812, %v1812
        %v1825 = vcombine.low %v1813, %v1813
        %1826 = vrot.lane.b32.xlu0 %v1820, 95
        %v1827 = vpop.permute.xlu0 %1826
        %1828 = vrot.lane.b32.xlu0 %v1808, 95
        %v1829 = vpop.permute.xlu0 %1828
        %1830 = vrot.lane.b32.xlu0 %v1821, 95
        %v1831 = vpop.permute.xlu0 %1830
        %1832 = vrot.lane.b32.xlu0 %v1809, 95
        %v1833 = vpop.permute.xlu0 %1832
        %1834 = vrot.lane.b32.xlu0 %v1822, 95
        %v1835 = vpop.permute.xlu0 %1834
        %1836 = vrot.lane.b32.xlu0 %v1810, 95
        %v1837 = vpop.permute.xlu0 %1836
        %1838 = vrot.lane.b32.xlu0 %v1823, 95
        %v1839 = vpop.permute.xlu0 %1838
        %1840 = vrot.lane.b32.xlu0 %v1811, 95
        %v1841 = vpop.permute.xlu0 %1840
        %1842 = vrot.lane.b32.xlu0 %v1824, 95
        %v1843 = vpop.permute.xlu0 %1842
        %1844 = vrot.lane.b32.xlu0 %v1812, 95
        %v1845 = vpop.permute.xlu0 %1844
        %1846 = vrot.lane.b32.xlu0 %v1825, 95
        %v1847 = vpop.permute.xlu0 %1846
        %1848 = vrot.lane.b32.xlu0 %v1813, 95
        %v1849 = vpop.permute.xlu0 %1848
        %vm1850 = vcmask 777216
        %v1851 = vsel %vm1850, %v1827, %v1829
        %v1852 = vsel %vm1850, %v1829, %v1831
        %v1853 = vsel %vm1850, %v1831, %v1833
        %v1854 = vsel %vm1850, %v1833, %v1835
        %v1855 = vsel %vm1850, %v1835, %v1837
        %v1856 = vsel %vm1850, %v1837, %v1839
        %v1857 = vsel %vm1850, %v1839, %v1841
        %v1858 = vsel %vm1850, %v1841, %v1843
        %v1859 = vsel %vm1850, %v1843, %v1845
        %v1860 = vsel %vm1850, %v1845, %v1847
        %v1861 = vsel %vm1850, %v1847, %v1849
        %1873 = vst [vmem:[#allocation2 + $0x370] sm:$0xf0] %v1851
        %1874 = vst [vmem:[#allocation2 + $0x378] sm:$0xf0] %v1852
        %1875 = vst [vmem:[#allocation2 + $0x380] sm:$0xf0] %v1853
        %1876 = vst [vmem:[#allocation2 + $0x388] sm:$0xf0] %v1854
        %1877 = vst [vmem:[#allocation2 + $0x390] sm:$0xf0] %v1855
        %1878 = vst [vmem:[#allocation2 + $0x398] sm:$0xf0] %v1856
        %1879 = vst [vmem:[#allocation2 + $0x3a0] sm:$0xf0] %v1857
        %1880 = vst [vmem:[#allocation2 + $0x3a8] sm:$0xf0] %v1858
        %1881 = vst [vmem:[#allocation2 + $0x3b0] sm:$0xf0] %v1859
        %1882 = vst [vmem:[#allocation2 + $0x3b8] sm:$0xf0] %v1860
        %1883 = vst.msk [vmem:[#allocation2 + $0x3c0] sm:$0xf0] %vm373, %v1861
        %v1884 = vld [vmem:[%s239 + $0x4] sm:$0xff]
        %v1885 = vld [vmem:[%s239 + $0xc] sm:$0xff]
        %v1886 = vld [vmem:[%s239 + $0x14] sm:$0xff]
        %v1887 = vld [vmem:[%s239 + $0x1c] sm:$0xff]
        %v1888 = vld [vmem:[%s239 + $0x24] sm:$0xff]
        %v1889 = vld [vmem:[%s239 + $0x2c] sm:$0xff]
        %v1896 = vcombine.high %v1884, %v1884
        %v1897 = vcombine.high %v1885, %v1885
        %v1898 = vcombine.high %v1886, %v1886
        %v1899 = vcombine.high %v1887, %v1887
        %v1900 = vcombine.high %v1888, %v1888
        %v1901 = vcombine.high %v1889, %v1889
        %1902 = vrot.lane.b32.xlu0 %v1884, 94
        %v1903 = vpop.permute.xlu0 %1902
        %1904 = vrot.lane.b32.xlu0 %v1896, 94
        %v1905 = vpop.permute.xlu0 %1904
        %1906 = vrot.lane.b32.xlu0 %v1885, 94
        %v1907 = vpop.permute.xlu0 %1906
        %1908 = vrot.lane.b32.xlu0 %v1897, 94
        %v1909 = vpop.permute.xlu0 %1908
        %1910 = vrot.lane.b32.xlu0 %v1886, 94
        %v1911 = vpop.permute.xlu0 %1910
        %1912 = vrot.lane.b32.xlu0 %v1898, 94
        %v1913 = vpop.permute.xlu0 %1912
        %1914 = vrot.lane.b32.xlu0 %v1887, 94
        %v1915 = vpop.permute.xlu0 %1914
        %1916 = vrot.lane.b32.xlu0 %v1899, 94
        %v1917 = vpop.permute.xlu0 %1916
        %1918 = vrot.lane.b32.xlu0 %v1888, 94
        %v1919 = vpop.permute.xlu0 %1918
        %1920 = vrot.lane.b32.xlu0 %v1900, 94
        %v1921 = vpop.permute.xlu0 %1920
        %1922 = vrot.lane.b32.xlu0 %v1889, 94
        %v1923 = vpop.permute.xlu0 %1922
        %1924 = vrot.lane.b32.xlu0 %v1901, 94
        %v1925 = vpop.permute.xlu0 %1924
        %vm1926 = vcmask 769024
        %v1927 = vsel %vm1926, %v1903, %v1905
        %v1928 = vsel %vm1926, %v1905, %v1907
        %v1929 = vsel %vm1926, %v1907, %v1909
        %v1930 = vsel %vm1926, %v1909, %v1911
        %v1931 = vsel %vm1926, %v1911, %v1913
        %v1932 = vsel %vm1926, %v1913, %v1915
        %v1933 = vsel %vm1926, %v1915, %v1917
        %v1934 = vsel %vm1926, %v1917, %v1919
        %v1935 = vsel %vm1926, %v1919, %v1921
        %v1936 = vsel %vm1926, %v1921, %v1923
        %v1937 = vsel %vm1926, %v1923, %v1925
        %1949 = vst [vmem:[#allocation2 + $0x3c8] sm:$0xf] %v1927
        %1950 = vst [vmem:[#allocation2 + $0x3d0] sm:$0xf] %v1928
        %1951 = vst [vmem:[#allocation2 + $0x3d8] sm:$0xf] %v1929
        %1952 = vst [vmem:[#allocation2 + $0x3e0] sm:$0xf] %v1930
        %1953 = vst [vmem:[#allocation2 + $0x3e8] sm:$0xf] %v1931
        %1954 = vst [vmem:[#allocation2 + $0x3f0] sm:$0xf] %v1932
        %1955 = vst [vmem:[#allocation2 + $0x3f8] sm:$0xf] %v1933
        %1956 = vst [vmem:[#allocation2 + $0x400] sm:$0xf] %v1934
        %1957 = vst [vmem:[#allocation2 + $0x408] sm:$0xf] %v1935
        %1958 = vst [vmem:[#allocation2 + $0x410] sm:$0xf] %v1936
        %1959 = vst.msk [vmem:[#allocation2 + $0x418] sm:$0xf] %vm299, %v1937
        %v1960 = vld [vmem:[%s239 + $0x4] sm:$0xff]
        %v1961 = vld [vmem:[%s239 + $0xc] sm:$0xff]
        %v1962 = vld [vmem:[%s239 + $0x14] sm:$0xff]
        %v1963 = vld [vmem:[%s239 + $0x1c] sm:$0xff]
        %v1964 = vld [vmem:[%s239 + $0x24] sm:$0xff]
        %v1965 = vld [vmem:[%s239 + $0x2c] sm:$0xff]
        %v1972 = vcombine.low %v1960, %v1960
        %v1973 = vcombine.low %v1961, %v1961
        %v1974 = vcombine.low %v1962, %v1962
        %v1975 = vcombine.low %v1963, %v1963
        %v1976 = vcombine.low %v1964, %v1964
        %v1977 = vcombine.low %v1965, %v1965
        %1978 = vrot.lane.b32.xlu0 %v1972, 93
        %v1979 = vpop.permute.xlu0 %1978
        %1980 = vrot.lane.b32.xlu0 %v1960, 93
        %v1981 = vpop.permute.xlu0 %1980
        %1982 = vrot.lane.b32.xlu0 %v1973, 93
        %v1983 = vpop.permute.xlu0 %1982
        %1984 = vrot.lane.b32.xlu0 %v1961, 93
        %v1985 = vpop.permute.xlu0 %1984
        %1986 = vrot.lane.b32.xlu0 %v1974, 93
        %v1987 = vpop.permute.xlu0 %1986
        %1988 = vrot.lane.b32.xlu0 %v1962, 93
        %v1989 = vpop.permute.xlu0 %1988
        %1990 = vrot.lane.b32.xlu0 %v1975, 93
        %v1991 = vpop.permute.xlu0 %1990
        %1992 = vrot.lane.b32.xlu0 %v1963, 93
        %v1993 = vpop.permute.xlu0 %1992
        %1994 = vrot.lane.b32.xlu0 %v1976, 93
        %v1995 = vpop.permute.xlu0 %1994
        %1996 = vrot.lane.b32.xlu0 %v1964, 93
        %v1997 = vpop.permute.xlu0 %1996
        %1998 = vrot.lane.b32.xlu0 %v1977, 93
        %v1999 = vpop.permute.xlu0 %1998
        %2000 = vrot.lane.b32.xlu0 %v1965, 93
        %v2001 = vpop.permute.xlu0 %2000
        %vm2002 = vcmask 760832
        %v2003 = vsel %vm2002, %v1979, %v1981
        %v2004 = vsel %vm2002, %v1981, %v1983
        %v2005 = vsel %vm2002, %v1983, %v1985
        %v2006 = vsel %vm2002, %v1985, %v1987
        %v2007 = vsel %vm2002, %v1987, %v1989
        %v2008 = vsel %vm2002, %v1989, %v1991
        %v2009 = vsel %vm2002, %v1991, %v1993
        %v2010 = vsel %vm2002, %v1993, %v1995
        %v2011 = vsel %vm2002, %v1995, %v1997
        %v2012 = vsel %vm2002, %v1997, %v1999
        %v2013 = vsel %vm2002, %v1999, %v2001
        %2025 = vst [vmem:[#allocation2 + $0x3c8] sm:$0xf0] %v2003
        %2026 = vst [vmem:[#allocation2 + $0x3d0] sm:$0xf0] %v2004
        %2027 = vst [vmem:[#allocation2 + $0x3d8] sm:$0xf0] %v2005
        %2028 = vst [vmem:[#allocation2 + $0x3e0] sm:$0xf0] %v2006
        %2029 = vst [vmem:[#allocation2 + $0x3e8] sm:$0xf0] %v2007
        %2030 = vst [vmem:[#allocation2 + $0x3f0] sm:$0xf0] %v2008
        %2031 = vst [vmem:[#allocation2 + $0x3f8] sm:$0xf0] %v2009
        %2032 = vst [vmem:[#allocation2 + $0x400] sm:$0xf0] %v2010
        %2033 = vst [vmem:[#allocation2 + $0x408] sm:$0xf0] %v2011
        %2034 = vst [vmem:[#allocation2 + $0x410] sm:$0xf0] %v2012
        %2035 = vst.msk [vmem:[#allocation2 + $0x418] sm:$0xf0] %vm373, %v2013
        %v2036 = vld [vmem:[%s239 + $0x4] sm:$0xff]
        %v2037 = vld [vmem:[%s239 + $0xc] sm:$0xff]
        %v2038 = vld [vmem:[%s239 + $0x14] sm:$0xff]
        %v2039 = vld [vmem:[%s239 + $0x1c] sm:$0xff]
        %v2040 = vld [vmem:[%s239 + $0x24] sm:$0xff]
        %v2041 = vld [vmem:[%s239 + $0x2c] sm:$0xff]
        %v2048 = vcombine.high %v2036, %v2036
        %v2049 = vcombine.high %v2037, %v2037
        %v2050 = vcombine.high %v2038, %v2038
        %v2051 = vcombine.high %v2039, %v2039
        %v2052 = vcombine.high %v2040, %v2040
        %v2053 = vcombine.high %v2041, %v2041
        %2054 = vrot.lane.b32.xlu0 %v2036, 92
        %v2055 = vpop.permute.xlu0 %2054
        %2056 = vrot.lane.b32.xlu0 %v2048, 92
        %v2057 = vpop.permute.xlu0 %2056
        %2058 = vrot.lane.b32.xlu0 %v2037, 92
        %v2059 = vpop.permute.xlu0 %2058
        %2060 = vrot.lane.b32.xlu0 %v2049, 92
        %v2061 = vpop.permute.xlu0 %2060
        %2062 = vrot.lane.b32.xlu0 %v2038, 92
        %v2063 = vpop.permute.xlu0 %2062
        %2064 = vrot.lane.b32.xlu0 %v2050, 92
        %v2065 = vpop.permute.xlu0 %2064
        %2066 = vrot.lane.b32.xlu0 %v2039, 92
        %v2067 = vpop.permute.xlu0 %2066
        %2068 = vrot.lane.b32.xlu0 %v2051, 92
        %v2069 = vpop.permute.xlu0 %2068
        %2070 = vrot.lane.b32.xlu0 %v2040, 92
        %v2071 = vpop.permute.xlu0 %2070
        %2072 = vrot.lane.b32.xlu0 %v2052, 92
        %v2073 = vpop.permute.xlu0 %2072
        %2074 = vrot.lane.b32.xlu0 %v2041, 92
        %v2075 = vpop.permute.xlu0 %2074
        %2076 = vrot.lane.b32.xlu0 %v2053, 92
        %v2077 = vpop.permute.xlu0 %2076
        %vm2078 = vcmask 752640
        %v2079 = vsel %vm2078, %v2055, %v2057
        %v2080 = vsel %vm2078, %v2057, %v2059
        %v2081 = vsel %vm2078, %v2059, %v2061
        %v2082 = vsel %vm2078, %v2061, %v2063
        %v2083 = vsel %vm2078, %v2063, %v2065
        %v2084 = vsel %vm2078, %v2065, %v2067
        %v2085 = vsel %vm2078, %v2067, %v2069
        %v2086 = vsel %vm2078, %v2069, %v2071
        %v2087 = vsel %vm2078, %v2071, %v2073
        %v2088 = vsel %vm2078, %v2073, %v2075
        %v2089 = vsel %vm2078, %v2075, %v2077
        %2101 = vst [vmem:[#allocation2 + $0x420] sm:$0xf] %v2079
        %2102 = vst [vmem:[#allocation2 + $0x428] sm:$0xf] %v2080
        %2103 = vst [vmem:[#allocation2 + $0x430] sm:$0xf] %v2081
        %2104 = vst [vmem:[#allocation2 + $0x438] sm:$0xf] %v2082
        %2105 = vst [vmem:[#allocation2 + $0x440] sm:$0xf] %v2083
        %2106 = vst [vmem:[#allocation2 + $0x448] sm:$0xf] %v2084
        %2107 = vst [vmem:[#allocation2 + $0x450] sm:$0xf] %v2085
        %2108 = vst [vmem:[#allocation2 + $0x458] sm:$0xf] %v2086
        %2109 = vst [vmem:[#allocation2 + $0x460] sm:$0xf] %v2087
        %2110 = vst [vmem:[#allocation2 + $0x468] sm:$0xf] %v2088
        %2111 = vst.msk [vmem:[#allocation2 + $0x470] sm:$0xf] %vm299, %v2089
        %v2112 = vld [vmem:[%s1] sm:$0xf]
        %v2113 = vld [vmem:[#allocation2] sm:$0xff]
        %v2114 = vld [vmem:[#allocation2 + $0x8] sm:$0xff]
        %v2115 = vld [vmem:[#allocation2 + $0x10] sm:$0xff]
        %v2116 = vld [vmem:[#allocation2 + $0x18] sm:$0xff]
        %v2117 = vld [vmem:[#allocation2 + $0x20] sm:$0xff]
        %v2118 = vld [vmem:[#allocation2 + $0x28] sm:$0xff]
        %v2119 = vld [vmem:[#allocation2 + $0x30] sm:$0xff]
        %v2120 = vld [vmem:[#allocation2 + $0x38] sm:$0xff]
        %v2121 = vld [vmem:[#allocation2 + $0x40] sm:$0xff]
        %v2122 = vld [vmem:[#allocation2 + $0x48] sm:$0xff]
        %v2123 = vld [vmem:[#allocation2 + $0x50] sm:$0xff]
        %v2124 = vld [vmem:[#allocation2 + $0x58] sm:$0xff]
        %v2125 = vld [vmem:[#allocation2 + $0x60] sm:$0xff]
        %v2126 = vld [vmem:[#allocation2 + $0x68] sm:$0xff]
        %v2127 = vld [vmem:[#allocation2 + $0x70] sm:$0xff]
        %v2128 = vld [vmem:[#allocation2 + $0x78] sm:$0xff]
        %v2129 = vld [vmem:[#allocation2 + $0x80] sm:$0xff]
        %v2130 = vld [vmem:[#allocation2 + $0x88] sm:$0xff]
        %v2131 = vld [vmem:[#allocation2 + $0x90] sm:$0xff]
        %v2132 = vld [vmem:[#allocation2 + $0x98] sm:$0xff]
        %v2133 = vld [vmem:[#allocation2 + $0xa0] sm:$0xff]
        %v2134 = vld [vmem:[#allocation2 + $0xa8] sm:$0xff]
        %v2135 = vld [vmem:[#allocation2 + $0xb0] sm:$0xff]
        %v2136 = vld [vmem:[#allocation2 + $0xb8] sm:$0xff]
        %v2137 = vld [vmem:[#allocation2 + $0xc0] sm:$0xff]
        %v2138 = vld [vmem:[#allocation2 + $0xc8] sm:$0xff]
        %v2139 = vld [vmem:[#allocation2 + $0xd0] sm:$0xff]
        %v2140 = vld [vmem:[#allocation2 + $0xd8] sm:$0xff]
        %v2141 = vld [vmem:[#allocation2 + $0xe0] sm:$0xff]
        %v2142 = vld [vmem:[#allocation2 + $0xe8] sm:$0xff]
        %v2143 = vld [vmem:[#allocation2 + $0xf0] sm:$0xff]
        %v2144 = vld [vmem:[#allocation2 + $0xf8] sm:$0xff]
        %v2145 = vld [vmem:[#allocation2 + $0x100] sm:$0xff]
        %v2146 = vld [vmem:[#allocation2 + $0x108] sm:$0xff]
        %v2147 = vld [vmem:[#allocation2 + $0x110] sm:$0xff]
        %v2148 = vld [vmem:[#allocation2 + $0x118] sm:$0xff]
        %v2149 = vld [vmem:[#allocation2 + $0x120] sm:$0xff]
        %v2150 = vld [vmem:[#allocation2 + $0x128] sm:$0xff]
        %v2151 = vld [vmem:[#allocation2 + $0x130] sm:$0xff]
        %v2152 = vld [vmem:[#allocation2 + $0x138] sm:$0xff]
        %v2153 = vld [vmem:[#allocation2 + $0x140] sm:$0xff]
        %v2154 = vld [vmem:[#allocation2 + $0x148] sm:$0xff]
        %v2155 = vld [vmem:[#allocation2 + $0x150] sm:$0xff]
        %v2156 = vld [vmem:[#allocation2 + $0x158] sm:$0xff]
        %v2157 = vld [vmem:[#allocation2 + $0x160] sm:$0xff]
        %v2158 = vld [vmem:[#allocation2 + $0x168] sm:$0xff]
        %v2159 = vld [vmem:[#allocation2 + $0x170] sm:$0xff]
        %v2160 = vld [vmem:[#allocation2 + $0x178] sm:$0xff]
        %v2161 = vld [vmem:[#allocation2 + $0x180] sm:$0xff]
        %v2162 = vld [vmem:[#allocation2 + $0x188] sm:$0xff]
        %v2163 = vld [vmem:[#allocation2 + $0x190] sm:$0xff]
        %v2164 = vld [vmem:[#allocation2 + $0x198] sm:$0xff]
        %v2165 = vld [vmem:[#allocation2 + $0x1a0] sm:$0xff]
        %v2166 = vld [vmem:[#allocation2 + $0x1a8] sm:$0xff]
        %v2167 = vld [vmem:[#allocation2 + $0x1b0] sm:$0xff]
        %v2168 = vld [vmem:[#allocation2 + $0x1b8] sm:$0xff]
        %v2169 = vld [vmem:[#allocation2 + $0x1c0] sm:$0xff]
        %v2170 = vld [vmem:[#allocation2 + $0x1c8] sm:$0xff]
        %v2171 = vld [vmem:[#allocation2 + $0x1d0] sm:$0xff]
        %v2172 = vld [vmem:[#allocation2 + $0x1d8] sm:$0xff]
        %v2173 = vld [vmem:[#allocation2 + $0x1e0] sm:$0xff]
        %v2174 = vld [vmem:[#allocation2 + $0x1e8] sm:$0xff]
        %v2175 = vld [vmem:[#allocation2 + $0x1f0] sm:$0xff]
        %v2176 = vld [vmem:[#allocation2 + $0x1f8] sm:$0xff]
        %v2177 = vld [vmem:[#allocation2 + $0x200] sm:$0xff]
        %v2178 = vld [vmem:[#allocation2 + $0x208] sm:$0xff]
        %v2179 = vld [vmem:[#allocation2 + $0x210] sm:$0xff]
        %v2180 = vld [vmem:[#allocation2 + $0x218] sm:$0xff]
        %v2181 = vld [vmem:[#allocation2 + $0x220] sm:$0xff]
        %v2182 = vld [vmem:[#allocation2 + $0x228] sm:$0xff]
        %v2183 = vld [vmem:[#allocation2 + $0x230] sm:$0xff]
        %v2184 = vld [vmem:[#allocation2 + $0x238] sm:$0xff]
        %v2185 = vld [vmem:[#allocation2 + $0x240] sm:$0xff]
        %v2186 = vld [vmem:[#allocation2 + $0x248] sm:$0xff]
        %v2187 = vld [vmem:[#allocation2 + $0x250] sm:$0xff]
        %v2188 = vld [vmem:[#allocation2 + $0x258] sm:$0xff]
        %v2189 = vld [vmem:[#allocation2 + $0x260] sm:$0xff]
        %v2190 = vld [vmem:[#allocation2 + $0x268] sm:$0xff]
        %v2191 = vld [vmem:[#allocation2 + $0x270] sm:$0xff]
        %v2192 = vld [vmem:[#allocation2 + $0x278] sm:$0xff]
        %v2193 = vld [vmem:[#allocation2 + $0x280] sm:$0xff]
        %v2194 = vld [vmem:[#allocation2 + $0x288] sm:$0xff]
        %v2195 = vld [vmem:[#allocation2 + $0x290] sm:$0xff]
        %v2196 = vld [vmem:[#allocation2 + $0x298] sm:$0xff]
        %v2197 = vld [vmem:[#allocation2 + $0x2a0] sm:$0xff]
        %v2198 = vld [vmem:[#allocation2 + $0x2a8] sm:$0xff]
        %v2199 = vld [vmem:[#allocation2 + $0x2b0] sm:$0xff]
        %v2200 = vld [vmem:[#allocation2 + $0x2b8] sm:$0xff]
        %v2201 = vld [vmem:[#allocation2 + $0x2c0] sm:$0xff]
        %v2202 = vld [vmem:[#allocation2 + $0x2c8] sm:$0xff]
        %v2203 = vld [vmem:[#allocation2 + $0x2d0] sm:$0xff]
        %v2204 = vld [vmem:[#allocation2 + $0x2d8] sm:$0xff]
        %v2205 = vld [vmem:[#allocation2 + $0x2e0] sm:$0xff]
        %v2206 = vld [vmem:[#allocation2 + $0x2e8] sm:$0xff]
        %v2207 = vld [vmem:[#allocation2 + $0x2f0] sm:$0xff]
        %v2208 = vld [vmem:[#allocation2 + $0x2f8] sm:$0xff]
        %v2209 = vld [vmem:[#allocation2 + $0x300] sm:$0xff]
        %v2210 = vld [vmem:[#allocation2 + $0x308] sm:$0xff]
        %v2211 = vld [vmem:[#allocation2 + $0x310] sm:$0xff]
        %v2212 = vld [vmem:[#allocation2 + $0x318] sm:$0xff]
        %v2213 = vld [vmem:[#allocation2 + $0x320] sm:$0xff]
        %v2214 = vld [vmem:[#allocation2 + $0x328] sm:$0xff]
        %v2215 = vld [vmem:[#allocation2 + $0x330] sm:$0xff]
        %v2216 = vld [vmem:[#allocation2 + $0x338] sm:$0xff]
        %v2217 = vld [vmem:[#allocation2 + $0x340] sm:$0xff]
        %v2218 = vld [vmem:[#allocation2 + $0x348] sm:$0xff]
        %v2219 = vld [vmem:[#allocation2 + $0x350] sm:$0xff]
        %v2220 = vld [vmem:[#allocation2 + $0x358] sm:$0xff]
        %v2221 = vld [vmem:[#allocation2 + $0x360] sm:$0xff]
        %v2222 = vld [vmem:[#allocation2 + $0x368] sm:$0xff]
        %v2223 = vld [vmem:[#allocation2 + $0x370] sm:$0xff]
        %v2224 = vld [vmem:[#allocation2 + $0x378] sm:$0xff]
        %v2225 = vld [vmem:[#allocation2 + $0x380] sm:$0xff]
        %v2226 = vld [vmem:[#allocation2 + $0x388] sm:$0xff]
        %v2227 = vld [vmem:[#allocation2 + $0x390] sm:$0xff]
        %v2228 = vld [vmem:[#allocation2 + $0x398] sm:$0xff]
        %v2229 = vld [vmem:[#allocation2 + $0x3a0] sm:$0xff]
        %v2230 = vld [vmem:[#allocation2 + $0x3a8] sm:$0xff]
        %v2231 = vld [vmem:[#allocation2 + $0x3b0] sm:$0xff]
        %v2232 = vld [vmem:[#allocation2 + $0x3b8] sm:$0xff]
        %v2233 = vld [vmem:[#allocation2 + $0x3c0] sm:$0xff]
        %v2234 = vld [vmem:[#allocation2 + $0x3c8] sm:$0xff]
        %v2235 = vld [vmem:[#allocation2 + $0x3d0] sm:$0xff]
        %v2236 = vld [vmem:[#allocation2 + $0x3d8] sm:$0xff]
        %v2237 = vld [vmem:[#allocation2 + $0x3e0] sm:$0xff]
        %v2238 = vld [vmem:[#allocation2 + $0x3e8] sm:$0xff]
        %v2239 = vld [vmem:[#allocation2 + $0x3f0] sm:$0xff]
        %v2240 = vld [vmem:[#allocation2 + $0x3f8] sm:$0xff]
        %v2241 = vld [vmem:[#allocation2 + $0x400] sm:$0xff]
        %v2242 = vld [vmem:[#allocation2 + $0x408] sm:$0xff]
        %v2243 = vld [vmem:[#allocation2 + $0x410] sm:$0xff]
        %v2244 = vld [vmem:[#allocation2 + $0x418] sm:$0xff]
        %v2245 = vld [vmem:[#allocation2 + $0x420] sm:$0xf]
        %v2246 = vld [vmem:[#allocation2 + $0x428] sm:$0xf]
        %v2247 = vld [vmem:[#allocation2 + $0x430] sm:$0xf]
        %v2248 = vld [vmem:[#allocation2 + $0x438] sm:$0xf]
        %v2249 = vld [vmem:[#allocation2 + $0x440] sm:$0xf]
        %v2250 = vld [vmem:[#allocation2 + $0x448] sm:$0xf]
        %v2251 = vld [vmem:[#allocation2 + $0x450] sm:$0xf]
        %v2252 = vld [vmem:[#allocation2 + $0x458] sm:$0xf]
        %v2253 = vld [vmem:[#allocation2 + $0x460] sm:$0xf]
        %v2254 = vld [vmem:[#allocation2 + $0x468] sm:$0xf]
        %v2255 = vld [vmem:[#allocation2 + $0x470] sm:$0xf]
        %v2256 = vld [vmem:[%s2] sm:$0xf]
        %2258 = vset.pattern.permute.xlu0 0
        %2259 = vperm.xlu0 %2258, %v2256
        %v2260 = vpop.permute.xlu0 %2259
        %vm2262 = vcmask 818176
        %v2264 = vsel %vm2262, %v2112, 0
        %vm2266 = vcmask 1043456
        %v2268 = vsel %vm2266, %v2245, 0
        %v2271 = vsel %vm2266, %v2246, 0
        %v2274 = vsel %vm2266, %v2247, 0
        %v2277 = vsel %vm2266, %v2248, 0
        %v2280 = vsel %vm2266, %v2249, 0
        %v2283 = vsel %vm2266, %v2250, 0
        %v2286 = vsel %vm2266, %v2251, 0
        %v2289 = vsel %vm2266, %v2252, 0
        %v2292 = vsel %vm2266, %v2253, 0
        %v2295 = vsel %vm2266, %v2254, 0
        %v2298 = vsel %vm2266, %v2255, 0
        %2300 = vmatprep.subr.mxu0 %v2114
        %2301 = vmatpush1.msra.mxu0 %v2113
        %2302 = vmatprep.subr.mxu0 %v2125
        %2303 = vmatpush1.msra.mxu0 %v2124
        %2304 = vmatprep.subr.mxu0 %v2136
        %2305 = vmatpush1.msra.mxu0 %v2135
        %2306 = vmatprep.subr.mxu0 %v2147
        %2307 = vmatpush1.msra.mxu0 %v2146
        %2308 = vmatprep.subr.mxu0 %v2158
        %2309 = vmatpush1.msra.mxu0 %v2157
        %2310 = vmatprep.subr.mxu0 %v2169
        %2311 = vmatpush1.msra.mxu0 %v2168
        %2312 = vmatprep.subr.mxu0 %v2180
        %2313 = vmatpush1.msra.mxu0 %v2179
        %2314 = vmatprep.subr.mxu0 %v2191
        %2315 = vmatpush1.msra.mxu0 %v2190
        %2316 = vmatprep.subr.mxu0 %v2202
        %2317 = vmatpush1.msra.mxu0 %v2201
        %2318 = vmatprep.subr.mxu0 %v2213
        %2319 = vmatpush1.msra.mxu0 %v2212
        %2320 = vmatprep.subr.mxu0 %v2224
        %2321 = vmatpush1.msra.mxu0 %v2223
        %2322 = vmatprep.subr.mxu0 %v2235
        %2323 = vmatpush1.msra.mxu0 %v2234
        %2324 = vmatprep.subr.mxu0 %v2271
        %2325 = vmatpush1.msra.mxu0 %v2268
        %2326 = vmatprep.subr.mxu0 0.0
        %2327 = vmatpush1.msra.mxu0 0.0
        %2328 = vmatprep.subr.mxu0 0.0
        %2329 = vmatpush1.msra.mxu0 0.0
        %2330 = vmatprep.subr.mxu0 0.0
        %2331 = vmatpush1.msra.mxu0 0.0
        %2332 = vmatprep.subr.mxu0 0.0
        %2333 = vmatpush1.msra.mxu0 0.0
        %2334 = vmatprep.subr.mxu0 0.0
        %2335 = vmatpush1.msra.mxu0 0.0
        %2336 = vmatprep.subr.mxu0 0.0
        %2337 = vmatpush1.msra.mxu0 0.0
        %2338 = vmatprep.subr.mxu0 0.0
        %2339 = vmatpush1.msra.mxu0 0.0
        %2340 = vmatprep.subr.mxu0 0.0
        %2341 = vmatpush1.msra.mxu0 0.0
        %2342 = vmatprep.subr.mxu0 0.0
        %2343 = vmatpush1.msra.mxu0 0.0
        %2344 = vmatprep.subr.mxu0 0.0
        %2345 = vmatpush1.msra.mxu0 0.0
        %2346 = vmatprep.subr.mxu0 0.0
        %2347 = vmatpush1.msra.mxu0 0.0
        %2348 = vmatprep.subr.mxu0 0.0
        %2349 = vmatpush1.msra.mxu0 0.0
        %2350 = vmatprep.subr.mxu0 0.0
        %2351 = vmatpush1.msra.mxu0 0.0
        %2352 = vmatprep.subr.mxu0 0.0
        %2353 = vmatpush1.msra.mxu0 0.0
        %2354 = vmatprep.subr.mxu0 0.0
        %2355 = vmatpush1.msra.mxu0 0.0
        %2356 = vmatprep.subr.mxu0 0.0
        %2357 = vmatpush1.msra.mxu0 0.0
        %2358 = vmatprep.subr.mxu0 0.0
        %2359 = vmatpush1.msra.mxu0 0.0
        %2360 = vmatprep.subr.mxu0 0.0
        %2361 = vmatpush1.msra.mxu0 0.0
        %2362 = vmatprep.subr.mxu0 0.0
        %2363 = vmatpush1.msra.mxu0 0.0
        %2364 = vmatprep.mubr.f32.mxu0 0.0
        %2365 = vmatmul.mubr.f32.gmra.mrb[0].mxu0 %v2264
        %v2366 = vpop.f32.mrb[0].mxu0
        %v2367 = vadd.f32 %v2260, %v2366
        %v2368 = vpop.f32.mrb[0].mxu0
        %v2369 = vadd.f32 %v2260, %v2368
        %2370 = vdwg.mxu0
        %2371 = vmatprep.subr.mxu0 %v2116
        %2372 = vmatpush1.msra.mxu0 %v2115
        %2373 = vmatprep.subr.mxu0 %v2127
        %2374 = vmatpush1.msra.mxu0 %v2126
        %2375 = vmatprep.subr.mxu0 %v2138
        %2376 = vmatpush1.msra.mxu0 %v2137
        %2377 = vmatprep.subr.mxu0 %v2149
        %2378 = vmatpush1.msra.mxu0 %v2148
        %2379 = vmatprep.subr.mxu0 %v2160
        %2380 = vmatpush1.msra.mxu0 %v2159
        %2381 = vmatprep.subr.mxu0 %v2171
        %2382 = vmatpush1.msra.mxu0 %v2170
        %2383 = vmatprep.subr.mxu0 %v2182
        %2384 = vmatpush1.msra.mxu0 %v2181
        %2385 = vmatprep.subr.mxu0 %v2193
        %2386 = vmatpush1.msra.mxu0 %v2192
        %2387 = vmatprep.subr.mxu0 %v2204
        %2388 = vmatpush1.msra.mxu0 %v2203
        %2389 = vmatprep.subr.mxu0 %v2215
        %2390 = vmatpush1.msra.mxu0 %v2214
        %2391 = vmatprep.subr.mxu0 %v2226
        %2392 = vmatpush1.msra.mxu0 %v2225
        %2393 = vmatprep.subr.mxu0 %v2237
        %2394 = vmatpush1.msra.mxu0 %v2236
        %2395 = vmatprep.subr.mxu0 %v2277
        %2396 = vmatpush1.msra.mxu0 %v2274
        %2397 = vmatprep.subr.mxu0 0.0
        %2398 = vmatpush1.msra.mxu0 0.0
        %2399 = vmatprep.subr.mxu0 0.0
        %2400 = vmatpush1.msra.mxu0 0.0
        %2401 = vmatprep.subr.mxu0 0.0
        %2402 = vmatpush1.msra.mxu0 0.0
        %2403 = vmatprep.subr.mxu0 0.0
        %2404 = vmatpush1.msra.mxu0 0.0
        %2405 = vmatprep.subr.mxu0 0.0
        %2406 = vmatpush1.msra.mxu0 0.0
        %2407 = vmatprep.subr.mxu0 0.0
        %2408 = vmatpush1.msra.mxu0 0.0
        %2409 = vmatprep.subr.mxu0 0.0
        %2410 = vmatpush1.msra.mxu0 0.0
        %2411 = vmatprep.subr.mxu0 0.0
        %2412 = vmatpush1.msra.mxu0 0.0
        %2413 = vmatprep.subr.mxu0 0.0
        %2414 = vmatpush1.msra.mxu0 0.0
        %2415 = vmatprep.subr.mxu0 0.0
        %2416 = vmatpush1.msra.mxu0 0.0
        %2417 = vmatprep.subr.mxu0 0.0
        %2418 = vmatpush1.msra.mxu0 0.0
        %2419 = vmatprep.subr.mxu0 0.0
        %2420 = vmatpush1.msra.mxu0 0.0
        %2421 = vmatprep.subr.mxu0 0.0
        %2422 = vmatpush1.msra.mxu0 0.0
        %2423 = vmatprep.subr.mxu0 0.0
        %2424 = vmatpush1.msra.mxu0 0.0
        %2425 = vmatprep.subr.mxu0 0.0
        %2426 = vmatpush1.msra.mxu0 0.0
        %2427 = vmatprep.subr.mxu0 0.0
        %2428 = vmatpush1.msra.mxu0 0.0
        %2429 = vmatprep.subr.mxu0 0.0
        %2430 = vmatpush1.msra.mxu0 0.0
        %2431 = vmatprep.subr.mxu0 0.0
        %2432 = vmatpush1.msra.mxu0 0.0
        %2433 = vmatprep.subr.mxu0 0.0
        %2434 = vmatpush1.msra.mxu0 0.0
        %2435 = vmatprep.mubr.f32.mxu0 0.0
        %2436 = vmatmul.mubr.f32.gmra.mrb[0].mxu0 %v2264
        %v2437 = vpop.f32.mrb[0].mxu0
        %v2438 = vadd.f32 %v2260, %v2437
        %v2439 = vpop.f32.mrb[0].mxu0
        %v2440 = vadd.f32 %v2260, %v2439
        %2441 = vdwg.mxu0
        %2442 = vmatprep.subr.mxu0 %v2118
        %2443 = vmatpush1.msra.mxu0 %v2117
        %2444 = vmatprep.subr.mxu0 %v2129
        %2445 = vmatpush1.msra.mxu0 %v2128
        %2446 = vmatprep.subr.mxu0 %v2140
        %2447 = vmatpush1.msra.mxu0 %v2139
        %2448 = vmatprep.subr.mxu0 %v2151
        %2449 = vmatpush1.msra.mxu0 %v2150
        %2450 = vmatprep.subr.mxu0 %v2162
        %2451 = vmatpush1.msra.mxu0 %v2161
        %2452 = vmatprep.subr.mxu0 %v2173
        %2453 = vmatpush1.msra.mxu0 %v2172
        %2454 = vmatprep.subr.mxu0 %v2184
        %2455 = vmatpush1.msra.mxu0 %v2183
        %2456 = vmatprep.subr.mxu0 %v2195
        %2457 = vmatpush1.msra.mxu0 %v2194
        %2458 = vmatprep.subr.mxu0 %v2206
        %2459 = vmatpush1.msra.mxu0 %v2205
        %2460 = vmatprep.subr.mxu0 %v2217
        %2461 = vmatpush1.msra.mxu0 %v2216
        %2462 = vmatprep.subr.mxu0 %v2228
        %2463 = vmatpush1.msra.mxu0 %v2227
        %2464 = vmatprep.subr.mxu0 %v2239
        %2465 = vmatpush1.msra.mxu0 %v2238
        %2466 = vmatprep.subr.mxu0 %v2283
        %2467 = vmatpush1.msra.mxu0 %v2280
        %2468 = vmatprep.subr.mxu0 0.0
        %2469 = vmatpush1.msra.mxu0 0.0
        %2470 = vmatprep.subr.mxu0 0.0
        %2471 = vmatpush1.msra.mxu0 0.0
        %2472 = vmatprep.subr.mxu0 0.0
        %2473 = vmatpush1.msra.mxu0 0.0
        %2474 = vmatprep.subr.mxu0 0.0
        %2475 = vmatpush1.msra.mxu0 0.0
        %2476 = vmatprep.subr.mxu0 0.0
        %2477 = vmatpush1.msra.mxu0 0.0
        %2478 = vmatprep.subr.mxu0 0.0
        %2479 = vmatpush1.msra.mxu0 0.0
        %2480 = vmatprep.subr.mxu0 0.0
        %2481 = vmatpush1.msra.mxu0 0.0
        %2482 = vmatprep.subr.mxu0 0.0
        %2483 = vmatpush1.msra.mxu0 0.0
        %2484 = vmatprep.subr.mxu0 0.0
        %2485 = vmatpush1.msra.mxu0 0.0
        %2486 = vmatprep.subr.mxu0 0.0
        %2487 = vmatpush1.msra.mxu0 0.0
        %2488 = vmatprep.subr.mxu0 0.0
        %2489 = vmatpush1.msra.mxu0 0.0
        %2490 = vmatprep.subr.mxu0 0.0
        %2491 = vmatpush1.msra.mxu0 0.0
        %2492 = vmatprep.subr.mxu0 0.0
        %2493 = vmatpush1.msra.mxu0 0.0
        %2494 = vmatprep.subr.mxu0 0.0
        %2495 = vmatpush1.msra.mxu0 0.0
        %2496 = vmatprep.subr.mxu0 0.0
        %2497 = vmatpush1.msra.mxu0 0.0
        %2498 = vmatprep.subr.mxu0 0.0
        %2499 = vmatpush1.msra.mxu0 0.0
        %2500 = vmatprep.subr.mxu0 0.0
        %2501 = vmatpush1.msra.mxu0 0.0
        %2502 = vmatprep.subr.mxu0 0.0
        %2503 = vmatpush1.msra.mxu0 0.0
        %2504 = vmatprep.subr.mxu0 0.0
        %2505 = vmatpush1.msra.mxu0 0.0
        %2506 = vmatprep.mubr.f32.mxu0 0.0
        %2507 = vmatmul.mubr.f32.gmra.mrb[0].mxu0 %v2264
        %v2508 = vpop.f32.mrb[0].mxu0
        %v2509 = vadd.f32 %v2260, %v2508
        %v2510 = vpop.f32.mrb[0].mxu0
        %v2511 = vadd.f32 %v2260, %v2510
        %2512 = vdwg.mxu0
        %2513 = vmatprep.subr.mxu0 %v2120
        %2514 = vmatpush1.msra.mxu0 %v2119
        %2515 = vmatprep.subr.mxu0 %v2131
        %2516 = vmatpush1.msra.mxu0 %v2130
        %2517 = vmatprep.subr.mxu0 %v2142
        %2518 = vmatpush1.msra.mxu0 %v2141
        %2519 = vmatprep.subr.mxu0 %v2153
        %2520 = vmatpush1.msra.mxu0 %v2152
        %2521 = vmatprep.subr.mxu0 %v2164
        %2522 = vmatpush1.msra.mxu0 %v2163
        %2523 = vmatprep.subr.mxu0 %v2175
        %2524 = vmatpush1.msra.mxu0 %v2174
        %2525 = vmatprep.subr.mxu0 %v2186
        %2526 = vmatpush1.msra.mxu0 %v2185
        %2527 = vmatprep.subr.mxu0 %v2197
        %2528 = vmatpush1.msra.mxu0 %v2196
        %2529 = vmatprep.subr.mxu0 %v2208
        %2530 = vmatpush1.msra.mxu0 %v2207
        %2531 = vmatprep.subr.mxu0 %v2219
        %2532 = vmatpush1.msra.mxu0 %v2218
        %2533 = vmatprep.subr.mxu0 %v2230
        %2534 = vmatpush1.msra.mxu0 %v2229
        %2535 = vmatprep.subr.mxu0 %v2241
        %2536 = vmatpush1.msra.mxu0 %v2240
        %2537 = vmatprep.subr.mxu0 %v2289
        %2538 = vmatpush1.msra.mxu0 %v2286
        %2539 = vmatprep.subr.mxu0 0.0
        %2540 = vmatpush1.msra.mxu0 0.0
        %2541 = vmatprep.subr.mxu0 0.0
        %2542 = vmatpush1.msra.mxu0 0.0
        %2543 = vmatprep.subr.mxu0 0.0
        %2544 = vmatpush1.msra.mxu0 0.0
        %2545 = vmatprep.subr.mxu0 0.0
        %2546 = vmatpush1.msra.mxu0 0.0
        %2547 = vmatprep.subr.mxu0 0.0
        %2548 = vmatpush1.msra.mxu0 0.0
        %2549 = vmatprep.subr.mxu0 0.0
        %2550 = vmatpush1.msra.mxu0 0.0
        %2551 = vmatprep.subr.mxu0 0.0
        %2552 = vmatpush1.msra.mxu0 0.0
        %2553 = vmatprep.subr.mxu0 0.0
        %2554 = vmatpush1.msra.mxu0 0.0
        %2555 = vmatprep.subr.mxu0 0.0
        %2556 = vmatpush1.msra.mxu0 0.0
        %2557 = vmatprep.subr.mxu0 0.0
        %2558 = vmatpush1.msra.mxu0 0.0
        %2559 = vmatprep.subr.mxu0 0.0
        %2560 = vmatpush1.msra.mxu0 0.0
        %2561 = vmatprep.subr.mxu0 0.0
        %2562 = vmatpush1.msra.mxu0 0.0
        %2563 = vmatprep.subr.mxu0 0.0
        %2564 = vmatpush1.msra.mxu0 0.0
        %2565 = vmatprep.subr.mxu0 0.0
        %2566 = vmatpush1.msra.mxu0 0.0
        %2567 = vmatprep.subr.mxu0 0.0
        %2568 = vmatpush1.msra.mxu0 0.0
        %2569 = vmatprep.subr.mxu0 0.0
        %2570 = vmatpush1.msra.mxu0 0.0
        %2571 = vmatprep.subr.mxu0 0.0
        %2572 = vmatpush1.msra.mxu0 0.0
        %2573 = vmatprep.subr.mxu0 0.0
        %2574 = vmatpush1.msra.mxu0 0.0
        %2575 = vmatprep.subr.mxu0 0.0
        %2576 = vmatpush1.msra.mxu0 0.0
        %2577 = vmatprep.mubr.f32.mxu0 0.0
        %2578 = vmatmul.mubr.f32.gmra.mrb[0].mxu0 %v2264
        %v2579 = vpop.f32.mrb[0].mxu0
        %v2580 = vadd.f32 %v2260, %v2579
        %v2581 = vpop.f32.mrb[0].mxu0
        %v2582 = vadd.f32 %v2260, %v2581
        %2583 = vdwg.mxu0
        %2584 = vmatprep.subr.mxu0 %v2122
        %2585 = vmatpush1.msra.mxu0 %v2121
        %2586 = vmatprep.subr.mxu0 %v2133
        %2587 = vmatpush1.msra.mxu0 %v2132
        %2588 = vmatprep.subr.mxu0 %v2144
        %2589 = vmatpush1.msra.mxu0 %v2143
        %2590 = vmatprep.subr.mxu0 %v2155
        %2591 = vmatpush1.msra.mxu0 %v2154
        %2592 = vmatprep.subr.mxu0 %v2166
        %2593 = vmatpush1.msra.mxu0 %v2165
        %2594 = vmatprep.subr.mxu0 %v2177
        %2595 = vmatpush1.msra.mxu0 %v2176
        %2596 = vmatprep.subr.mxu0 %v2188
        %2597 = vmatpush1.msra.mxu0 %v2187
        %2598 = vmatprep.subr.mxu0 %v2199
        %2599 = vmatpush1.msra.mxu0 %v2198
        %2600 = vmatprep.subr.mxu0 %v2210
        %2601 = vmatpush1.msra.mxu0 %v2209
        %2602 = vmatprep.subr.mxu0 %v2221
        %2603 = vmatpush1.msra.mxu0 %v2220
        %2604 = vmatprep.subr.mxu0 %v2232
        %2605 = vmatpush1.msra.mxu0 %v2231
        %2606 = vmatprep.subr.mxu0 %v2243
        %2607 = vmatpush1.msra.mxu0 %v2242
        %2608 = vmatprep.subr.mxu0 %v2295
        %2609 = vmatpush1.msra.mxu0 %v2292
        %2610 = vmatprep.subr.mxu0 0.0
        %2611 = vmatpush1.msra.mxu0 0.0
        %2612 = vmatprep.subr.mxu0 0.0
        %2613 = vmatpush1.msra.mxu0 0.0
        %2614 = vmatprep.subr.mxu0 0.0
        %2615 = vmatpush1.msra.mxu0 0.0
        %2616 = vmatprep.subr.mxu0 0.0
        %2617 = vmatpush1.msra.mxu0 0.0
        %2618 = vmatprep.subr.mxu0 0.0
        %2619 = vmatpush1.msra.mxu0 0.0
        %2620 = vmatprep.subr.mxu0 0.0
        %2621 = vmatpush1.msra.mxu0 0.0
        %2622 = vmatprep.subr.mxu0 0.0
        %2623 = vmatpush1.msra.mxu0 0.0
        %2624 = vmatprep.subr.mxu0 0.0
        %2625 = vmatpush1.msra.mxu0 0.0
        %2626 = vmatprep.subr.mxu0 0.0
        %2627 = vmatpush1.msra.mxu0 0.0
        %2628 = vmatprep.subr.mxu0 0.0
        %2629 = vmatpush1.msra.mxu0 0.0
        %2630 = vmatprep.subr.mxu0 0.0
        %2631 = vmatpush1.msra.mxu0 0.0
        %2632 = vmatprep.subr.mxu0 0.0
        %2633 = vmatpush1.msra.mxu0 0.0
        %2634 = vmatprep.subr.mxu0 0.0
        %2635 = vmatpush1.msra.mxu0 0.0
        %2636 = vmatprep.subr.mxu0 0.0
        %2637 = vmatpush1.msra.mxu0 0.0
        %2638 = vmatprep.subr.mxu0 0.0
        %2639 = vmatpush1.msra.mxu0 0.0
        %2640 = vmatprep.subr.mxu0 0.0
        %2641 = vmatpush1.msra.mxu0 0.0
        %2642 = vmatprep.subr.mxu0 0.0
        %2643 = vmatpush1.msra.mxu0 0.0
        %2644 = vmatprep.subr.mxu0 0.0
        %2645 = vmatpush1.msra.mxu0 0.0
        %2646 = vmatprep.subr.mxu0 0.0
        %2647 = vmatpush1.msra.mxu0 0.0
        %2648 = vmatprep.mubr.f32.mxu0 0.0
        %2649 = vmatmul.mubr.f32.gmra.mrb[0].mxu0 %v2264
        %v2650 = vpop.f32.mrb[0].mxu0
        %v2651 = vadd.f32 %v2260, %v2650
        %v2652 = vpop.f32.mrb[0].mxu0
        %v2653 = vadd.f32 %v2260, %v2652
        %2654 = vdwg.mxu0
        %2655 = vmatprep.subr.mxu0 0.0
        %2656 = vmatpush1.msra.mxu0 %v2123
        %2657 = vmatprep.subr.mxu0 0.0
        %2658 = vmatpush1.msra.mxu0 %v2134
        %2659 = vmatprep.subr.mxu0 0.0
        %2660 = vmatpush1.msra.mxu0 %v2145
        %2661 = vmatprep.subr.mxu0 0.0
        %2662 = vmatpush1.msra.mxu0 %v2156
        %2663 = vmatprep.subr.mxu0 0.0
        %2664 = vmatpush1.msra.mxu0 %v2167
        %2665 = vmatprep.subr.mxu0 0.0
        %2666 = vmatpush1.msra.mxu0 %v2178
        %2667 = vmatprep.subr.mxu0 0.0
        %2668 = vmatpush1.msra.mxu0 %v2189
        %2669 = vmatprep.subr.mxu0 0.0
        %2670 = vmatpush1.msra.mxu0 %v2200
        %2671 = vmatprep.subr.mxu0 0.0
        %2672 = vmatpush1.msra.mxu0 %v2211
        %2673 = vmatprep.subr.mxu0 0.0
        %2674 = vmatpush1.msra.mxu0 %v2222
        %2675 = vmatprep.subr.mxu0 0.0
        %2676 = vmatpush1.msra.mxu0 %v2233
        %2677 = vmatprep.subr.mxu0 0.0
        %2678 = vmatpush1.msra.mxu0 %v2244
        %2679 = vmatprep.subr.mxu0 0.0
        %2680 = vmatpush1.msra.mxu0 %v2298
        %2681 = vmatprep.subr.mxu0 0.0
        %2682 = vmatpush1.msra.mxu0 0.0
        %2683 = vmatprep.subr.mxu0 0.0
        %2684 = vmatpush1.msra.mxu0 0.0
        %2685 = vmatprep.subr.mxu0 0.0
        %2686 = vmatpush1.msra.mxu0 0.0
        %2687 = vmatprep.subr.mxu0 0.0
        %2688 = vmatpush1.msra.mxu0 0.0
        %2689 = vmatprep.subr.mxu0 0.0
        %2690 = vmatpush1.msra.mxu0 0.0
        %2691 = vmatprep.subr.mxu0 0.0
        %2692 = vmatpush1.msra.mxu0 0.0
        %2693 = vmatprep.subr.mxu0 0.0
        %2694 = vmatpush1.msra.mxu0 0.0
        %2695 = vmatprep.subr.mxu0 0.0
        %2696 = vmatpush1.msra.mxu0 0.0
        %2697 = vmatprep.subr.mxu0 0.0
        %2698 = vmatpush1.msra.mxu0 0.0
        %2699 = vmatprep.subr.mxu0 0.0
        %2700 = vmatpush1.msra.mxu0 0.0
        %2701 = vmatprep.subr.mxu0 0.0
        %2702 = vmatpush1.msra.mxu0 0.0
        %2703 = vmatprep.subr.mxu0 0.0
        %2704 = vmatpush1.msra.mxu0 0.0
        %2705 = vmatprep.subr.mxu0 0.0
        %2706 = vmatpush1.msra.mxu0 0.0
        %2707 = vmatprep.subr.mxu0 0.0
        %2708 = vmatpush1.msra.mxu0 0.0
        %2709 = vmatprep.subr.mxu0 0.0
        %2710 = vmatpush1.msra.mxu0 0.0
        %2711 = vmatprep.subr.mxu0 0.0
        %2712 = vmatpush1.msra.mxu0 0.0
        %2713 = vmatprep.subr.mxu0 0.0
        %2714 = vmatpush1.msra.mxu0 0.0
        %2715 = vmatprep.subr.mxu0 0.0
        %2716 = vmatpush1.msra.mxu0 0.0
        %2717 = vmatprep.subr.mxu0 0.0
        %2718 = vmatpush1.msra.mxu0 0.0
        %2719 = vmatprep.mubr.f32.mxu0 0.0
        %2720 = vmatmul.mubr.f32.gmra.mrb[0].mxu0 %v2264
        %v2721 = vpop.f32.mrb[0].mxu0
        %v2722 = vadd.f32 %v2260, %v2721
        %v2723 = vpop.f32.mrb[0].mxu0
        %2724 = vdwg.mxu0
        %v2725 = vld [vmem:[%s3] sm:$0xff]
        %v2726 = vld [vmem:[%s3 + $0x8] sm:$0x7]
        %v2729 = vlaneseq
        %v2730 = vshrl.u32 %v2729, 7
        %v2731 = vsub.s32 0, %v2730
        %v2732 = vrot.slane %v2725, %v2731
        %v2733 = vlaneseq
        %v2734 = vshrl.u32 %v2733, 7
        %v2735 = vsub.s32 1, %v2734
        %v2736 = vrot.slane %v2725, %v2735
        %v2737 = vlaneseq
        %v2738 = vshrl.u32 %v2737, 7
        %v2739 = vsub.s32 2, %v2738
        %v2740 = vrot.slane %v2725, %v2739
        %v2741 = vlaneseq
        %v2742 = vshrl.u32 %v2741, 7
        %v2743 = vsub.s32 3, %v2742
        %v2744 = vrot.slane %v2725, %v2743
        %v2745 = vlaneseq
        %v2746 = vshrl.u32 %v2745, 7
        %v2747 = vsub.s32 4, %v2746
        %v2748 = vrot.slane %v2725, %v2747
        %v2749 = vlaneseq
        %v2750 = vshrl.u32 %v2749, 7
        %v2751 = vsub.s32 5, %v2750
        %v2752 = vrot.slane %v2725, %v2751
        %v2753 = vlaneseq
        %v2754 = vshrl.u32 %v2753, 7
        %v2755 = vsub.s32 6, %v2754
        %v2756 = vrot.slane %v2725, %v2755
        %v2757 = vlaneseq
        %v2758 = vshrl.u32 %v2757, 7
        %v2759 = vsub.s32 7, %v2758
        %v2760 = vrot.slane %v2725, %v2759
        %v2761 = vlaneseq
        %v2762 = vshrl.u32 %v2761, 7
        %v2763 = vsub.s32 0, %v2762
        %v2764 = vrot.slane %v2726, %v2763
        %v2765 = vlaneseq
        %v2766 = vshrl.u32 %v2765, 7
        %v2767 = vsub.s32 1, %v2766
        %v2768 = vrot.slane %v2726, %v2767
        %v2769 = vlaneseq
        %v2770 = vshrl.u32 %v2769, 7
        %v2771 = vsub.s32 2, %v2770
        %v2772 = vrot.slane %v2726, %v2771
        %v2784 = vmul.f32 %v2367, %v2732
        %v2785 = vmul.f32 %v2369, %v2736
        %v2786 = vmul.f32 %v2438, %v2740
        %v2787 = vmul.f32 %v2440, %v2744
        %v2788 = vmul.f32 %v2509, %v2748
        %v2789 = vmul.f32 %v2511, %v2752
        %v2790 = vmul.f32 %v2580, %v2756
        %v2791 = vmul.f32 %v2582, %v2760
        %v2792 = vmul.f32 %v2651, %v2764
        %v2793 = vmul.f32 %v2653, %v2768
        %v2794 = vmul.f32 %v2722, %v2772
        %v2805 = vcombine.low %v2784, %v2785
        %v2806 = vcombine.low %v2786, %v2787
        %v2807 = vcombine.low %v2788, %v2789
        %v2808 = vcombine.low %v2790, %v2791
        %v2809 = vcombine.low %v2792, %v2793
        %2815 = vst [vmem:[#allocation3] sm:$0xff] %v2805
        %2816 = vst [vmem:[#allocation3 + $0x8] sm:$0xff] %v2806
        %2817 = vst [vmem:[#allocation3 + $0x10] sm:$0xff] %v2807
        %2818 = vst [vmem:[#allocation3 + $0x18] sm:$0xff] %v2808
        %2819 = vst [vmem:[#allocation3 + $0x20] sm:$0xff] %v2809
        %2820 = vst.msk [vmem:[#allocation3 + $0x28] sm:$0xf] %vm299, %v2794
        %v2821 = vld [vmem:[#allocation3] sm:$0xff]
        %v2822 = vld [vmem:[#allocation3 + $0x8] sm:$0xff]
        %v2823 = vld [vmem:[#allocation3 + $0x10] sm:$0xff]
        %v2824 = vld [vmem:[#allocation3 + $0x18] sm:$0xff]
        %v2825 = vld [vmem:[#allocation3 + $0x20] sm:$0xff]
        %v2831 = vcombine.high %v2821, %v2821
        %v2832 = vcombine.high %v2822, %v2822
        %v2833 = vcombine.high %v2823, %v2823
        %v2834 = vcombine.high %v2824, %v2824
        %v2835 = vcombine.high %v2825, %v2825
        %2841 = vst [vmem:[#allocation4] sm:$0xf] %v2821
        %2842 = vst [vmem:[#allocation4 + $0x8] sm:$0xf] %v2831
        %2843 = vst [vmem:[#allocation4 + $0x10] sm:$0xf] %v2822
        %2844 = vst [vmem:[#allocation4 + $0x18] sm:$0xf] %v2832
        %2845 = vst [vmem:[#allocation4 + $0x20] sm:$0xf] %v2823
        %2846 = vst [vmem:[#allocation4 + $0x28] sm:$0xf] %v2833
        %2847 = vst [vmem:[#allocation4 + $0x30] sm:$0xf] %v2824
        %2848 = vst [vmem:[#allocation4 + $0x38] sm:$0xf] %v2834
        %2849 = vst [vmem:[#allocation4 + $0x40] sm:$0xf] %v2825
        %2850 = vst [vmem:[#allocation4 + $0x48] sm:$0xf] %v2835
        %v2851 = vld [vmem:[#allocation3] sm:$0xff]
        %v2852 = vld [vmem:[#allocation3 + $0x8] sm:$0xff]
        %v2853 = vld [vmem:[#allocation3 + $0x10] sm:$0xff]
        %v2854 = vld [vmem:[#allocation3 + $0x18] sm:$0xff]
        %v2855 = vld [vmem:[#allocation3 + $0x20] sm:$0xff]
        %v2856 = vld [vmem:[#allocation3 + $0x28] sm:$0xf]
        %v2863 = vcombine.low %v2851, %v2851
        %v2864 = vcombine.low %v2852, %v2852
        %v2865 = vcombine.low %v2853, %v2853
        %v2866 = vcombine.low %v2854, %v2854
        %v2867 = vcombine.low %v2855, %v2855
        %v2868 = vcombine.low %v2856, %v2856
        %2869 = vrot.lane.b32.xlu0 %v2863, 127
        %v2870 = vpop.permute.xlu0 %2869
        %2871 = vrot.lane.b32.xlu0 %v2851, 127
        %v2872 = vpop.permute.xlu0 %2871
        %2873 = vrot.lane.b32.xlu0 %v2864, 127
        %v2874 = vpop.permute.xlu0 %2873
        %2875 = vrot.lane.b32.xlu0 %v2852, 127
        %v2876 = vpop.permute.xlu0 %2875
        %2877 = vrot.lane.b32.xlu0 %v2865, 127
        %v2878 = vpop.permute.xlu0 %2877
        %2879 = vrot.lane.b32.xlu0 %v2853, 127
        %v2880 = vpop.permute.xlu0 %2879
        %2881 = vrot.lane.b32.xlu0 %v2866, 127
        %v2882 = vpop.permute.xlu0 %2881
        %2883 = vrot.lane.b32.xlu0 %v2854, 127
        %v2884 = vpop.permute.xlu0 %2883
        %2885 = vrot.lane.b32.xlu0 %v2867, 127
        %v2886 = vpop.permute.xlu0 %2885
        %2887 = vrot.lane.b32.xlu0 %v2855, 127
        %v2888 = vpop.permute.xlu0 %2887
        %2889 = vrot.lane.b32.xlu0 %v2868, 127
        %v2890 = vpop.permute.xlu0 %2889
        %v2891 = vsel %vm341, %v2870, %v2872
        %v2892 = vsel %vm341, %v2872, %v2874
        %v2893 = vsel %vm341, %v2874, %v2876
        %v2894 = vsel %vm341, %v2876, %v2878
        %v2895 = vsel %vm341, %v2878, %v2880
        %v2896 = vsel %vm341, %v2880, %v2882
        %v2897 = vsel %vm341, %v2882, %v2884
        %v2898 = vsel %vm341, %v2884, %v2886
        %v2899 = vsel %vm341, %v2886, %v2888
        %v2900 = vsel %vm341, %v2888, %v2890
        %2911 = vst [vmem:[#allocation4] sm:$0xf0] %v2891
        %2912 = vst [vmem:[#allocation4 + $0x8] sm:$0xf0] %v2892
        %2913 = vst [vmem:[#allocation4 + $0x10] sm:$0xf0] %v2893
        %2914 = vst [vmem:[#allocation4 + $0x18] sm:$0xf0] %v2894
        %2915 = vst [vmem:[#allocation4 + $0x20] sm:$0xf0] %v2895
        %2916 = vst [vmem:[#allocation4 + $0x28] sm:$0xf0] %v2896
        %2917 = vst [vmem:[#allocation4 + $0x30] sm:$0xf0] %v2897
        %2918 = vst [vmem:[#allocation4 + $0x38] sm:$0xf0] %v2898
        %2919 = vst [vmem:[#allocation4 + $0x40] sm:$0xf0] %v2899
        %2920 = vst [vmem:[#allocation4 + $0x48] sm:$0xf0] %v2900
        %v2921 = vld [vmem:[#allocation3] sm:$0xff]
        %v2922 = vld [vmem:[#allocation3 + $0x8] sm:$0xff]
        %v2923 = vld [vmem:[#allocation3 + $0x10] sm:$0xff]
        %v2924 = vld [vmem:[#allocation3 + $0x18] sm:$0xff]
        %v2925 = vld [vmem:[#allocation3 + $0x20] sm:$0xff]
        %v2926 = vld [vmem:[#allocation3 + $0x28] sm:$0xf]
        %v2933 = vcombine.high %v2921, %v2921
        %v2934 = vcombine.high %v2922, %v2922
        %v2935 = vcombine.high %v2923, %v2923
        %v2936 = vcombine.high %v2924, %v2924
        %v2937 = vcombine.high %v2925, %v2925
        %2938 = vrot.lane.b32.xlu0 %v2921, 126
        %v2939 = vpop.permute.xlu0 %2938
        %2940 = vrot.lane.b32.xlu0 %v2933, 126
        %v2941 = vpop.permute.xlu0 %2940
        %2942 = vrot.lane.b32.xlu0 %v2922, 126
        %v2943 = vpop.permute.xlu0 %2942
        %2944 = vrot.lane.b32.xlu0 %v2934, 126
        %v2945 = vpop.permute.xlu0 %2944
        %2946 = vrot.lane.b32.xlu0 %v2923, 126
        %v2947 = vpop.permute.xlu0 %2946
        %2948 = vrot.lane.b32.xlu0 %v2935, 126
        %v2949 = vpop.permute.xlu0 %2948
        %2950 = vrot.lane.b32.xlu0 %v2924, 126
        %v2951 = vpop.permute.xlu0 %2950
        %2952 = vrot.lane.b32.xlu0 %v2936, 126
        %v2953 = vpop.permute.xlu0 %2952
        %2954 = vrot.lane.b32.xlu0 %v2925, 126
        %v2955 = vpop.permute.xlu0 %2954
        %2956 = vrot.lane.b32.xlu0 %v2937, 126
        %v2957 = vpop.permute.xlu0 %2956
        %2958 = vrot.lane.b32.xlu0 %v2926, 126
        %v2959 = vpop.permute.xlu0 %2958
        %v2960 = vsel %vm414, %v2939, %v2941
        %v2961 = vsel %vm414, %v2941, %v2943
        %v2962 = vsel %vm414, %v2943, %v2945
        %v2963 = vsel %vm414, %v2945, %v2947
        %v2964 = vsel %vm414, %v2947, %v2949
        %v2965 = vsel %vm414, %v2949, %v2951
        %v2966 = vsel %vm414, %v2951, %v2953
        %v2967 = vsel %vm414, %v2953, %v2955
        %v2968 = vsel %vm414, %v2955, %v2957
        %v2969 = vsel %vm414, %v2957, %v2959
        %2980 = vst [vmem:[#allocation4 + $0x50] sm:$0xf] %v2960
        %2981 = vst [vmem:[#allocation4 + $0x58] sm:$0xf] %v2961
        %2982 = vst [vmem:[#allocation4 + $0x60] sm:$0xf] %v2962
        %2983 = vst [vmem:[#allocation4 + $0x68] sm:$0xf] %v2963
        %2984 = vst [vmem:[#allocation4 + $0x70] sm:$0xf] %v2964
        %2985 = vst [vmem:[#allocation4 + $0x78] sm:$0xf] %v2965
        %2986 = vst [vmem:[#allocation4 + $0x80] sm:$0xf] %v2966
        %2987 = vst [vmem:[#allocation4 + $0x88] sm:$0xf] %v2967
        %2988 = vst [vmem:[#allocation4 + $0x90] sm:$0xf] %v2968
        %2989 = vst [vmem:[#allocation4 + $0x98] sm:$0xf] %v2969
        %v2990 = vld [vmem:[#allocation3] sm:$0xff]
        %v2991 = vld [vmem:[#allocation3 + $0x8] sm:$0xff]
        %v2992 = vld [vmem:[#allocation3 + $0x10] sm:$0xff]
        %v2993 = vld [vmem:[#allocation3 + $0x18] sm:$0xff]
        %v2994 = vld [vmem:[#allocation3 + $0x20] sm:$0xff]
        %v2995 = vld [vmem:[#allocation3 + $0x28] sm:$0xf]
        %v3002 = vcombine.low %v2990, %v2990
        %v3003 = vcombine.low %v2991, %v2991
        %v3004 = vcombine.low %v2992, %v2992
        %v3005 = vcombine.low %v2993, %v2993
        %v3006 = vcombine.low %v2994, %v2994
        %v3007 = vcombine.low %v2995, %v2995
        %3008 = vrot.lane.b32.xlu0 %v3002, 88
        %v3009 = vpop.permute.xlu0 %3008
        %3010 = vrot.lane.b32.xlu0 %v2990, 88
        %v3011 = vpop.permute.xlu0 %3010
        %3012 = vrot.lane.b32.xlu0 %v3003, 88
        %v3013 = vpop.permute.xlu0 %3012
        %3014 = vrot.lane.b32.xlu0 %v2991, 88
        %v3015 = vpop.permute.xlu0 %3014
        %3016 = vrot.lane.b32.xlu0 %v3004, 88
        %v3017 = vpop.permute.xlu0 %3016
        %3018 = vrot.lane.b32.xlu0 %v2992, 88
        %v3019 = vpop.permute.xlu0 %3018
        %3020 = vrot.lane.b32.xlu0 %v3005, 88
        %v3021 = vpop.permute.xlu0 %3020
        %3022 = vrot.lane.b32.xlu0 %v2993, 88
        %v3023 = vpop.permute.xlu0 %3022
        %3024 = vrot.lane.b32.xlu0 %v3006, 88
        %v3025 = vpop.permute.xlu0 %3024
        %3026 = vrot.lane.b32.xlu0 %v2994, 88
        %v3027 = vpop.permute.xlu0 %3026
        %3028 = vrot.lane.b32.xlu0 %v3007, 88
        %v3029 = vpop.permute.xlu0 %3028
        %v3030 = vsel %vm634, %v3009, %v3011
        %v3031 = vsel %vm634, %v3011, %v3013
        %v3032 = vsel %vm634, %v3013, %v3015
        %v3033 = vsel %vm634, %v3015, %v3017
        %v3034 = vsel %vm634, %v3017, %v3019
        %v3035 = vsel %vm634, %v3019, %v3021
        %v3036 = vsel %vm634, %v3021, %v3023
        %v3037 = vsel %vm634, %v3023, %v3025
        %v3038 = vsel %vm634, %v3025, %v3027
        %v3039 = vsel %vm634, %v3027, %v3029
        %3050 = vst [vmem:[#allocation4 + $0x50] sm:$0xf0] %v3030
        %3051 = vst [vmem:[#allocation4 + $0x58] sm:$0xf0] %v3031
        %3052 = vst [vmem:[#allocation4 + $0x60] sm:$0xf0] %v3032
        %3053 = vst [vmem:[#allocation4 + $0x68] sm:$0xf0] %v3033
        %3054 = vst [vmem:[#allocation4 + $0x70] sm:$0xf0] %v3034
        %3055 = vst [vmem:[#allocation4 + $0x78] sm:$0xf0] %v3035
        %3056 = vst [vmem:[#allocation4 + $0x80] sm:$0xf0] %v3036
        %3057 = vst [vmem:[#allocation4 + $0x88] sm:$0xf0] %v3037
        %3058 = vst [vmem:[#allocation4 + $0x90] sm:$0xf0] %v3038
        %3059 = vst [vmem:[#allocation4 + $0x98] sm:$0xf0] %v3039
        %v3060 = vld [vmem:[#allocation3] sm:$0xff]
        %v3061 = vld [vmem:[#allocation3 + $0x8] sm:$0xff]
        %v3062 = vld [vmem:[#allocation3 + $0x10] sm:$0xff]
        %v3063 = vld [vmem:[#allocation3 + $0x18] sm:$0xff]
        %v3064 = vld [vmem:[#allocation3 + $0x20] sm:$0xff]
        %v3065 = vld [vmem:[#allocation3 + $0x28] sm:$0xf]
        %v3072 = vcombine.high %v3060, %v3060
        %v3073 = vcombine.high %v3061, %v3061
        %v3074 = vcombine.high %v3062, %v3062
        %v3075 = vcombine.high %v3063, %v3063
        %v3076 = vcombine.high %v3064, %v3064
        %3077 = vrot.lane.b32.xlu0 %v3060, 87
        %v3078 = vpop.permute.xlu0 %3077
        %3079 = vrot.lane.b32.xlu0 %v3072, 87
        %v3080 = vpop.permute.xlu0 %3079
        %3081 = vrot.lane.b32.xlu0 %v3061, 87
        %v3082 = vpop.permute.xlu0 %3081
        %3083 = vrot.lane.b32.xlu0 %v3073, 87
        %v3084 = vpop.permute.xlu0 %3083
        %3085 = vrot.lane.b32.xlu0 %v3062, 87
        %v3086 = vpop.permute.xlu0 %3085
        %3087 = vrot.lane.b32.xlu0 %v3074, 87
        %v3088 = vpop.permute.xlu0 %3087
        %3089 = vrot.lane.b32.xlu0 %v3063, 87
        %v3090 = vpop.permute.xlu0 %3089
        %3091 = vrot.lane.b32.xlu0 %v3075, 87
        %v3092 = vpop.permute.xlu0 %3091
        %3093 = vrot.lane.b32.xlu0 %v3064, 87
        %v3094 = vpop.permute.xlu0 %3093
        %3095 = vrot.lane.b32.xlu0 %v3076, 87
        %v3096 = vpop.permute.xlu0 %3095
        %3097 = vrot.lane.b32.xlu0 %v3065, 87
        %v3098 = vpop.permute.xlu0 %3097
        %v3099 = vsel %vm710, %v3078, %v3080
        %v3100 = vsel %vm710, %v3080, %v3082
        %v3101 = vsel %vm710, %v3082, %v3084
        %v3102 = vsel %vm710, %v3084, %v3086
        %v3103 = vsel %vm710, %v3086, %v3088
        %v3104 = vsel %vm710, %v3088, %v3090
        %v3105 = vsel %vm710, %v3090, %v3092
        %v3106 = vsel %vm710, %v3092, %v3094
        %v3107 = vsel %vm710, %v3094, %v3096
        %v3108 = vsel %vm710, %v3096, %v3098
        %3119 = vst [vmem:[#allocation4 + $0xa0] sm:$0xf] %v3099
        %3120 = vst [vmem:[#allocation4 + $0xa8] sm:$0xf] %v3100
        %3121 = vst [vmem:[#allocation4 + $0xb0] sm:$0xf] %v3101
        %3122 = vst [vmem:[#allocation4 + $0xb8] sm:$0xf] %v3102
        %3123 = vst [vmem:[#allocation4 + $0xc0] sm:$0xf] %v3103
        %3124 = vst [vmem:[#allocation4 + $0xc8] sm:$0xf] %v3104
        %3125 = vst [vmem:[#allocation4 + $0xd0] sm:$0xf] %v3105
        %3126 = vst [vmem:[#allocation4 + $0xd8] sm:$0xf] %v3106
        %3127 = vst [vmem:[#allocation4 + $0xe0] sm:$0xf] %v3107
        %3128 = vst [vmem:[#allocation4 + $0xe8] sm:$0xf] %v3108
        %v3129 = vld [vmem:[#allocation3] sm:$0xff]
        %v3130 = vld [vmem:[#allocation3 + $0x8] sm:$0xff]
        %v3131 = vld [vmem:[#allocation3 + $0x10] sm:$0xff]
        %v3132 = vld [vmem:[#allocation3 + $0x18] sm:$0xff]
        %v3133 = vld [vmem:[#allocation3 + $0x20] sm:$0xff]
        %v3134 = vld [vmem:[#allocation3 + $0x28] sm:$0xf]
        %v3141 = vcombine.low %v3129, %v3129
        %v3142 = vcombine.low %v3130, %v3130
        %v3143 = vcombine.low %v3131, %v3131
        %v3144 = vcombine.low %v3132, %v3132
        %v3145 = vcombine.low %v3133, %v3133
        %v3146 = vcombine.low %v3134, %v3134
        %3147 = vrot.lane.b32.xlu0 %v3141, 86
        %v3148 = vpop.permute.xlu0 %3147
        %3149 = vrot.lane.b32.xlu0 %v3129, 86
        %v3150 = vpop.permute.xlu0 %3149
        %3151 = vrot.lane.b32.xlu0 %v3142, 86
        %v3152 = vpop.permute.xlu0 %3151
        %3153 = vrot.lane.b32.xlu0 %v3130, 86
        %v3154 = vpop.permute.xlu0 %3153
        %3155 = vrot.lane.b32.xlu0 %v3143, 86
        %v3156 = vpop.permute.xlu0 %3155
        %3157 = vrot.lane.b32.xlu0 %v3131, 86
        %v3158 = vpop.permute.xlu0 %3157
        %3159 = vrot.lane.b32.xlu0 %v3144, 86
        %v3160 = vpop.permute.xlu0 %3159
        %3161 = vrot.lane.b32.xlu0 %v3132, 86
        %v3162 = vpop.permute.xlu0 %3161
        %3163 = vrot.lane.b32.xlu0 %v3145, 86
        %v3164 = vpop.permute.xlu0 %3163
        %3165 = vrot.lane.b32.xlu0 %v3133, 86
        %v3166 = vpop.permute.xlu0 %3165
        %3167 = vrot.lane.b32.xlu0 %v3146, 86
        %v3168 = vpop.permute.xlu0 %3167
        %v3169 = vsel %vm786, %v3148, %v3150
        %v3170 = vsel %vm786, %v3150, %v3152
        %v3171 = vsel %vm786, %v3152, %v3154
        %v3172 = vsel %vm786, %v3154, %v3156
        %v3173 = vsel %vm786, %v3156, %v3158
        %v3174 = vsel %vm786, %v3158, %v3160
        %v3175 = vsel %vm786, %v3160, %v3162
        %v3176 = vsel %vm786, %v3162, %v3164
        %v3177 = vsel %vm786, %v3164, %v3166
        %v3178 = vsel %vm786, %v3166, %v3168
        %3189 = vst [vmem:[#allocation4 + $0xa0] sm:$0xf0] %v3169
        %3190 = vst [vmem:[#allocation4 + $0xa8] sm:$0xf0] %v3170
        %3191 = vst [vmem:[#allocation4 + $0xb0] sm:$0xf0] %v3171
        %3192 = vst [vmem:[#allocation4 + $0xb8] sm:$0xf0] %v3172
        %3193 = vst [vmem:[#allocation4 + $0xc0] sm:$0xf0] %v3173
        %3194 = vst [vmem:[#allocation4 + $0xc8] sm:$0xf0] %v3174
        %3195 = vst [vmem:[#allocation4 + $0xd0] sm:$0xf0] %v3175
        %3196 = vst [vmem:[#allocation4 + $0xd8] sm:$0xf0] %v3176
        %3197 = vst [vmem:[#allocation4 + $0xe0] sm:$0xf0] %v3177
        %3198 = vst [vmem:[#allocation4 + $0xe8] sm:$0xf0] %v3178
        %v3199 = vld [vmem:[#allocation3] sm:$0xff]
        %v3200 = vld [vmem:[#allocation3 + $0x8] sm:$0xff]
        %v3201 = vld [vmem:[#allocation3 + $0x10] sm:$0xff]
        %v3202 = vld [vmem:[#allocation3 + $0x18] sm:$0xff]
        %v3203 = vld [vmem:[#allocation3 + $0x20] sm:$0xff]
        %v3204 = vld [vmem:[#allocation3 + $0x28] sm:$0xf]
        %v3211 = vcombine.high %v3199, %v3199
        %v3212 = vcombine.high %v3200, %v3200
        %v3213 = vcombine.high %v3201, %v3201
        %v3214 = vcombine.high %v3202, %v3202
        %v3215 = vcombine.high %v3203, %v3203
        %3216 = vrot.lane.b32.xlu0 %v3199, 48
        %v3217 = vpop.permute.xlu0 %3216
        %3218 = vrot.lane.b32.xlu0 %v3211, 48
        %v3219 = vpop.permute.xlu0 %3218
        %3220 = vrot.lane.b32.xlu0 %v3200, 48
        %v3221 = vpop.permute.xlu0 %3220
        %3222 = vrot.lane.b32.xlu0 %v3212, 48
        %v3223 = vpop.permute.xlu0 %3222
        %3224 = vrot.lane.b32.xlu0 %v3201, 48
        %v3225 = vpop.permute.xlu0 %3224
        %3226 = vrot.lane.b32.xlu0 %v3213, 48
        %v3227 = vpop.permute.xlu0 %3226
        %3228 = vrot.lane.b32.xlu0 %v3202, 48
        %v3229 = vpop.permute.xlu0 %3228
        %3230 = vrot.lane.b32.xlu0 %v3214, 48
        %v3231 = vpop.permute.xlu0 %3230
        %3232 = vrot.lane.b32.xlu0 %v3203, 48
        %v3233 = vpop.permute.xlu0 %3232
        %3234 = vrot.lane.b32.xlu0 %v3215, 48
        %v3235 = vpop.permute.xlu0 %3234
        %3236 = vrot.lane.b32.xlu0 %v3204, 48
        %v3237 = vpop.permute.xlu0 %3236
        %v3238 = vsel %vm1014, %v3217, %v3219
        %v3239 = vsel %vm1014, %v3219, %v3221
        %v3240 = vsel %vm1014, %v3221, %v3223
        %v3241 = vsel %vm1014, %v3223, %v3225
        %v3242 = vsel %vm1014, %v3225, %v3227
        %v3243 = vsel %vm1014, %v3227, %v3229
        %v3244 = vsel %vm1014, %v3229, %v3231
        %v3245 = vsel %vm1014, %v3231, %v3233
        %v3246 = vsel %vm1014, %v3233, %v3235
        %v3247 = vsel %vm1014, %v3235, %v3237
        %3258 = vst [vmem:[#allocation4 + $0xf0] sm:$0xf] %v3238
        %3259 = vst [vmem:[#allocation4 + $0xf8] sm:$0xf] %v3239
        %3260 = vst [vmem:[#allocation4 + $0x100] sm:$0xf] %v3240
        %3261 = vst [vmem:[#allocation4 + $0x108] sm:$0xf] %v3241
        %3262 = vst [vmem:[#allocation4 + $0x110] sm:$0xf] %v3242
        %3263 = vst [vmem:[#allocation4 + $0x118] sm:$0xf] %v3243
        %3264 = vst [vmem:[#allocation4 + $0x120] sm:$0xf] %v3244
        %3265 = vst [vmem:[#allocation4 + $0x128] sm:$0xf] %v3245
        %3266 = vst [vmem:[#allocation4 + $0x130] sm:$0xf] %v3246
        %3267 = vst [vmem:[#allocation4 + $0x138] sm:$0xf] %v3247
        %v3268 = vld [vmem:[#allocation3] sm:$0xff]
        %v3269 = vld [vmem:[#allocation3 + $0x8] sm:$0xff]
        %v3270 = vld [vmem:[#allocation3 + $0x10] sm:$0xff]
        %v3271 = vld [vmem:[#allocation3 + $0x18] sm:$0xff]
        %v3272 = vld [vmem:[#allocation3 + $0x20] sm:$0xff]
        %v3273 = vld [vmem:[#allocation3 + $0x28] sm:$0xf]
        %v3280 = vcombine.low %v3268, %v3268
        %v3281 = vcombine.low %v3269, %v3269
        %v3282 = vcombine.low %v3270, %v3270
        %v3283 = vcombine.low %v3271, %v3271
        %v3284 = vcombine.low %v3272, %v3272
        %v3285 = vcombine.low %v3273, %v3273
        %3286 = vrot.lane.b32.xlu0 %v3280, 47
        %v3287 = vpop.permute.xlu0 %3286
        %3288 = vrot.lane.b32.xlu0 %v3268, 47
        %v3289 = vpop.permute.xlu0 %3288
        %3290 = vrot.lane.b32.xlu0 %v3281, 47
        %v3291 = vpop.permute.xlu0 %3290
        %3292 = vrot.lane.b32.xlu0 %v3269, 47
        %v3293 = vpop.permute.xlu0 %3292
        %3294 = vrot.lane.b32.xlu0 %v3282, 47
        %v3295 = vpop.permute.xlu0 %3294
        %3296 = vrot.lane.b32.xlu0 %v3270, 47
        %v3297 = vpop.permute.xlu0 %3296
        %3298 = vrot.lane.b32.xlu0 %v3283, 47
        %v3299 = vpop.permute.xlu0 %3298
        %3300 = vrot.lane.b32.xlu0 %v3271, 47
        %v3301 = vpop.permute.xlu0 %3300
        %3302 = vrot.lane.b32.xlu0 %v3284, 47
        %v3303 = vpop.permute.xlu0 %3302
        %3304 = vrot.lane.b32.xlu0 %v3272, 47
        %v3305 = vpop.permute.xlu0 %3304
        %3306 = vrot.lane.b32.xlu0 %v3285, 47
        %v3307 = vpop.permute.xlu0 %3306
        %v3308 = vsel %vm1090, %v3287, %v3289
        %v3309 = vsel %vm1090, %v3289, %v3291
        %v3310 = vsel %vm1090, %v3291, %v3293
        %v3311 = vsel %vm1090, %v3293, %v3295
        %v3312 = vsel %vm1090, %v3295, %v3297
        %v3313 = vsel %vm1090, %v3297, %v3299
        %v3314 = vsel %vm1090, %v3299, %v3301
        %v3315 = vsel %vm1090, %v3301, %v3303
        %v3316 = vsel %vm1090, %v3303, %v3305
        %v3317 = vsel %vm1090, %v3305, %v3307
        %3328 = vst [vmem:[#allocation4 + $0xf0] sm:$0xf0] %v3308
        %3329 = vst [vmem:[#allocation4 + $0xf8] sm:$0xf0] %v3309
        %3330 = vst [vmem:[#allocation4 + $0x100] sm:$0xf0] %v3310
        %3331 = vst [vmem:[#allocation4 + $0x108] sm:$0xf0] %v3311
        %3332 = vst [vmem:[#allocation4 + $0x110] sm:$0xf0] %v3312
        %3333 = vst [vmem:[#allocation4 + $0x118] sm:$0xf0] %v3313
        %3334 = vst [vmem:[#allocation4 + $0x120] sm:$0xf0] %v3314
        %3335 = vst [vmem:[#allocation4 + $0x128] sm:$0xf0] %v3315
        %3336 = vst [vmem:[#allocation4 + $0x130] sm:$0xf0] %v3316
        %3337 = vst [vmem:[#allocation4 + $0x138] sm:$0xf0] %v3317
        %v3338 = vld [vmem:[#allocation3] sm:$0xff]
        %v3339 = vld [vmem:[#allocation3 + $0x8] sm:$0xff]
        %v3340 = vld [vmem:[#allocation3 + $0x10] sm:$0xff]
        %v3341 = vld [vmem:[#allocation3 + $0x18] sm:$0xff]
        %v3342 = vld [vmem:[#allocation3 + $0x20] sm:$0xff]
        %v3343 = vld [vmem:[#allocation3 + $0x28] sm:$0xf]
        %v3350 = vcombine.high %v3338, %v3338
        %v3351 = vcombine.high %v3339, %v3339
        %v3352 = vcombine.high %v3340, %v3340
        %v3353 = vcombine.high %v3341, %v3341
        %v3354 = vcombine.high %v3342, %v3342
        %3355 = vrot.lane.b32.xlu0 %v3338, 46
        %v3356 = vpop.permute.xlu0 %3355
        %3357 = vrot.lane.b32.xlu0 %v3350, 46
        %v3358 = vpop.permute.xlu0 %3357
        %3359 = vrot.lane.b32.xlu0 %v3339, 46
        %v3360 = vpop.permute.xlu0 %3359
        %3361 = vrot.lane.b32.xlu0 %v3351, 46
        %v3362 = vpop.permute.xlu0 %3361
        %3363 = vrot.lane.b32.xlu0 %v3340, 46
        %v3364 = vpop.permute.xlu0 %3363
        %3365 = vrot.lane.b32.xlu0 %v3352, 46
        %v3366 = vpop.permute.xlu0 %3365
        %3367 = vrot.lane.b32.xlu0 %v3341, 46
        %v3368 = vpop.permute.xlu0 %3367
        %3369 = vrot.lane.b32.xlu0 %v3353, 46
        %v3370 = vpop.permute.xlu0 %3369
        %3371 = vrot.lane.b32.xlu0 %v3342, 46
        %v3372 = vpop.permute.xlu0 %3371
        %3373 = vrot.lane.b32.xlu0 %v3354, 46
        %v3374 = vpop.permute.xlu0 %3373
        %3375 = vrot.lane.b32.xlu0 %v3343, 46
        %v3376 = vpop.permute.xlu0 %3375
        %v3377 = vsel %vm1166, %v3356, %v3358
        %v3378 = vsel %vm1166, %v3358, %v3360
        %v3379 = vsel %vm1166, %v3360, %v3362
        %v3380 = vsel %vm1166, %v3362, %v3364
        %v3381 = vsel %vm1166, %v3364, %v3366
        %v3382 = vsel %vm1166, %v3366, %v3368
        %v3383 = vsel %vm1166, %v3368, %v3370
        %v3384 = vsel %vm1166, %v3370, %v3372
        %v3385 = vsel %vm1166, %v3372, %v3374
        %v3386 = vsel %vm1166, %v3374, %v3376
        %3397 = vst [vmem:[#allocation4 + $0x140] sm:$0xf] %v3377
        %3398 = vst [vmem:[#allocation4 + $0x148] sm:$0xf] %v3378
        %3399 = vst [vmem:[#allocation4 + $0x150] sm:$0xf] %v3379
        %3400 = vst [vmem:[#allocation4 + $0x158] sm:$0xf] %v3380
        %3401 = vst [vmem:[#allocation4 + $0x160] sm:$0xf] %v3381
        %3402 = vst [vmem:[#allocation4 + $0x168] sm:$0xf] %v3382
        %3403 = vst [vmem:[#allocation4 + $0x170] sm:$0xf] %v3383
        %3404 = vst [vmem:[#allocation4 + $0x178] sm:$0xf] %v3384
        %3405 = vst [vmem:[#allocation4 + $0x180] sm:$0xf] %v3385
        %3406 = vst [vmem:[#allocation4 + $0x188] sm:$0xf] %v3386
        %v3407 = vld [vmem:[%s4] sm:$0xf]
        %v3408 = vld [vmem:[#allocation4] sm:$0xff]
        %v3409 = vld [vmem:[#allocation4 + $0x8] sm:$0xff]
        %v3410 = vld [vmem:[#allocation4 + $0x10] sm:$0xff]
        %v3411 = vld [vmem:[#allocation4 + $0x18] sm:$0xff]
        %v3412 = vld [vmem:[#allocation4 + $0x20] sm:$0xff]
        %v3413 = vld [vmem:[#allocation4 + $0x28] sm:$0xff]
        %v3414 = vld [vmem:[#allocation4 + $0x30] sm:$0xff]
        %v3415 = vld [vmem:[#allocation4 + $0x38] sm:$0xff]
        %v3416 = vld [vmem:[#allocation4 + $0x40] sm:$0xff]
        %v3417 = vld [vmem:[#allocation4 + $0x48] sm:$0xff]
        %v3418 = vld [vmem:[#allocation4 + $0x50] sm:$0xff]
        %v3419 = vld [vmem:[#allocation4 + $0x58] sm:$0xff]
        %v3420 = vld [vmem:[#allocation4 + $0x60] sm:$0xff]
        %v3421 = vld [vmem:[#allocation4 + $0x68] sm:$0xff]
        %v3422 = vld [vmem:[#allocation4 + $0x70] sm:$0xff]
        %v3423 = vld [vmem:[#allocation4 + $0x78] sm:$0xff]
        %v3424 = vld [vmem:[#allocation4 + $0x80] sm:$0xff]
        %v3425 = vld [vmem:[#allocation4 + $0x88] sm:$0xff]
        %v3426 = vld [vmem:[#allocation4 + $0x90] sm:$0xff]
        %v3427 = vld [vmem:[#allocation4 + $0x98] sm:$0xff]
        %v3428 = vld [vmem:[#allocation4 + $0xa0] sm:$0xff]
        %v3429 = vld [vmem:[#allocation4 + $0xa8] sm:$0xff]
        %v3430 = vld [vmem:[#allocation4 + $0xb0] sm:$0xff]
        %v3431 = vld [vmem:[#allocation4 + $0xb8] sm:$0xff]
        %v3432 = vld [vmem:[#allocation4 + $0xc0] sm:$0xff]
        %v3433 = vld [vmem:[#allocation4 + $0xc8] sm:$0xff]
        %v3434 = vld [vmem:[#allocation4 + $0xd0] sm:$0xff]
        %v3435 = vld [vmem:[#allocation4 + $0xd8] sm:$0xff]
        %v3436 = vld [vmem:[#allocation4 + $0xe0] sm:$0xff]
        %v3437 = vld [vmem:[#allocation4 + $0xe8] sm:$0xff]
        %v3438 = vld [vmem:[#allocation4 + $0xf0] sm:$0xff]
        %v3439 = vld [vmem:[#allocation4 + $0xf8] sm:$0xff]
        %v3440 = vld [vmem:[#allocation4 + $0x100] sm:$0xff]
        %v3441 = vld [vmem:[#allocation4 + $0x108] sm:$0xff]
        %v3442 = vld [vmem:[#allocation4 + $0x110] sm:$0xff]
        %v3443 = vld [vmem:[#allocation4 + $0x118] sm:$0xff]
        %v3444 = vld [vmem:[#allocation4 + $0x120] sm:$0xff]
        %v3445 = vld [vmem:[#allocation4 + $0x128] sm:$0xff]
        %v3446 = vld [vmem:[#allocation4 + $0x130] sm:$0xff]
        %v3447 = vld [vmem:[#allocation4 + $0x138] sm:$0xff]
        %v3448 = vld [vmem:[#allocation4 + $0x140] sm:$0xf]
        %v3449 = vld [vmem:[#allocation4 + $0x148] sm:$0xf]
        %v3450 = vld [vmem:[#allocation4 + $0x150] sm:$0xf]
        %v3451 = vld [vmem:[#allocation4 + $0x158] sm:$0xf]
        %v3452 = vld [vmem:[#allocation4 + $0x160] sm:$0xf]
        %v3453 = vld [vmem:[#allocation4 + $0x168] sm:$0xf]
        %v3454 = vld [vmem:[#allocation4 + $0x170] sm:$0xf]
        %v3455 = vld [vmem:[#allocation4 + $0x178] sm:$0xf]
        %v3456 = vld [vmem:[#allocation4 + $0x180] sm:$0xf]
        %v3457 = vld [vmem:[#allocation4 + $0x188] sm:$0xf]
        %v3458 = vld [vmem:[%s5] sm:$0xf]
        %3460 = vset.pattern.permute.xlu0 0
        %3461 = vperm.xlu0 %3460, %v3458
        %v3462 = vpop.permute.xlu0 %3461
        %vm3464 = vcmask 293888
        %v3466 = vsel %vm3464, %v3407, 0
        %v3469 = vsel %vm2266, %v3448, 0
        %v3472 = vsel %vm2266, %v3449, 0
        %v3475 = vsel %vm2266, %v3450, 0
        %v3478 = vsel %vm2266, %v3451, 0
        %v3481 = vsel %vm2266, %v3452, 0
        %v3484 = vsel %vm2266, %v3453, 0
        %v3487 = vsel %vm2266, %v3454, 0
        %v3490 = vsel %vm2266, %v3455, 0
        %v3493 = vsel %vm2266, %v3456, 0
        %v3496 = vsel %vm2266, %v3457, 0
        %3498 = vmatprep.subr.mxu0 %v3409
        %3499 = vmatpush1.msra.mxu0 %v3408
        %3500 = vmatprep.subr.mxu0 %v3419
        %3501 = vmatpush1.msra.mxu0 %v3418
        %3502 = vmatprep.subr.mxu0 %v3429
        %3503 = vmatpush1.msra.mxu0 %v3428
        %3504 = vmatprep.subr.mxu0 %v3439
        %3505 = vmatpush1.msra.mxu0 %v3438
        %3506 = vmatprep.subr.mxu0 %v3472
        %3507 = vmatpush1.msra.mxu0 %v3469
        %3508 = vmatprep.subr.mxu0 0.0
        %3509 = vmatpush1.msra.mxu0 0.0
        %3510 = vmatprep.subr.mxu0 0.0
        %3511 = vmatpush1.msra.mxu0 0.0
        %3512 = vmatprep.subr.mxu0 0.0
        %3513 = vmatpush1.msra.mxu0 0.0
        %3514 = vmatprep.subr.mxu0 0.0
        %3515 = vmatpush1.msra.mxu0 0.0
        %3516 = vmatprep.subr.mxu0 0.0
        %3517 = vmatpush1.msra.mxu0 0.0
        %3518 = vmatprep.subr.mxu0 0.0
        %3519 = vmatpush1.msra.mxu0 0.0
        %3520 = vmatprep.subr.mxu0 0.0
        %3521 = vmatpush1.msra.mxu0 0.0
        %3522 = vmatprep.subr.mxu0 0.0
        %3523 = vmatpush1.msra.mxu0 0.0
        %3524 = vmatprep.subr.mxu0 0.0
        %3525 = vmatpush1.msra.mxu0 0.0
        %3526 = vmatprep.subr.mxu0 0.0
        %3527 = vmatpush1.msra.mxu0 0.0
        %3528 = vmatprep.subr.mxu0 0.0
        %3529 = vmatpush1.msra.mxu0 0.0
        %3530 = vmatprep.subr.mxu0 0.0
        %3531 = vmatpush1.msra.mxu0 0.0
        %3532 = vmatprep.subr.mxu0 0.0
        %3533 = vmatpush1.msra.mxu0 0.0
        %3534 = vmatprep.subr.mxu0 0.0
        %3535 = vmatpush1.msra.mxu0 0.0
        %3536 = vmatprep.subr.mxu0 0.0
        %3537 = vmatpush1.msra.mxu0 0.0
        %3538 = vmatprep.subr.mxu0 0.0
        %3539 = vmatpush1.msra.mxu0 0.0
        %3540 = vmatprep.subr.mxu0 0.0
        %3541 = vmatpush1.msra.mxu0 0.0
        %3542 = vmatprep.subr.mxu0 0.0
        %3543 = vmatpush1.msra.mxu0 0.0
        %3544 = vmatprep.subr.mxu0 0.0
        %3545 = vmatpush1.msra.mxu0 0.0
        %3546 = vmatprep.subr.mxu0 0.0
        %3547 = vmatpush1.msra.mxu0 0.0
        %3548 = vmatprep.subr.mxu0 0.0
        %3549 = vmatpush1.msra.mxu0 0.0
        %3550 = vmatprep.subr.mxu0 0.0
        %3551 = vmatpush1.msra.mxu0 0.0
        %3552 = vmatprep.subr.mxu0 0.0
        %3553 = vmatpush1.msra.mxu0 0.0
        %3554 = vmatprep.subr.mxu0 0.0
        %3555 = vmatpush1.msra.mxu0 0.0
        %3556 = vmatprep.subr.mxu0 0.0
        %3557 = vmatpush1.msra.mxu0 0.0
        %3558 = vmatprep.subr.mxu0 0.0
        %3559 = vmatpush1.msra.mxu0 0.0
        %3560 = vmatprep.subr.mxu0 0.0
        %3561 = vmatpush1.msra.mxu0 0.0
        %3562 = vmatprep.mubr.f32.mxu0 0.0
        %3563 = vmatmul.mubr.f32.gmra.mrb[0].mxu0 %v3466
        %v3564 = vpop.f32.mrb[0].mxu0
        %v3565 = vadd.f32 %v3462, %v3564
        %v3566 = vpop.f32.mrb[0].mxu0
        %v3567 = vadd.f32 %v3462, %v3566
        %3568 = vdwg.mxu0
        %3569 = vmatprep.subr.mxu0 %v3411
        %3570 = vmatpush1.msra.mxu0 %v3410
        %3571 = vmatprep.subr.mxu0 %v3421
        %3572 = vmatpush1.msra.mxu0 %v3420
        %3573 = vmatprep.subr.mxu0 %v3431
        %3574 = vmatpush1.msra.mxu0 %v3430
        %3575 = vmatprep.subr.mxu0 %v3441
        %3576 = vmatpush1.msra.mxu0 %v3440
        %3577 = vmatprep.subr.mxu0 %v3478
        %3578 = vmatpush1.msra.mxu0 %v3475
        %3579 = vmatprep.subr.mxu0 0.0
        %3580 = vmatpush1.msra.mxu0 0.0
        %3581 = vmatprep.subr.mxu0 0.0
        %3582 = vmatpush1.msra.mxu0 0.0
        %3583 = vmatprep.subr.mxu0 0.0
        %3584 = vmatpush1.msra.mxu0 0.0
        %3585 = vmatprep.subr.mxu0 0.0
        %3586 = vmatpush1.msra.mxu0 0.0
        %3587 = vmatprep.subr.mxu0 0.0
        %3588 = vmatpush1.msra.mxu0 0.0
        %3589 = vmatprep.subr.mxu0 0.0
        %3590 = vmatpush1.msra.mxu0 0.0
        %3591 = vmatprep.subr.mxu0 0.0
        %3592 = vmatpush1.msra.mxu0 0.0
        %3593 = vmatprep.subr.mxu0 0.0
        %3594 = vmatpush1.msra.mxu0 0.0
        %3595 = vmatprep.subr.mxu0 0.0
        %3596 = vmatpush1.msra.mxu0 0.0
        %3597 = vmatprep.subr.mxu0 0.0
        %3598 = vmatpush1.msra.mxu0 0.0
        %3599 = vmatprep.subr.mxu0 0.0
        %3600 = vmatpush1.msra.mxu0 0.0
        %3601 = vmatprep.subr.mxu0 0.0
        %3602 = vmatpush1.msra.mxu0 0.0
        %3603 = vmatprep.subr.mxu0 0.0
        %3604 = vmatpush1.msra.mxu0 0.0
        %3605 = vmatprep.subr.mxu0 0.0
        %3606 = vmatpush1.msra.mxu0 0.0
        %3607 = vmatprep.subr.mxu0 0.0
        %3608 = vmatpush1.msra.mxu0 0.0
        %3609 = vmatprep.subr.mxu0 0.0
        %3610 = vmatpush1.msra.mxu0 0.0
        %3611 = vmatprep.subr.mxu0 0.0
        %3612 = vmatpush1.msra.mxu0 0.0
        %3613 = vmatprep.subr.mxu0 0.0
        %3614 = vmatpush1.msra.mxu0 0.0
        %3615 = vmatprep.subr.mxu0 0.0
        %3616 = vmatpush1.msra.mxu0 0.0
        %3617 = vmatprep.subr.mxu0 0.0
        %3618 = vmatpush1.msra.mxu0 0.0
        %3619 = vmatprep.subr.mxu0 0.0
        %3620 = vmatpush1.msra.mxu0 0.0
        %3621 = vmatprep.subr.mxu0 0.0
        %3622 = vmatpush1.msra.mxu0 0.0
        %3623 = vmatprep.subr.mxu0 0.0
        %3624 = vmatpush1.msra.mxu0 0.0
        %3625 = vmatprep.subr.mxu0 0.0
        %3626 = vmatpush1.msra.mxu0 0.0
        %3627 = vmatprep.subr.mxu0 0.0
        %3628 = vmatpush1.msra.mxu0 0.0
        %3629 = vmatprep.subr.mxu0 0.0
        %3630 = vmatpush1.msra.mxu0 0.0
        %3631 = vmatprep.subr.mxu0 0.0
        %3632 = vmatpush1.msra.mxu0 0.0
        %3633 = vmatprep.mubr.f32.mxu0 0.0
        %3634 = vmatmul.mubr.f32.gmra.mrb[0].mxu0 %v3466
        %v3635 = vpop.f32.mrb[0].mxu0
        %v3636 = vadd.f32 %v3462, %v3635
        %v3637 = vpop.f32.mrb[0].mxu0
        %v3638 = vadd.f32 %v3462, %v3637
        %3639 = vdwg.mxu0
        %3640 = vmatprep.subr.mxu0 %v3413
        %3641 = vmatpush1.msra.mxu0 %v3412
        %3642 = vmatprep.subr.mxu0 %v3423
        %3643 = vmatpush1.msra.mxu0 %v3422
        %3644 = vmatprep.subr.mxu0 %v3433
        %3645 = vmatpush1.msra.mxu0 %v3432
        %3646 = vmatprep.subr.mxu0 %v3443
        %3647 = vmatpush1.msra.mxu0 %v3442
        %3648 = vmatprep.subr.mxu0 %v3484
        %3649 = vmatpush1.msra.mxu0 %v3481
        %3650 = vmatprep.subr.mxu0 0.0
        %3651 = vmatpush1.msra.mxu0 0.0
        %3652 = vmatprep.subr.mxu0 0.0
        %3653 = vmatpush1.msra.mxu0 0.0
        %3654 = vmatprep.subr.mxu0 0.0
        %3655 = vmatpush1.msra.mxu0 0.0
        %3656 = vmatprep.subr.mxu0 0.0
        %3657 = vmatpush1.msra.mxu0 0.0
        %3658 = vmatprep.subr.mxu0 0.0
        %3659 = vmatpush1.msra.mxu0 0.0
        %3660 = vmatprep.subr.mxu0 0.0
        %3661 = vmatpush1.msra.mxu0 0.0
        %3662 = vmatprep.subr.mxu0 0.0
        %3663 = vmatpush1.msra.mxu0 0.0
        %3664 = vmatprep.subr.mxu0 0.0
        %3665 = vmatpush1.msra.mxu0 0.0
        %3666 = vmatprep.subr.mxu0 0.0
        %3667 = vmatpush1.msra.mxu0 0.0
        %3668 = vmatprep.subr.mxu0 0.0
        %3669 = vmatpush1.msra.mxu0 0.0
        %3670 = vmatprep.subr.mxu0 0.0
        %3671 = vmatpush1.msra.mxu0 0.0
        %3672 = vmatprep.subr.mxu0 0.0
        %3673 = vmatpush1.msra.mxu0 0.0
        %3674 = vmatprep.subr.mxu0 0.0
        %3675 = vmatpush1.msra.mxu0 0.0
        %3676 = vmatprep.subr.mxu0 0.0
        %3677 = vmatpush1.msra.mxu0 0.0
        %3678 = vmatprep.subr.mxu0 0.0
        %3679 = vmatpush1.msra.mxu0 0.0
        %3680 = vmatprep.subr.mxu0 0.0
        %3681 = vmatpush1.msra.mxu0 0.0
        %3682 = vmatprep.subr.mxu0 0.0
        %3683 = vmatpush1.msra.mxu0 0.0
        %3684 = vmatprep.subr.mxu0 0.0
        %3685 = vmatpush1.msra.mxu0 0.0
        %3686 = vmatprep.subr.mxu0 0.0
        %3687 = vmatpush1.msra.mxu0 0.0
        %3688 = vmatprep.subr.mxu0 0.0
        %3689 = vmatpush1.msra.mxu0 0.0
        %3690 = vmatprep.subr.mxu0 0.0
        %3691 = vmatpush1.msra.mxu0 0.0
        %3692 = vmatprep.subr.mxu0 0.0
        %3693 = vmatpush1.msra.mxu0 0.0
        %3694 = vmatprep.subr.mxu0 0.0
        %3695 = vmatpush1.msra.mxu0 0.0
        %3696 = vmatprep.subr.mxu0 0.0
        %3697 = vmatpush1.msra.mxu0 0.0
        %3698 = vmatprep.subr.mxu0 0.0
        %3699 = vmatpush1.msra.mxu0 0.0
        %3700 = vmatprep.subr.mxu0 0.0
        %3701 = vmatpush1.msra.mxu0 0.0
        %3702 = vmatprep.subr.mxu0 0.0
        %3703 = vmatpush1.msra.mxu0 0.0
        %3704 = vmatprep.mubr.f32.mxu0 0.0
        %3705 = vmatmul.mubr.f32.gmra.mrb[0].mxu0 %v3466
        %v3706 = vpop.f32.mrb[0].mxu0
        %v3707 = vadd.f32 %v3462, %v3706
        %v3708 = vpop.f32.mrb[0].mxu0
        %v3709 = vadd.f32 %v3462, %v3708
        %3710 = vdwg.mxu0
        %3711 = vmatprep.subr.mxu0 %v3415
        %3712 = vmatpush1.msra.mxu0 %v3414
        %3713 = vmatprep.subr.mxu0 %v3425
        %3714 = vmatpush1.msra.mxu0 %v3424
        %3715 = vmatprep.subr.mxu0 %v3435
        %3716 = vmatpush1.msra.mxu0 %v3434
        %3717 = vmatprep.subr.mxu0 %v3445
        %3718 = vmatpush1.msra.mxu0 %v3444
        %3719 = vmatprep.subr.mxu0 %v3490
        %3720 = vmatpush1.msra.mxu0 %v3487
        %3721 = vmatprep.subr.mxu0 0.0
        %3722 = vmatpush1.msra.mxu0 0.0
        %3723 = vmatprep.subr.mxu0 0.0
        %3724 = vmatpush1.msra.mxu0 0.0
        %3725 = vmatprep.subr.mxu0 0.0
        %3726 = vmatpush1.msra.mxu0 0.0
        %3727 = vmatprep.subr.mxu0 0.0
        %3728 = vmatpush1.msra.mxu0 0.0
        %3729 = vmatprep.subr.mxu0 0.0
        %3730 = vmatpush1.msra.mxu0 0.0
        %3731 = vmatprep.subr.mxu0 0.0
        %3732 = vmatpush1.msra.mxu0 0.0
        %3733 = vmatprep.subr.mxu0 0.0
        %3734 = vmatpush1.msra.mxu0 0.0
        %3735 = vmatprep.subr.mxu0 0.0
        %3736 = vmatpush1.msra.mxu0 0.0
        %3737 = vmatprep.subr.mxu0 0.0
        %3738 = vmatpush1.msra.mxu0 0.0
        %3739 = vmatprep.subr.mxu0 0.0
        %3740 = vmatpush1.msra.mxu0 0.0
        %3741 = vmatprep.subr.mxu0 0.0
        %3742 = vmatpush1.msra.mxu0 0.0
        %3743 = vmatprep.subr.mxu0 0.0
        %3744 = vmatpush1.msra.mxu0 0.0
        %3745 = vmatprep.subr.mxu0 0.0
        %3746 = vmatpush1.msra.mxu0 0.0
        %3747 = vmatprep.subr.mxu0 0.0
        %3748 = vmatpush1.msra.mxu0 0.0
        %3749 = vmatprep.subr.mxu0 0.0
        %3750 = vmatpush1.msra.mxu0 0.0
        %3751 = vmatprep.subr.mxu0 0.0
        %3752 = vmatpush1.msra.mxu0 0.0
        %3753 = vmatprep.subr.mxu0 0.0
        %3754 = vmatpush1.msra.mxu0 0.0
        %3755 = vmatprep.subr.mxu0 0.0
        %3756 = vmatpush1.msra.mxu0 0.0
        %3757 = vmatprep.subr.mxu0 0.0
        %3758 = vmatpush1.msra.mxu0 0.0
        %3759 = vmatprep.subr.mxu0 0.0
        %3760 = vmatpush1.msra.mxu0 0.0
        %3761 = vmatprep.subr.mxu0 0.0
        %3762 = vmatpush1.msra.mxu0 0.0
        %3763 = vmatprep.subr.mxu0 0.0
        %3764 = vmatpush1.msra.mxu0 0.0
        %3765 = vmatprep.subr.mxu0 0.0
        %3766 = vmatpush1.msra.mxu0 0.0
        %3767 = vmatprep.subr.mxu0 0.0
        %3768 = vmatpush1.msra.mxu0 0.0
        %3769 = vmatprep.subr.mxu0 0.0
        %3770 = vmatpush1.msra.mxu0 0.0
        %3771 = vmatprep.subr.mxu0 0.0
        %3772 = vmatpush1.msra.mxu0 0.0
        %3773 = vmatprep.subr.mxu0 0.0
        %3774 = vmatpush1.msra.mxu0 0.0
        %3775 = vmatprep.mubr.f32.mxu0 0.0
        %3776 = vmatmul.mubr.f32.gmra.mrb[0].mxu0 %v3466
        %v3777 = vpop.f32.mrb[0].mxu0
        %v3778 = vadd.f32 %v3462, %v3777
        %v3779 = vpop.f32.mrb[0].mxu0
        %v3780 = vadd.f32 %v3462, %v3779
        %3781 = vdwg.mxu0
        %3782 = vmatprep.subr.mxu0 %v3417
        %3783 = vmatpush1.msra.mxu0 %v3416
        %3784 = vmatprep.subr.mxu0 %v3427
        %3785 = vmatpush1.msra.mxu0 %v3426
        %3786 = vmatprep.subr.mxu0 %v3437
        %3787 = vmatpush1.msra.mxu0 %v3436
        %3788 = vmatprep.subr.mxu0 %v3447
        %3789 = vmatpush1.msra.mxu0 %v3446
        %3790 = vmatprep.subr.mxu0 %v3496
        %3791 = vmatpush1.msra.mxu0 %v3493
        %3792 = vmatprep.subr.mxu0 0.0
        %3793 = vmatpush1.msra.mxu0 0.0
        %3794 = vmatprep.subr.mxu0 0.0
        %3795 = vmatpush1.msra.mxu0 0.0
        %3796 = vmatprep.subr.mxu0 0.0
        %3797 = vmatpush1.msra.mxu0 0.0
        %3798 = vmatprep.subr.mxu0 0.0
        %3799 = vmatpush1.msra.mxu0 0.0
        %3800 = vmatprep.subr.mxu0 0.0
        %3801 = vmatpush1.msra.mxu0 0.0
        %3802 = vmatprep.subr.mxu0 0.0
        %3803 = vmatpush1.msra.mxu0 0.0
        %3804 = vmatprep.subr.mxu0 0.0
        %3805 = vmatpush1.msra.mxu0 0.0
        %3806 = vmatprep.subr.mxu0 0.0
        %3807 = vmatpush1.msra.mxu0 0.0
        %3808 = vmatprep.subr.mxu0 0.0
        %3809 = vmatpush1.msra.mxu0 0.0
        %3810 = vmatprep.subr.mxu0 0.0
        %3811 = vmatpush1.msra.mxu0 0.0
        %3812 = vmatprep.subr.mxu0 0.0
        %3813 = vmatpush1.msra.mxu0 0.0
        %3814 = vmatprep.subr.mxu0 0.0
        %3815 = vmatpush1.msra.mxu0 0.0
        %3816 = vmatprep.subr.mxu0 0.0
        %3817 = vmatpush1.msra.mxu0 0.0
        %3818 = vmatprep.subr.mxu0 0.0
        %3819 = vmatpush1.msra.mxu0 0.0
        %3820 = vmatprep.subr.mxu0 0.0
        %3821 = vmatpush1.msra.mxu0 0.0
        %3822 = vmatprep.subr.mxu0 0.0
        %3823 = vmatpush1.msra.mxu0 0.0
        %3824 = vmatprep.subr.mxu0 0.0
        %3825 = vmatpush1.msra.mxu0 0.0
        %3826 = vmatprep.subr.mxu0 0.0
        %3827 = vmatpush1.msra.mxu0 0.0
        %3828 = vmatprep.subr.mxu0 0.0
        %3829 = vmatpush1.msra.mxu0 0.0
        %3830 = vmatprep.subr.mxu0 0.0
        %3831 = vmatpush1.msra.mxu0 0.0
        %3832 = vmatprep.subr.mxu0 0.0
        %3833 = vmatpush1.msra.mxu0 0.0
        %3834 = vmatprep.subr.mxu0 0.0
        %3835 = vmatpush1.msra.mxu0 0.0
        %3836 = vmatprep.subr.mxu0 0.0
        %3837 = vmatpush1.msra.mxu0 0.0
        %3838 = vmatprep.subr.mxu0 0.0
        %3839 = vmatpush1.msra.mxu0 0.0
        %3840 = vmatprep.subr.mxu0 0.0
        %3841 = vmatpush1.msra.mxu0 0.0
        %3842 = vmatprep.subr.mxu0 0.0
        %3843 = vmatpush1.msra.mxu0 0.0
        %3844 = vmatprep.subr.mxu0 0.0
        %3845 = vmatpush1.msra.mxu0 0.0
        %3846 = vmatprep.mubr.f32.mxu0 0.0
        %3847 = vmatmul.mubr.f32.gmra.mrb[0].mxu0 %v3466
        %v3848 = vpop.f32.mrb[0].mxu0
        %v3849 = vadd.f32 %v3462, %v3848
        %v3850 = vpop.f32.mrb[0].mxu0
        %v3851 = vadd.f32 %v3462, %v3850
        %3852 = vdwg.mxu0
        %v3863 = vcombine.low %v3565, %v3567
        %v3864 = vcombine.low %v3636, %v3638
        %v3865 = vcombine.low %v3707, %v3709
        %v3866 = vcombine.low %v3778, %v3780
        %v3867 = vcombine.low %v3849, %v3851
        %3873 = vst [vmem:[%s267] sm:$0xff] %v3863
        %3874 = vst [vmem:[%s267 + $0x8] sm:$0xff] %v3864
        %3875 = vst [vmem:[%s267 + $0x10] sm:$0xff] %v3865
        %3876 = vst [vmem:[%s267 + $0x18] sm:$0xff] %v3866
        %3877 = vst [vmem:[%s267 + $0x20] sm:$0xff] %v3867
        %s3878 = sand.u32 %s162, 1
        %s3879 = scalar_lea.sflag [#allocation7], %s3878
        %s3880 = sand.u32 %s162, 1
        %s3881 = smul.addr %s3880, 40
        %s3882 = scalar_lea.vmem [#allocation8], %s3881
        // Predicated region
        $region49: #{tpu_custom_call.1} parent=43 // pred_check
          %p3883 = pneg %p172
        $region50: #{tpu_custom_call.1} parent=43 // pred_check_branch
          %3885 = sbr.rel (%p3883) target = $region52
        $region51: #{tpu_custom_call.1} parent=43 // pred_region
          %s3887 = ssub.s32 640, 640
          %3888 = vsyncadd %s3879, %s3887
          %s3889 = smul.addr %s23, 10
          %s3890 = smul.addr %s3889, 64
          %s3891 = scalar_lea.hbm %s6, %s3890
          %s3893 = sshll.u32 %s3882, 4
          %s3894 = int_to_ptr.vmem [resolvable:$true] %s3893
          %3896 = dma.vmem_to_hbm [thread:$0]  %s3894, 640, %s3891, %s3879
        $region52: #{tpu_custom_call.1} parent=43 // pred_fallthru
          _
      $region44: #{tpu_custom_call.1} parent=5 // pred_fallthru
        _
      %p3897 = scmp.le.s32.totalorder 2, %s18
      // Predicated region
      $region53: #{tpu_custom_call.1} parent=5 // pred_check
        %p3898 = pneg %p3897
      $region54: #{tpu_custom_call.1} parent=5 // pred_check_branch
        %3900 = sbr.rel (%p3898) target = $region56
      $region55: #{tpu_custom_call.1} parent=5 // pred_region
        %s3901 = ssub.s32 %s18, 2
        // Predicated region
        $region57: #{tpu_custom_call.1} parent=55 // pred_check
          %p3902 = pneg %p178
        $region58: #{tpu_custom_call.1} parent=55 // pred_check_branch
          %3904 = sbr.rel (%p3902) target = $region60
        $region59: #{tpu_custom_call.1} parent=55 // pred_region
          %s3905 = sand.u32 %s163, 1
          %s3906 = scalar_lea.sflag [#allocation7], %s3905
          %s3907 = sand.u32 %s163, 1
          %s3908 = smul.addr %s3907, 40
          %s3909 = scalar_lea.vmem [#allocation8], %s3908
          %3910 = dma.done %s3906, 640
        $region60: #{tpu_custom_call.1} parent=55 // pred_fallthru
          _
      $region56: #{tpu_custom_call.1} parent=5 // pred_fallthru
        _
    $region6: #{tpu_custom_call.1} parent=1 // loop_footer
      %s22 = sadd.s32 1, %s18
    $region7: #{tpu_custom_call.1} parent=1 // loop_footer_branch
      %17 = sbr.rel target = $region3
    $region8: #{tpu_custom_call.1} parent=1 // loop_exit
      _
    %3911 = vsyncpa [#allocation6], 1
    %s3912 = scalar_lea.sflag [#allocation6], 1
    %3913 = vsyncpa %s3912, 1
    %3914 = vsyncpa [#allocation7], 1
    %s3915 = scalar_lea.sflag [#allocation7], 1
    %3916 = vsyncpa %s3915, 1

</llo_original>
